<compile_context>
chip_gen: v5e
topology: v5e:2x2
jax: 0.10.0
libtpu: 0.0.40
codegen_flags: <defaults>
</compile_context>

<pallas_src>
import math

import jax
import jax.numpy as jnp
from jax.experimental import pallas as pl
from jax.experimental.pallas import tpu as pltpu

# ---------------- small synthetic config (shapes implied by the module) ----------------
B = 2
T = 16
F_IN = 16
CH = [32, 32, 32, 32, 96]        # channels; CH[-1] == 3 * CH[1] (cat of blocks[1:])
KS = [5, 3, 3, 3, 1]             # kernel sizes
DIL = [1, 2, 3, 4, 1]            # dilations
RES2NET_SCALE = 4
SE_CH = 16
ATT_CH = 16
LIN = 32                         # fc output (speaker-embedding dim)
BN_EPS = 1e-5
ASP_EPS = 1e-12
HI = jax.lax.Precision.HIGHEST

MM_DTYPE = jnp.float32           # keep f32 for tight parity with the f32 reference


def _mm(a, b):
    return jnp.dot(a.astype(MM_DTYPE), b.astype(MM_DTYPE),
                   preferred_element_type=jnp.float32)


# Order of packed-weight arguments to the fused kernel.
_PACK_ORDER = ("w0", "v0",
               "w1s", "v1s", "rws", "rvs", "w2s", "v2s",
               "sew1s", "sev1s", "sew2s", "sev2s",
               "mws", "mv", "wts", "av", "wa", "ba", "fws", "fcb")


# ---------------------------------------------------------------------------------------
# Host-side weight packing (runs ONCE, outside the jitted forward)
# ---------------------------------------------------------------------------------------
def pack_params(p):
    cs = CH[1] // RES2NET_SCALE
    c = CH[1]
    c4 = CH[4]
    packed = {}

    b0 = p["blocks"][0]
    packed["w0"] = b0["w"]                                                       # (5, F_IN, C)
    packed["v0"] = jnp.concatenate([b0["b"], b0["scale"], b0["shift"]], axis=0)  # (3, C)

    w1s, v1s, rws, rvs, w2s, v2s = [], [], [], [], [], []
    sew1s, sev1s, sew2s, sev2s = [], [], [], []
    for i in (1, 2, 3):
        blk = p["blocks"][i]
        # tdnn1 (1x1): split into per-branch COLUMN blocks -> branch inputs computed directly
        w1 = blk["tdnn1"]["w"].reshape(c, c)
        w1s.append(jnp.stack([w1[:, j * cs:(j + 1) * cs] for j in range(RES2NET_SCALE)]))
        v1 = jnp.concatenate([blk["tdnn1"]["b"], blk["tdnn1"]["scale"], blk["tdnn1"]["shift"]],
                             axis=0)                                             # (3, C)
        v1s.append(jnp.stack([v1[:, j * cs:(j + 1) * cs] for j in range(RES2NET_SCALE)], axis=1))
        # Res2Net branch convs (kernel-size-3)
        rws.append(jnp.stack([q["w"] for q in blk["res2net"]]))                  # (3, 3, cs, cs)
        rvs.append(jnp.stack([jnp.concatenate([q["b"], q["scale"], q["shift"]], axis=0)
                              for q in blk["res2net"]]))                         # (3, 3, cs)
        # tdnn2 (1x1): split into ROW blocks -> concat(ys) @ W2 == sum_j ys[j] @ W2_j
        w2 = blk["tdnn2"]["w"].reshape(c, c)
        w2s.append(jnp.stack([w2[j * cs:(j + 1) * cs, :] for j in range(RES2NET_SCALE)]))
        v2s.append(jnp.concatenate([blk["tdnn2"]["b"], blk["tdnn2"]["scale"], blk["tdnn2"]["shift"]],
                                   axis=0))                                      # (3, C)
        se = blk["se"]
        sew1s.append(se["w1"]); sev1s.append(se["b1"][0])
        sew2s.append(se["w2"]); sev2s.append(se["b2"][0])

    packed["w1s"] = jnp.stack(w1s)                                  # (3, 4, C, cs)
    packed["v1s"] = jnp.stack(v1s)                                  # (3, 3, 4, cs)
    packed["rws"] = jnp.stack(rws).reshape(9, KS[1], cs, cs)        # (blk*branch, tap, cs, cs)
    packed["rvs"] = jnp.stack(rvs).reshape(9, 3, cs)                # (blk*branch, b/s/t, cs)
    packed["w2s"] = jnp.stack(w2s)                                  # (3, 4, cs, C)
    packed["v2s"] = jnp.stack(v2s)                                  # (3, 3, C)
    packed["sew1s"] = jnp.stack(sew1s)                              # (3, C, SE_CH)
    packed["sev1s"] = jnp.stack(sev1s)                              # (3, SE_CH)
    packed["sew2s"] = jnp.stack(sew2s)                              # (3, SE_CH, C)
    packed["sev2s"] = jnp.stack(sev2s)                              # (3, C)

    # head: MFA weight split into the 3 input-feature row blocks (no lane concat in-kernel)
    mw = p["mfa"]["w"].reshape(3 * c, c4)
    packed["mws"] = jnp.stack([mw[j * c:(j + 1) * c, :] for j in range(3)])      # (3, C, C4)
    packed["mv"] = jnp.concatenate([p["mfa"]["b"], p["mfa"]["scale"], p["mfa"]["shift"]], axis=0)
    # ASP attention TDNN weight split into x / mean / std row blocks
    wt = p["asp"]["wt"]                                                          # (3*C4, A)
    packed["wts"] = jnp.stack([wt[j * c4:(j + 1) * c4, :] for j in range(3)])    # (3, C4, A)
    packed["av"] = jnp.concatenate([p["asp"]["bt"], p["asp"]["scale"], p["asp"]["shift"]], axis=0)
    packed["wa"] = p["asp"]["wa"]                                                # (A, C4)
    packed["ba"] = p["asp"]["ba"]                                                # (1, C4)
    # fc weight split into mean / std row blocks
    fw = p["fc_w"].reshape(2 * c4, LIN)
    packed["fws"] = jnp.stack([fw[:c4, :], fw[c4:, :]])                          # (2, C4, LIN)
    packed["fcb"] = p["fc_b"]                                                    # (1, LIN)
    return packed


# ---------------------------------------------------------------------------------------
# The single fused kernel: block0 + 3 SERes2NetBlocks + MFA + ASP + fc  (per batch element)
# ---------------------------------------------------------------------------------------
def _ecapa_kernel(x_ref, w0_ref, v0_ref,
                  w1s_ref, v1s_ref, rws_ref, rvs_ref, w2s_ref, v2s_ref,
                  sew1s_ref, sev1s_ref, sew2s_ref, sev2s_ref,
                  mws_ref, mv_ref, wts_ref, av_ref, wa_ref, ba_ref,
                  fws_ref, fcb_ref, o_ref):
    t_len = x_ref.shape[1]
    inv_t = 1.0 / t_len

    def dconv(x, w_taps, dil):
        """Dilated 'same' conv, reflect padding.  Per-tap dot accumulation (no im2col lane
        concat); the padded operand is a VALUE built via a sublane concat (stays in vregs)."""
        taps = len(w_taps)
        pad = dil * (taps - 1) // 2
        if pad > 0:
            left = [x[r:r + 1, :] for r in range(pad, 0, -1)]                    # x[pad] .. x[1]
            right = [x[t_len - 2 - r:t_len - 1 - r, :] for r in range(pad)]      # x[T-2] .. x[T-1-pad]
            xp = jnp.concatenate(left + [x] + right, axis=0)
        else:
            xp = x
        acc = _mm(xp[0:t_len, :], w_taps[0])
        for k in range(1, taps):
            acc = acc + _mm(xp[k * dil:k * dil + t_len, :], w_taps[k])
        return acc

    # ---------------- blocks[0]: TDNNBlock (F_IN -> C, k=5, dil=1) ----------------
    h = dconv(x_ref[0], [w0_ref[k] for k in range(KS[0])], DIL[0])
    h = jnp.maximum(h + v0_ref[0:1], 0.0) * v0_ref[1:2] + v0_ref[2:3]            # (T, C)

    # ---------------- blocks[1:4]: fused SERes2NetBlocks ----------------
    feats = []
    for bi in range(3):
        dil = DIL[bi + 1]
        # tdnn1 (1x1) with pre-split column blocks -> Res2Net branch inputs directly
        chunks = []
        for j in range(RES2NET_SCALE):
            cj = _mm(h, w1s_ref[bi, j])                                          # (T, cs)
            cj = (jnp.maximum(cj + v1s_ref[bi, 0, j:j + 1], 0.0)
                  * v1s_ref[bi, 1, j:j + 1] + v1s_ref[bi, 2, j:j + 1])
            chunks.append(cj)
        # Res2Net running-sum chain
        ys = [chunks[0]]
        for j in range(1, RES2NET_SCALE):
            inp = chunks[j] if j == 1 else chunks[j] + ys[-1]
            br = bi * 3 + (j - 1)
            z = dconv(inp, [rws_ref[br, k] for k in range(KS[bi + 1])], dil)
            z = (jnp.maximum(z + rvs_ref[br, 0:1], 0.0)
                 * rvs_ref[br, 1:2] + rvs_ref[br, 2:3])
            ys.append(z)
        # tdnn2 (1x1): concat(ys) @ W2 == sum_j ys[j] @ W2_rowblock_j   (no lane concat)
        y = _mm(ys[0], w2s_ref[bi, 0])
        for j in range(1, RES2NET_SCALE):
            y = y + _mm(ys[j], w2s_ref[bi, j])
        y = jnp.maximum(y + v2s_ref[bi, 0:1], 0.0) * v2s_ref[bi, 1:2] + v2s_ref[bi, 2:3]
        # SE gate (time mean -> two tiny matvecs) + identity residual
        smean = jnp.sum(y, axis=0, keepdims=True) * inv_t                        # (1, C)
        s = jnp.maximum(_mm(smean, sew1s_ref[bi]) + sev1s_ref[bi:bi + 1], 0.0)   # (1, SE_CH)
        g = jax.nn.sigmoid(_mm(s, sew2s_ref[bi]) + sev2s_ref[bi:bi + 1])         # (1, C)
        h = y * g + h
        feats.append(h)

    # ---------------- head: MFA + Attentive Statistics Pooling + fc ----------------
    # MFA: cat(feats) @ Wm == sum_i feats[i] @ Wm_rowblock_i   (no lane concat)
    m = _mm(feats[0], mws_ref[0]) + _mm(feats[1], mws_ref[1]) + _mm(feats[2], mws_ref[2])
    m = jnp.maximum(m + mv_ref[0:1], 0.0) * mv_ref[1:2] + mv_ref[2:3]            # (T, C4)
    # global-context statistics (full-length utterances; no length masking)
    gmean = jnp.sum(m, axis=0, keepdims=True) * inv_t                            # (1, C4)
    gvar = jnp.sum((m - gmean) ** 2, axis=0, keepdims=True) * inv_t
    gstd = jnp.sqrt(jnp.maximum(gvar, ASP_EPS))
    # attention TDNN: [m | gmean | gstd] @ Wt == m@Wt_x + gmean@Wt_m + gstd@Wt_s (1-row dots)
    a = _mm(m, wts_ref[0]) + _mm(gmean, wts_ref[1]) + _mm(gstd, wts_ref[2]) + av_ref[0:1]
    a = jnp.tanh(jnp.maximum(a, 0.0) * av_ref[1:2] + av_ref[2:3])                # (T, A)
    logits = _mm(a, wa_ref[...]) + ba_ref[...]                                   # (T, C4)
    mx = jnp.max(logits, axis=0, keepdims=True)
    e = jnp.exp(logits - mx)
    attn = e / jnp.sum(e, axis=0, keepdims=True)                                 # softmax over time
    mean = jnp.sum(attn * m, axis=0, keepdims=True)
    var = jnp.sum(attn * (m - mean) ** 2, axis=0, keepdims=True)
    std = jnp.sqrt(jnp.maximum(var, ASP_EPS))
    # fc (1x1): [mean | std] @ Wfc == mean @ Wfc_mean + std @ Wfc_std   (no lane concat)
    out = _mm(mean, fws_ref[0]) + _mm(std, fws_ref[1]) + fcb_ref[...]            # (1, LIN)
    o_ref[0] = out.astype(o_ref.dtype)


def _const_map(nd):
    return lambda i, _nd=nd: (0,) * _nd


def ecapa_forward_pallas(packed, x):
    """x: (B, T, F_IN) channels-last, so the module's x.transpose(1, 2) is a no-op.
    Output: (B, 1, LIN) == PyTorch output after permute(0, 2, 1)."""
    bsz, t_len, f_in = x.shape
    lin = packed["fcb"].shape[-1]
    # reflect padding requires pad < T for every conv
    assert max(DIL[i] * (KS[i] - 1) // 2 for i in range(4)) < t_len

    args = [x]
    in_specs = [pl.BlockSpec((1, t_len, f_in), lambda i: (i, 0, 0))]
    for name in _PACK_ORDER:
        a = packed[name]
        args.append(a)
        in_specs.append(pl.BlockSpec(a.shape, _const_map(a.ndim)))

    return pl.pallas_call(
        _ecapa_kernel,
        out_shape=jax.ShapeDtypeStruct((bsz, 1, lin), jnp.float32),
        grid=(bsz,),
        in_specs=in_specs,
        out_specs=pl.BlockSpec((1, 1, lin), lambda i: (i, 0, 0)),
        compiler_params=pltpu.CompilerParams(dimension_semantics=("parallel",)),
    )(*args)


# ---------------------------------------------------------------------------------------
# Pure-JAX reference (same semantics, used only for the parity check)
# ---------------------------------------------------------------------------------------
def _conv1d_ref(xp, w, b, scale, shift, dilation, relu):
    taps = w.shape[0]
    t_out = xp.shape[1] - dilation * (taps - 1)
    acc = jnp.zeros((xp.shape[0], t_out, w.shape[2]), jnp.float32)
    for k in range(taps):
        acc = acc + jnp.einsum("btc,cd->btd",
                               xp[:, k * dilation:k * dilation + t_out, :], w[k],
                               precision=HI)
    acc = acc + b
    if relu:
        acc = jnp.maximum(acc, 0.0)
    return acc * scale + shift


def _conv1d_op_ref(x, w, b, scale, shift, dilation, relu):
    taps = w.shape[0]
    pad = dilation * (taps - 1) // 2
    if pad > 0:  # speechbrain Conv1d: "same" padding, padding_mode="reflect"
        x = jnp.pad(x, ((0, 0), (pad, pad), (0, 0)), mode="reflect")
    return _conv1d_ref(x, w, b, scale, shift, dilation, relu)


def _se_ref(h, w1, b1, w2, b2):
    s = jnp.mean(h, axis=1, keepdims=True)
    s = jnp.maximum(jnp.einsum("btc,cs->bts", s, w1, precision=HI) + b1, 0.0)
    g = jax.nn.sigmoid(jnp.einsum("bts,sc->btc", s, w2, precision=HI) + b2)
    return h * g


def _asp_ref(h, wt, bt, sc, sh, wa, ba):
    gmean = jnp.mean(h, axis=1, keepdims=True)
    gvar = jnp.mean((h - gmean) ** 2, axis=1, keepdims=True)
    gstd = jnp.sqrt(jnp.maximum(gvar, ASP_EPS))
    att_in = jnp.concatenate(
        [h, jnp.broadcast_to(gmean, h.shape), jnp.broadcast_to(gstd, h.shape)], axis=2)
    a = jnp.einsum("btc,ca->bta", att_in, wt, precision=HI) + bt
    a = jnp.maximum(a, 0.0) * sc + sh
    a = jnp.tanh(a)
    logits = jnp.einsum("bta,ac->btc", a, wa, precision=HI) + ba
    attn = jax.nn.softmax(logits, axis=1)
    mean = jnp.sum(attn * h, axis=1, keepdims=True)
    var = jnp.sum(attn * (h - mean) ** 2, axis=1, keepdims=True)
    std = jnp.sqrt(jnp.maximum(var, ASP_EPS))
    return jnp.concatenate([mean, std], axis=2)


def ecapa_forward_ref(params, x):
    def tdnn(h, p, d):
        return _conv1d_op_ref(h, p["w"], p["b"], p["scale"], p["shift"], d, True)

    xl = []
    h = tdnn(x, params["blocks"][0], DIL[0])
    xl.append(h)
    for i in (1, 2, 3):
        p = params["blocks"][i]
        residual = h
        y = tdnn(h, p["tdnn1"], 1)
        chunks = jnp.split(y, RES2NET_SCALE, axis=2)
        ys = [chunks[0]]
        for j in range(1, RES2NET_SCALE):
            inp = chunks[j] if j == 1 else chunks[j] + ys[-1]
            ys.append(tdnn(inp, p["res2net"][j - 1], DIL[i]))
        y = jnp.concatenate(ys, axis=2)
        y = tdnn(y, p["tdnn2"], 1)
        se = p["se"]
        y = _se_ref(y, se["w1"], se["b1"], se["w2"], se["b2"])
        h = y + residual
        xl.append(h)

    cat = jnp.concatenate(xl[1:], axis=2)
    m = tdnn(cat, params["mfa"], DIL[4])
    a = params["asp"]
    pooled = _asp_ref(m, a["wt"], a["bt"], a["scale"], a["shift"], a["wa"], a["ba"])
    one = jnp.ones((1, LIN), jnp.float32)
    zero = jnp.zeros((1, LIN), jnp.float32)
    return _conv1d_op_ref(pooled, params["fc_w"], params["fc_b"], one, zero, 1, False)


# ---------------------------------------------------------------------------------------
# Deterministic parameter init (BatchNorm folded to inference-mode scale/shift)
# ---------------------------------------------------------------------------------------
def init_params(key):
    it = iter(jax.random.split(key, 256))

    def nk():
        return next(it)

    def conv_init(cin, cout, k):
        w = jax.random.normal(nk(), (k, cin, cout), jnp.float32) / math.sqrt(cin * k)
        b = 0.05 * jax.random.normal(nk(), (1, cout), jnp.float32)
        return w, b

    def bn_init(c):
        gamma = 1.0 + 0.1 * jax.random.normal(nk(), (1, c), jnp.float32)
        beta = 0.1 * jax.random.normal(nk(), (1, c), jnp.float32)
        rmean = 0.1 * jax.random.normal(nk(), (1, c), jnp.float32)
        rvar = 0.5 + jax.random.uniform(nk(), (1, c), jnp.float32)
        scale = gamma / jnp.sqrt(rvar + BN_EPS)
        shift = beta - rmean * scale
        return scale, shift

    def tdnn_init(cin, cout, k):
        w, b = conv_init(cin, cout, k)
        s, sh = bn_init(cout)
        return {"w": w, "b": b, "scale": s, "shift": sh}

    blocks = [tdnn_init(F_IN, CH[0], KS[0])]
    for i in (1, 2, 3):
        w1, b1 = conv_init(CH[i], SE_CH, 1)
        w2, b2 = conv_init(SE_CH, CH[i], 1)
        blocks.append({
            "tdnn1": tdnn_init(CH[i - 1], CH[i], 1),
            "res2net": [tdnn_init(CH[i] // RES2NET_SCALE, CH[i] // RES2NET_SCALE, KS[i])
                        for _ in range(RES2NET_SCALE - 1)],
            "tdnn2": tdnn_init(CH[i], CH[i], 1),
            "se": {"w1": w1[0], "b1": b1, "w2": w2[0], "b2": b2},
        })
    mfa = tdnn_init(3 * CH[3], CH[4], KS[4])
    wt, bt = conv_init(3 * CH[4], ATT_CH, 1)
    asc, ash = bn_init(ATT_CH)
    wa, ba = conv_init(ATT_CH, CH[4], 1)
    asp = {"wt": wt[0], "bt": bt, "scale": asc, "shift": ash, "wa": wa[0], "ba": ba}
    fcw, fcb = conv_init(2 * CH[4], LIN, 1)
    # TODO(synk): BatchNorm running-stat updates (training mode) are not modeled; inference affine only.
    return {"blocks": blocks, "mfa": mfa, "asp": asp, "fc_w": fcw, "fc_b": fcb}


# ---------------------------------------------------------------------------------------
if __name__ == "__main__":
    root = jax.random.PRNGKey(0)
    k_params, k_x = jax.random.split(root)
    params = init_params(k_params)
    packed = pack_params(params)                  # host-side packing, once (outside jit)
    x = jax.random.normal(k_x, (B, T, F_IN), jnp.float32)

    fwd_pallas = jax.jit(ecapa_forward_pallas)
    fwd_ref = jax.jit(ecapa_forward_ref)

    out = jax.block_until_ready(fwd_pallas(packed, x))
    ref = jax.block_until_ready(fwd_ref(params, x))

    assert out.shape == (B, 1, LIN), out.shape
    err = float(jnp.max(jnp.abs(out - ref)))
    assert err < 2e-3, f"pallas vs reference mismatch, max abs diff = {err}"
    print("KERNEL_OK")
</pallas_src>

<mosaic_0001>
module attributes {stable_mosaic.version = 11 : i64} {
  func.func @_ecapa_kernel(%arg0: i32, %arg1: memref<1x16x16xf32, #tpu.memory_space<vmem>>, %arg2: memref<5x16x32xf32, #tpu.memory_space<vmem>>, %arg3: memref<3x32xf32, #tpu.memory_space<vmem>>, %arg4: memref<3x4x32x8xf32, #tpu.memory_space<vmem>>, %arg5: memref<3x3x4x8xf32, #tpu.memory_space<vmem>>, %arg6: memref<9x3x8x8xf32, #tpu.memory_space<vmem>>, %arg7: memref<9x3x8xf32, #tpu.memory_space<vmem>>, %arg8: memref<3x4x8x32xf32, #tpu.memory_space<vmem>>, %arg9: memref<3x3x32xf32, #tpu.memory_space<vmem>>, %arg10: memref<3x32x16xf32, #tpu.memory_space<vmem>>, %arg11: memref<3x16xf32, #tpu.memory_space<vmem>>, %arg12: memref<3x16x32xf32, #tpu.memory_space<vmem>>, %arg13: memref<3x32xf32, #tpu.memory_space<vmem>>, %arg14: memref<3x32x96xf32, #tpu.memory_space<vmem>>, %arg15: memref<3x96xf32, #tpu.memory_space<vmem>>, %arg16: memref<3x96x16xf32, #tpu.memory_space<vmem>>, %arg17: memref<3x16xf32, #tpu.memory_space<vmem>>, %arg18: memref<16x96xf32, #tpu.memory_space<vmem>>, %arg19: memref<1x96xf32, #tpu.memory_space<vmem>>, %arg20: memref<2x96x32xf32, #tpu.memory_space<vmem>>, %arg21: memref<1x32xf32, #tpu.memory_space<vmem>>, %arg22: memref<1x1x32xf32, #tpu.memory_space<vmem>>) attributes {dimension_semantics = [#tpu.dimension_semantics<parallel>], iteration_bounds = array<i64: 2>, scalar_prefetch = 0 : i64, scratch_operands = 0 : i64, tpu.core_type = #tpu.core_type<tc>, window_params = [{transform_indices = @transform_0, window_bounds = array<i64: 1, 16, 16>}, {pipeline_mode = #tpu.pipeline_mode<synchronous>, transform_indices = @transform_1, window_bounds = array<i64: 5, 16, 32>}, {pipeline_mode = #tpu.pipeline_mode<synchronous>, transform_indices = @transform_2, window_bounds = array<i64: 3, 32>}, {pipeline_mode = #tpu.pipeline_mode<synchronous>, transform_indices = @transform_3, window_bounds = array<i64: 3, 4, 32, 8>}, {pipeline_mode = #tpu.pipeline_mode<synchronous>, transform_indices = @transform_4, window_bounds = array<i64: 3, 3, 4, 8>}, {pipeline_mode = #tpu.pipeline_mode<synchronous>, transform_indices = @transform_5, window_bounds = array<i64: 9, 3, 8, 8>}, {pipeline_mode = #tpu.pipeline_mode<synchronous>, transform_indices = @transform_6, window_bounds = array<i64: 9, 3, 8>}, {pipeline_mode = #tpu.pipeline_mode<synchronous>, transform_indices = @transform_7, window_bounds = array<i64: 3, 4, 8, 32>}, {pipeline_mode = #tpu.pipeline_mode<synchronous>, transform_indices = @transform_8, window_bounds = array<i64: 3, 3, 32>}, {pipeline_mode = #tpu.pipeline_mode<synchronous>, transform_indices = @transform_9, window_bounds = array<i64: 3, 32, 16>}, {pipeline_mode = #tpu.pipeline_mode<synchronous>, transform_indices = @transform_10, window_bounds = array<i64: 3, 16>}, {pipeline_mode = #tpu.pipeline_mode<synchronous>, transform_indices = @transform_11, window_bounds = array<i64: 3, 16, 32>}, {pipeline_mode = #tpu.pipeline_mode<synchronous>, transform_indices = @transform_12, window_bounds = array<i64: 3, 32>}, {pipeline_mode = #tpu.pipeline_mode<synchronous>, transform_indices = @transform_13, window_bounds = array<i64: 3, 32, 96>}, {pipeline_mode = #tpu.pipeline_mode<synchronous>, transform_indices = @transform_14, window_bounds = array<i64: 3, 96>}, {pipeline_mode = #tpu.pipeline_mode<synchronous>, transform_indices = @transform_15, window_bounds = array<i64: 3, 96, 16>}, {pipeline_mode = #tpu.pipeline_mode<synchronous>, transform_indices = @transform_16, window_bounds = array<i64: 3, 16>}, {pipeline_mode = #tpu.pipeline_mode<synchronous>, transform_indices = @transform_17, window_bounds = array<i64: 16, 96>}, {pipeline_mode = #tpu.pipeline_mode<synchronous>, transform_indices = @transform_18, window_bounds = array<i64: 1, 96>}, {pipeline_mode = #tpu.pipeline_mode<synchronous>, transform_indices = @transform_19, window_bounds = array<i64: 2, 96, 32>}, {pipeline_mode = #tpu.pipeline_mode<synchronous>, transform_indices = @transform_20, window_bounds = array<i64: 1, 32>}, {transform_indices = @transform_21, window_bounds = array<i64: 1, 1, 32>}]} {
    %c0 = arith.constant 0 : index
    %c0_0 = arith.constant 0 : index
    %c0_1 = arith.constant 0 : index
    %0 = vector.load %arg1[%c0, %c0_0, %c0_1] : memref<1x16x16xf32, #tpu.memory_space<vmem>>, vector<1x16x16xf32>
    %1 = vector.shape_cast %0 : vector<1x16x16xf32> to vector<16x16xf32>
    %c0_2 = arith.constant 0 : index
    %c0_3 = arith.constant 0 : index
    %c0_4 = arith.constant 0 : index
    %2 = vector.load %arg2[%c0_2, %c0_3, %c0_4] : memref<5x16x32xf32, #tpu.memory_space<vmem>>, vector<1x16x32xf32>
    %3 = vector.shape_cast %2 : vector<1x16x32xf32> to vector<16x32xf32>
    %c1 = arith.constant 1 : index
    %c0_5 = arith.constant 0 : index
    %c0_6 = arith.constant 0 : index
    %4 = vector.load %arg2[%c1, %c0_5, %c0_6] : memref<5x16x32xf32, #tpu.memory_space<vmem>>, vector<1x16x32xf32>
    %5 = vector.shape_cast %4 : vector<1x16x32xf32> to vector<16x32xf32>
    %c2 = arith.constant 2 : index
    %c0_7 = arith.constant 0 : index
    %c0_8 = arith.constant 0 : index
    %6 = vector.load %arg2[%c2, %c0_7, %c0_8] : memref<5x16x32xf32, #tpu.memory_space<vmem>>, vector<1x16x32xf32>
    %7 = vector.shape_cast %6 : vector<1x16x32xf32> to vector<16x32xf32>
    %c3 = arith.constant 3 : index
    %c0_9 = arith.constant 0 : index
    %c0_10 = arith.constant 0 : index
    %8 = vector.load %arg2[%c3, %c0_9, %c0_10] : memref<5x16x32xf32, #tpu.memory_space<vmem>>, vector<1x16x32xf32>
    %9 = vector.shape_cast %8 : vector<1x16x32xf32> to vector<16x32xf32>
    %c4 = arith.constant 4 : index
    %c0_11 = arith.constant 0 : index
    %c0_12 = arith.constant 0 : index
    %10 = vector.load %arg2[%c4, %c0_11, %c0_12] : memref<5x16x32xf32, #tpu.memory_space<vmem>>, vector<1x16x32xf32>
    %11 = vector.shape_cast %10 : vector<1x16x32xf32> to vector<16x32xf32>
    %12 = vector.extract_strided_slice %1 {offsets = [2, 0], sizes = [1, 16], strides = [1, 1]} : vector<16x16xf32> to vector<1x16xf32>
    %13 = vector.extract_strided_slice %1 {offsets = [1, 0], sizes = [1, 16], strides = [1, 1]} : vector<16x16xf32> to vector<1x16xf32>
    %14 = vector.extract_strided_slice %1 {offsets = [14, 0], sizes = [1, 16], strides = [1, 1]} : vector<16x16xf32> to vector<1x16xf32>
    %15 = vector.extract_strided_slice %1 {offsets = [13, 0], sizes = [1, 16], strides = [1, 1]} : vector<16x16xf32> to vector<1x16xf32>
    %16 = tpu.concatenate %12, %13, %1, %14, %15 in 0 : vector<1x16xf32>, vector<1x16xf32>, vector<16x16xf32>, vector<1x16xf32>, vector<1x16xf32> -> vector<20x16xf32>
    %17 = vector.extract_strided_slice %16 {offsets = [0, 0], sizes = [16, 16], strides = [1, 1]} : vector<20x16xf32> to vector<16x16xf32>
    %cst = arith.constant dense<0.000000e+00> : vector<16x32xf32>
    %18 = tpu.matmul %17, %3, %cst {dimension_numbers = #tpu.dot_dimension_numbers<[1], [0], [0], [1], [0, 0, 1, 1], [], []>} : vector<16x16xf32>, vector<16x32xf32>, vector<16x32xf32> -> vector<16x32xf32>
    %19 = vector.extract_strided_slice %16 {offsets = [1, 0], sizes = [16, 16], strides = [1, 1]} : vector<20x16xf32> to vector<16x16xf32>
    %cst_13 = arith.constant dense<0.000000e+00> : vector<16x32xf32>
    %20 = tpu.matmul %19, %5, %cst_13 {dimension_numbers = #tpu.dot_dimension_numbers<[1], [0], [0], [1], [0, 0, 1, 1], [], []>} : vector<16x16xf32>, vector<16x32xf32>, vector<16x32xf32> -> vector<16x32xf32>
    %21 = arith.addf %18, %20 : vector<16x32xf32>
    %22 = vector.extract_strided_slice %16 {offsets = [2, 0], sizes = [16, 16], strides = [1, 1]} : vector<20x16xf32> to vector<16x16xf32>
    %cst_14 = arith.constant dense<0.000000e+00> : vector<16x32xf32>
    %23 = tpu.matmul %22, %7, %cst_14 {dimension_numbers = #tpu.dot_dimension_numbers<[1], [0], [0], [1], [0, 0, 1, 1], [], []>} : vector<16x16xf32>, vector<16x32xf32>, vector<16x32xf32> -> vector<16x32xf32>
    %24 = arith.addf %21, %23 : vector<16x32xf32>
    %25 = vector.extract_strided_slice %16 {offsets = [3, 0], sizes = [16, 16], strides = [1, 1]} : vector<20x16xf32> to vector<16x16xf32>
    %cst_15 = arith.constant dense<0.000000e+00> : vector<16x32xf32>
    %26 = tpu.matmul %25, %9, %cst_15 {dimension_numbers = #tpu.dot_dimension_numbers<[1], [0], [0], [1], [0, 0, 1, 1], [], []>} : vector<16x16xf32>, vector<16x32xf32>, vector<16x32xf32> -> vector<16x32xf32>
    %27 = arith.addf %24, %26 : vector<16x32xf32>
    %28 = vector.extract_strided_slice %16 {offsets = [4, 0], sizes = [16, 16], strides = [1, 1]} : vector<20x16xf32> to vector<16x16xf32>
    %cst_16 = arith.constant dense<0.000000e+00> : vector<16x32xf32>
    %29 = tpu.matmul %28, %11, %cst_16 {dimension_numbers = #tpu.dot_dimension_numbers<[1], [0], [0], [1], [0, 0, 1, 1], [], []>} : vector<16x16xf32>, vector<16x32xf32>, vector<16x32xf32> -> vector<16x32xf32>
    %30 = arith.addf %27, %29 : vector<16x32xf32>
    %c0_17 = arith.constant 0 : index
    %c0_18 = arith.constant 0 : index
    %31 = vector.load %arg3[%c0_17, %c0_18] : memref<3x32xf32, #tpu.memory_space<vmem>>, vector<1x32xf32>
    %32 = vector.broadcast %31 : vector<1x32xf32> to vector<16x32xf32>
    %33 = arith.addf %30, %32 : vector<16x32xf32>
    %cst_19 = arith.constant 0.000000e+00 : f32
    %34 = vector.broadcast %cst_19 : f32 to vector<16x32xf32>
    %35 = arith.maximumf %33, %34 : vector<16x32xf32>
    %c1_20 = arith.constant 1 : index
    %c0_21 = arith.constant 0 : index
    %36 = vector.load %arg3[%c1_20, %c0_21] : memref<3x32xf32, #tpu.memory_space<vmem>>, vector<1x32xf32>
    %37 = vector.broadcast %36 : vector<1x32xf32> to vector<16x32xf32>
    %38 = arith.mulf %35, %37 : vector<16x32xf32>
    %c2_22 = arith.constant 2 : index
    %c0_23 = arith.constant 0 : index
    %39 = vector.load %arg3[%c2_22, %c0_23] : memref<3x32xf32, #tpu.memory_space<vmem>>, vector<1x32xf32>
    %40 = vector.broadcast %39 : vector<1x32xf32> to vector<16x32xf32>
    %41 = arith.addf %38, %40 : vector<16x32xf32>
    %c0_24 = arith.constant 0 : index
    %c0_25 = arith.constant 0 : index
    %c0_26 = arith.constant 0 : index
    %c0_27 = arith.constant 0 : index
    %42 = vector.load %arg4[%c0_24, %c0_25, %c0_26, %c0_27] : memref<3x4x32x8xf32, #tpu.memory_space<vmem>>, vector<1x1x32x8xf32>
    %43 = vector.shape_cast %42 : vector<1x1x32x8xf32> to vector<32x8xf32>
    %cst_28 = arith.constant dense<0.000000e+00> : vector<16x8xf32>
    %44 = tpu.matmul %41, %43, %cst_28 {dimension_numbers = #tpu.dot_dimension_numbers<[1], [0], [0], [1], [0, 0, 1, 1], [], []>} : vector<16x32xf32>, vector<32x8xf32>, vector<16x8xf32> -> vector<16x8xf32>
    %c0_29 = arith.constant 0 : index
    %c0_30 = arith.constant 0 : index
    %c0_31 = arith.constant 0 : index
    %c0_32 = arith.constant 0 : index
    %45 = vector.load %arg5[%c0_29, %c0_30, %c0_31, %c0_32] : memref<3x3x4x8xf32, #tpu.memory_space<vmem>>, vector<1x1x1x8xf32>
    %46 = vector.shape_cast %45 : vector<1x1x1x8xf32> to vector<1x8xf32>
    %47 = vector.broadcast %46 : vector<1x8xf32> to vector<16x8xf32>
    %48 = arith.addf %44, %47 : vector<16x8xf32>
    %cst_33 = arith.constant 0.000000e+00 : f32
    %49 = vector.broadcast %cst_33 : f32 to vector<16x8xf32>
    %50 = arith.maximumf %48, %49 : vector<16x8xf32>
    %c0_34 = arith.constant 0 : index
    %c1_35 = arith.constant 1 : index
    %c0_36 = arith.constant 0 : index
    %c0_37 = arith.constant 0 : index
    %51 = vector.load %arg5[%c0_34, %c1_35, %c0_36, %c0_37] : memref<3x3x4x8xf32, #tpu.memory_space<vmem>>, vector<1x1x1x8xf32>
    %52 = vector.shape_cast %51 : vector<1x1x1x8xf32> to vector<1x8xf32>
    %53 = vector.broadcast %52 : vector<1x8xf32> to vector<16x8xf32>
    %54 = arith.mulf %50, %53 : vector<16x8xf32>
    %c0_38 = arith.constant 0 : index
    %c2_39 = arith.constant 2 : index
    %c0_40 = arith.constant 0 : index
    %c0_41 = arith.constant 0 : index
    %55 = vector.load %arg5[%c0_38, %c2_39, %c0_40, %c0_41] : memref<3x3x4x8xf32, #tpu.memory_space<vmem>>, vector<1x1x1x8xf32>
    %56 = vector.shape_cast %55 : vector<1x1x1x8xf32> to vector<1x8xf32>
    %57 = vector.broadcast %56 : vector<1x8xf32> to vector<16x8xf32>
    %58 = arith.addf %54, %57 : vector<16x8xf32>
    %c0_42 = arith.constant 0 : index
    %c1_43 = arith.constant 1 : index
    %c0_44 = arith.constant 0 : index
    %c0_45 = arith.constant 0 : index
    %59 = vector.load %arg4[%c0_42, %c1_43, %c0_44, %c0_45] : memref<3x4x32x8xf32, #tpu.memory_space<vmem>>, vector<1x1x32x8xf32>
    %60 = vector.shape_cast %59 : vector<1x1x32x8xf32> to vector<32x8xf32>
    %cst_46 = arith.constant dense<0.000000e+00> : vector<16x8xf32>
    %61 = tpu.matmul %41, %60, %cst_46 {dimension_numbers = #tpu.dot_dimension_numbers<[1], [0], [0], [1], [0, 0, 1, 1], [], []>} : vector<16x32xf32>, vector<32x8xf32>, vector<16x8xf32> -> vector<16x8xf32>
    %c0_47 = arith.constant 0 : index
    %c0_48 = arith.constant 0 : index
    %c1_49 = arith.constant 1 : index
    %c0_50 = arith.constant 0 : index
    %62 = vector.load %arg5[%c0_47, %c0_48, %c1_49, %c0_50] : memref<3x3x4x8xf32, #tpu.memory_space<vmem>>, vector<1x1x1x8xf32>
    %63 = vector.shape_cast %62 : vector<1x1x1x8xf32> to vector<1x8xf32>
    %64 = vector.broadcast %63 : vector<1x8xf32> to vector<16x8xf32>
    %65 = arith.addf %61, %64 : vector<16x8xf32>
    %cst_51 = arith.constant 0.000000e+00 : f32
    %66 = vector.broadcast %cst_51 : f32 to vector<16x8xf32>
    %67 = arith.maximumf %65, %66 : vector<16x8xf32>
    %c0_52 = arith.constant 0 : index
    %c1_53 = arith.constant 1 : index
    %c1_54 = arith.constant 1 : index
    %c0_55 = arith.constant 0 : index
    %68 = vector.load %arg5[%c0_52, %c1_53, %c1_54, %c0_55] : memref<3x3x4x8xf32, #tpu.memory_space<vmem>>, vector<1x1x1x8xf32>
    %69 = vector.shape_cast %68 : vector<1x1x1x8xf32> to vector<1x8xf32>
    %70 = vector.broadcast %69 : vector<1x8xf32> to vector<16x8xf32>
    %71 = arith.mulf %67, %70 : vector<16x8xf32>
    %c0_56 = arith.constant 0 : index
    %c2_57 = arith.constant 2 : index
    %c1_58 = arith.constant 1 : index
    %c0_59 = arith.constant 0 : index
    %72 = vector.load %arg5[%c0_56, %c2_57, %c1_58, %c0_59] : memref<3x3x4x8xf32, #tpu.memory_space<vmem>>, vector<1x1x1x8xf32>
    %73 = vector.shape_cast %72 : vector<1x1x1x8xf32> to vector<1x8xf32>
    %74 = vector.broadcast %73 : vector<1x8xf32> to vector<16x8xf32>
    %75 = arith.addf %71, %74 : vector<16x8xf32>
    %c0_60 = arith.constant 0 : index
    %c2_61 = arith.constant 2 : index
    %c0_62 = arith.constant 0 : index
    %c0_63 = arith.constant 0 : index
    %76 = vector.load %arg4[%c0_60, %c2_61, %c0_62, %c0_63] : memref<3x4x32x8xf32, #tpu.memory_space<vmem>>, vector<1x1x32x8xf32>
    %77 = vector.shape_cast %76 : vector<1x1x32x8xf32> to vector<32x8xf32>
    %cst_64 = arith.constant dense<0.000000e+00> : vector<16x8xf32>
    %78 = tpu.matmul %41, %77, %cst_64 {dimension_numbers = #tpu.dot_dimension_numbers<[1], [0], [0], [1], [0, 0, 1, 1], [], []>} : vector<16x32xf32>, vector<32x8xf32>, vector<16x8xf32> -> vector<16x8xf32>
    %c0_65 = arith.constant 0 : index
    %c0_66 = arith.constant 0 : index
    %c2_67 = arith.constant 2 : index
    %c0_68 = arith.constant 0 : index
    %79 = vector.load %arg5[%c0_65, %c0_66, %c2_67, %c0_68] : memref<3x3x4x8xf32, #tpu.memory_space<vmem>>, vector<1x1x1x8xf32>
    %80 = vector.shape_cast %79 : vector<1x1x1x8xf32> to vector<1x8xf32>
    %81 = vector.broadcast %80 : vector<1x8xf32> to vector<16x8xf32>
    %82 = arith.addf %78, %81 : vector<16x8xf32>
    %cst_69 = arith.constant 0.000000e+00 : f32
    %83 = vector.broadcast %cst_69 : f32 to vector<16x8xf32>
    %84 = arith.maximumf %82, %83 : vector<16x8xf32>
    %c0_70 = arith.constant 0 : index
    %c1_71 = arith.constant 1 : index
    %c2_72 = arith.constant 2 : index
    %c0_73 = arith.constant 0 : index
    %85 = vector.load %arg5[%c0_70, %c1_71, %c2_72, %c0_73] : memref<3x3x4x8xf32, #tpu.memory_space<vmem>>, vector<1x1x1x8xf32>
    %86 = vector.shape_cast %85 : vector<1x1x1x8xf32> to vector<1x8xf32>
    %87 = vector.broadcast %86 : vector<1x8xf32> to vector<16x8xf32>
    %88 = arith.mulf %84, %87 : vector<16x8xf32>
    %c0_74 = arith.constant 0 : index
    %c2_75 = arith.constant 2 : index
    %c2_76 = arith.constant 2 : index
    %c0_77 = arith.constant 0 : index
    %89 = vector.load %arg5[%c0_74, %c2_75, %c2_76, %c0_77] : memref<3x3x4x8xf32, #tpu.memory_space<vmem>>, vector<1x1x1x8xf32>
    %90 = vector.shape_cast %89 : vector<1x1x1x8xf32> to vector<1x8xf32>
    %91 = vector.broadcast %90 : vector<1x8xf32> to vector<16x8xf32>
    %92 = arith.addf %88, %91 : vector<16x8xf32>
    %c0_78 = arith.constant 0 : index
    %c3_79 = arith.constant 3 : index
    %c0_80 = arith.constant 0 : index
    %c0_81 = arith.constant 0 : index
    %93 = vector.load %arg4[%c0_78, %c3_79, %c0_80, %c0_81] : memref<3x4x32x8xf32, #tpu.memory_space<vmem>>, vector<1x1x32x8xf32>
    %94 = vector.shape_cast %93 : vector<1x1x32x8xf32> to vector<32x8xf32>
    %cst_82 = arith.constant dense<0.000000e+00> : vector<16x8xf32>
    %95 = tpu.matmul %41, %94, %cst_82 {dimension_numbers = #tpu.dot_dimension_numbers<[1], [0], [0], [1], [0, 0, 1, 1], [], []>} : vector<16x32xf32>, vector<32x8xf32>, vector<16x8xf32> -> vector<16x8xf32>
    %c0_83 = arith.constant 0 : index
    %c0_84 = arith.constant 0 : index
    %c3_85 = arith.constant 3 : index
    %c0_86 = arith.constant 0 : index
    %96 = vector.load %arg5[%c0_83, %c0_84, %c3_85, %c0_86] : memref<3x3x4x8xf32, #tpu.memory_space<vmem>>, vector<1x1x1x8xf32>
    %97 = vector.shape_cast %96 : vector<1x1x1x8xf32> to vector<1x8xf32>
    %98 = vector.broadcast %97 : vector<1x8xf32> to vector<16x8xf32>
    %99 = arith.addf %95, %98 : vector<16x8xf32>
    %cst_87 = arith.constant 0.000000e+00 : f32
    %100 = vector.broadcast %cst_87 : f32 to vector<16x8xf32>
    %101 = arith.maximumf %99, %100 : vector<16x8xf32>
    %c0_88 = arith.constant 0 : index
    %c1_89 = arith.constant 1 : index
    %c3_90 = arith.constant 3 : index
    %c0_91 = arith.constant 0 : index
    %102 = vector.load %arg5[%c0_88, %c1_89, %c3_90, %c0_91] : memref<3x3x4x8xf32, #tpu.memory_space<vmem>>, vector<1x1x1x8xf32>
    %103 = vector.shape_cast %102 : vector<1x1x1x8xf32> to vector<1x8xf32>
    %104 = vector.broadcast %103 : vector<1x8xf32> to vector<16x8xf32>
    %105 = arith.mulf %101, %104 : vector<16x8xf32>
    %c0_92 = arith.constant 0 : index
    %c2_93 = arith.constant 2 : index
    %c3_94 = arith.constant 3 : index
    %c0_95 = arith.constant 0 : index
    %106 = vector.load %arg5[%c0_92, %c2_93, %c3_94, %c0_95] : memref<3x3x4x8xf32, #tpu.memory_space<vmem>>, vector<1x1x1x8xf32>
    %107 = vector.shape_cast %106 : vector<1x1x1x8xf32> to vector<1x8xf32>
    %108 = vector.broadcast %107 : vector<1x8xf32> to vector<16x8xf32>
    %109 = arith.addf %105, %108 : vector<16x8xf32>
    %c0_96 = arith.constant 0 : index
    %c0_97 = arith.constant 0 : index
    %c0_98 = arith.constant 0 : index
    %c0_99 = arith.constant 0 : index
    %110 = vector.load %arg6[%c0_96, %c0_97, %c0_98, %c0_99] : memref<9x3x8x8xf32, #tpu.memory_space<vmem>>, vector<1x1x8x8xf32>
    %111 = vector.shape_cast %110 : vector<1x1x8x8xf32> to vector<8x8xf32>
    %c0_100 = arith.constant 0 : index
    %c1_101 = arith.constant 1 : index
    %c0_102 = arith.constant 0 : index
    %c0_103 = arith.constant 0 : index
    %112 = vector.load %arg6[%c0_100, %c1_101, %c0_102, %c0_103] : memref<9x3x8x8xf32, #tpu.memory_space<vmem>>, vector<1x1x8x8xf32>
    %113 = vector.shape_cast %112 : vector<1x1x8x8xf32> to vector<8x8xf32>
    %c0_104 = arith.constant 0 : index
    %c2_105 = arith.constant 2 : index
    %c0_106 = arith.constant 0 : index
    %c0_107 = arith.constant 0 : index
    %114 = vector.load %arg6[%c0_104, %c2_105, %c0_106, %c0_107] : memref<9x3x8x8xf32, #tpu.memory_space<vmem>>, vector<1x1x8x8xf32>
    %115 = vector.shape_cast %114 : vector<1x1x8x8xf32> to vector<8x8xf32>
    %116 = vector.extract_strided_slice %75 {offsets = [2, 0], sizes = [1, 8], strides = [1, 1]} : vector<16x8xf32> to vector<1x8xf32>
    %117 = vector.extract_strided_slice %75 {offsets = [1, 0], sizes = [1, 8], strides = [1, 1]} : vector<16x8xf32> to vector<1x8xf32>
    %118 = vector.extract_strided_slice %75 {offsets = [14, 0], sizes = [1, 8], strides = [1, 1]} : vector<16x8xf32> to vector<1x8xf32>
    %119 = vector.extract_strided_slice %75 {offsets = [13, 0], sizes = [1, 8], strides = [1, 1]} : vector<16x8xf32> to vector<1x8xf32>
    %120 = tpu.concatenate %116, %117, %75, %118, %119 in 0 : vector<1x8xf32>, vector<1x8xf32>, vector<16x8xf32>, vector<1x8xf32>, vector<1x8xf32> -> vector<20x8xf32>
    %121 = vector.extract_strided_slice %120 {offsets = [0, 0], sizes = [16, 8], strides = [1, 1]} : vector<20x8xf32> to vector<16x8xf32>
    %cst_108 = arith.constant dense<0.000000e+00> : vector<16x8xf32>
    %122 = tpu.matmul %121, %111, %cst_108 {dimension_numbers = #tpu.dot_dimension_numbers<[1], [0], [0], [1], [0, 0, 1, 1], [], []>} : vector<16x8xf32>, vector<8x8xf32>, vector<16x8xf32> -> vector<16x8xf32>
    %123 = vector.extract_strided_slice %120 {offsets = [2, 0], sizes = [16, 8], strides = [1, 1]} : vector<20x8xf32> to vector<16x8xf32>
    %cst_109 = arith.constant dense<0.000000e+00> : vector<16x8xf32>
    %124 = tpu.matmul %123, %113, %cst_109 {dimension_numbers = #tpu.dot_dimension_numbers<[1], [0], [0], [1], [0, 0, 1, 1], [], []>} : vector<16x8xf32>, vector<8x8xf32>, vector<16x8xf32> -> vector<16x8xf32>
    %125 = arith.addf %122, %124 : vector<16x8xf32>
    %126 = vector.extract_strided_slice %120 {offsets = [4, 0], sizes = [16, 8], strides = [1, 1]} : vector<20x8xf32> to vector<16x8xf32>
    %cst_110 = arith.constant dense<0.000000e+00> : vector<16x8xf32>
    %127 = tpu.matmul %126, %115, %cst_110 {dimension_numbers = #tpu.dot_dimension_numbers<[1], [0], [0], [1], [0, 0, 1, 1], [], []>} : vector<16x8xf32>, vector<8x8xf32>, vector<16x8xf32> -> vector<16x8xf32>
    %128 = arith.addf %125, %127 : vector<16x8xf32>
    %c0_111 = arith.constant 0 : index
    %c0_112 = arith.constant 0 : index
    %c0_113 = arith.constant 0 : index
    %129 = vector.load %arg7[%c0_111, %c0_112, %c0_113] : memref<9x3x8xf32, #tpu.memory_space<vmem>>, vector<1x1x8xf32>
    %130 = vector.shape_cast %129 : vector<1x1x8xf32> to vector<1x8xf32>
    %131 = vector.broadcast %130 : vector<1x8xf32> to vector<16x8xf32>
    %132 = arith.addf %128, %131 : vector<16x8xf32>
    %cst_114 = arith.constant 0.000000e+00 : f32
    %133 = vector.broadcast %cst_114 : f32 to vector<16x8xf32>
    %134 = arith.maximumf %132, %133 : vector<16x8xf32>
    %c0_115 = arith.constant 0 : index
    %c1_116 = arith.constant 1 : index
    %c0_117 = arith.constant 0 : index
    %135 = vector.load %arg7[%c0_115, %c1_116, %c0_117] : memref<9x3x8xf32, #tpu.memory_space<vmem>>, vector<1x1x8xf32>
    %136 = vector.shape_cast %135 : vector<1x1x8xf32> to vector<1x8xf32>
    %137 = vector.broadcast %136 : vector<1x8xf32> to vector<16x8xf32>
    %138 = arith.mulf %134, %137 : vector<16x8xf32>
    %c0_118 = arith.constant 0 : index
    %c2_119 = arith.constant 2 : index
    %c0_120 = arith.constant 0 : index
    %139 = vector.load %arg7[%c0_118, %c2_119, %c0_120] : memref<9x3x8xf32, #tpu.memory_space<vmem>>, vector<1x1x8xf32>
    %140 = vector.shape_cast %139 : vector<1x1x8xf32> to vector<1x8xf32>
    %141 = vector.broadcast %140 : vector<1x8xf32> to vector<16x8xf32>
    %142 = arith.addf %138, %141 : vector<16x8xf32>
    %143 = arith.addf %92, %142 : vector<16x8xf32>
    %c1_121 = arith.constant 1 : index
    %c0_122 = arith.constant 0 : index
    %c0_123 = arith.constant 0 : index
    %c0_124 = arith.constant 0 : index
    %144 = vector.load %arg6[%c1_121, %c0_122, %c0_123, %c0_124] : memref<9x3x8x8xf32, #tpu.memory_space<vmem>>, vector<1x1x8x8xf32>
    %145 = vector.shape_cast %144 : vector<1x1x8x8xf32> to vector<8x8xf32>
    %c1_125 = arith.constant 1 : index
    %c1_126 = arith.constant 1 : index
    %c0_127 = arith.constant 0 : index
    %c0_128 = arith.constant 0 : index
    %146 = vector.load %arg6[%c1_125, %c1_126, %c0_127, %c0_128] : memref<9x3x8x8xf32, #tpu.memory_space<vmem>>, vector<1x1x8x8xf32>
    %147 = vector.shape_cast %146 : vector<1x1x8x8xf32> to vector<8x8xf32>
    %c1_129 = arith.constant 1 : index
    %c2_130 = arith.constant 2 : index
    %c0_131 = arith.constant 0 : index
    %c0_132 = arith.constant 0 : index
    %148 = vector.load %arg6[%c1_129, %c2_130, %c0_131, %c0_132] : memref<9x3x8x8xf32, #tpu.memory_space<vmem>>, vector<1x1x8x8xf32>
    %149 = vector.shape_cast %148 : vector<1x1x8x8xf32> to vector<8x8xf32>
    %150 = vector.extract_strided_slice %143 {offsets = [2, 0], sizes = [1, 8], strides = [1, 1]} : vector<16x8xf32> to vector<1x8xf32>
    %151 = vector.extract_strided_slice %143 {offsets = [1, 0], sizes = [1, 8], strides = [1, 1]} : vector<16x8xf32> to vector<1x8xf32>
    %152 = vector.extract_strided_slice %143 {offsets = [14, 0], sizes = [1, 8], strides = [1, 1]} : vector<16x8xf32> to vector<1x8xf32>
    %153 = vector.extract_strided_slice %143 {offsets = [13, 0], sizes = [1, 8], strides = [1, 1]} : vector<16x8xf32> to vector<1x8xf32>
    %154 = tpu.concatenate %150, %151, %143, %152, %153 in 0 : vector<1x8xf32>, vector<1x8xf32>, vector<16x8xf32>, vector<1x8xf32>, vector<1x8xf32> -> vector<20x8xf32>
    %155 = vector.extract_strided_slice %154 {offsets = [0, 0], sizes = [16, 8], strides = [1, 1]} : vector<20x8xf32> to vector<16x8xf32>
    %cst_133 = arith.constant dense<0.000000e+00> : vector<16x8xf32>
    %156 = tpu.matmul %155, %145, %cst_133 {dimension_numbers = #tpu.dot_dimension_numbers<[1], [0], [0], [1], [0, 0, 1, 1], [], []>} : vector<16x8xf32>, vector<8x8xf32>, vector<16x8xf32> -> vector<16x8xf32>
    %157 = vector.extract_strided_slice %154 {offsets = [2, 0], sizes = [16, 8], strides = [1, 1]} : vector<20x8xf32> to vector<16x8xf32>
    %cst_134 = arith.constant dense<0.000000e+00> : vector<16x8xf32>
    %158 = tpu.matmul %157, %147, %cst_134 {dimension_numbers = #tpu.dot_dimension_numbers<[1], [0], [0], [1], [0, 0, 1, 1], [], []>} : vector<16x8xf32>, vector<8x8xf32>, vector<16x8xf32> -> vector<16x8xf32>
    %159 = arith.addf %156, %158 : vector<16x8xf32>
    %160 = vector.extract_strided_slice %154 {offsets = [4, 0], sizes = [16, 8], strides = [1, 1]} : vector<20x8xf32> to vector<16x8xf32>
    %cst_135 = arith.constant dense<0.000000e+00> : vector<16x8xf32>
    %161 = tpu.matmul %160, %149, %cst_135 {dimension_numbers = #tpu.dot_dimension_numbers<[1], [0], [0], [1], [0, 0, 1, 1], [], []>} : vector<16x8xf32>, vector<8x8xf32>, vector<16x8xf32> -> vector<16x8xf32>
    %162 = arith.addf %159, %161 : vector<16x8xf32>
    %c1_136 = arith.constant 1 : index
    %c0_137 = arith.constant 0 : index
    %c0_138 = arith.constant 0 : index
    %163 = vector.load %arg7[%c1_136, %c0_137, %c0_138] : memref<9x3x8xf32, #tpu.memory_space<vmem>>, vector<1x1x8xf32>
    %164 = vector.shape_cast %163 : vector<1x1x8xf32> to vector<1x8xf32>
    %165 = vector.broadcast %164 : vector<1x8xf32> to vector<16x8xf32>
    %166 = arith.addf %162, %165 : vector<16x8xf32>
    %cst_139 = arith.constant 0.000000e+00 : f32
    %167 = vector.broadcast %cst_139 : f32 to vector<16x8xf32>
    %168 = arith.maximumf %166, %167 : vector<16x8xf32>
    %c1_140 = arith.constant 1 : index
    %c1_141 = arith.constant 1 : index
    %c0_142 = arith.constant 0 : index
    %169 = vector.load %arg7[%c1_140, %c1_141, %c0_142] : memref<9x3x8xf32, #tpu.memory_space<vmem>>, vector<1x1x8xf32>
    %170 = vector.shape_cast %169 : vector<1x1x8xf32> to vector<1x8xf32>
    %171 = vector.broadcast %170 : vector<1x8xf32> to vector<16x8xf32>
    %172 = arith.mulf %168, %171 : vector<16x8xf32>
    %c1_143 = arith.constant 1 : index
    %c2_144 = arith.constant 2 : index
    %c0_145 = arith.constant 0 : index
    %173 = vector.load %arg7[%c1_143, %c2_144, %c0_145] : memref<9x3x8xf32, #tpu.memory_space<vmem>>, vector<1x1x8xf32>
    %174 = vector.shape_cast %173 : vector<1x1x8xf32> to vector<1x8xf32>
    %175 = vector.broadcast %174 : vector<1x8xf32> to vector<16x8xf32>
    %176 = arith.addf %172, %175 : vector<16x8xf32>
    %177 = arith.addf %109, %176 : vector<16x8xf32>
    %c2_146 = arith.constant 2 : index
    %c0_147 = arith.constant 0 : index
    %c0_148 = arith.constant 0 : index
    %c0_149 = arith.constant 0 : index
    %178 = vector.load %arg6[%c2_146, %c0_147, %c0_148, %c0_149] : memref<9x3x8x8xf32, #tpu.memory_space<vmem>>, vector<1x1x8x8xf32>
    %179 = vector.shape_cast %178 : vector<1x1x8x8xf32> to vector<8x8xf32>
    %c2_150 = arith.constant 2 : index
    %c1_151 = arith.constant 1 : index
    %c0_152 = arith.constant 0 : index
    %c0_153 = arith.constant 0 : index
    %180 = vector.load %arg6[%c2_150, %c1_151, %c0_152, %c0_153] : memref<9x3x8x8xf32, #tpu.memory_space<vmem>>, vector<1x1x8x8xf32>
    %181 = vector.shape_cast %180 : vector<1x1x8x8xf32> to vector<8x8xf32>
    %c2_154 = arith.constant 2 : index
    %c2_155 = arith.constant 2 : index
    %c0_156 = arith.constant 0 : index
    %c0_157 = arith.constant 0 : index
    %182 = vector.load %arg6[%c2_154, %c2_155, %c0_156, %c0_157] : memref<9x3x8x8xf32, #tpu.memory_space<vmem>>, vector<1x1x8x8xf32>
    %183 = vector.shape_cast %182 : vector<1x1x8x8xf32> to vector<8x8xf32>
    %184 = vector.extract_strided_slice %177 {offsets = [2, 0], sizes = [1, 8], strides = [1, 1]} : vector<16x8xf32> to vector<1x8xf32>
    %185 = vector.extract_strided_slice %177 {offsets = [1, 0], sizes = [1, 8], strides = [1, 1]} : vector<16x8xf32> to vector<1x8xf32>
    %186 = vector.extract_strided_slice %177 {offsets = [14, 0], sizes = [1, 8], strides = [1, 1]} : vector<16x8xf32> to vector<1x8xf32>
    %187 = vector.extract_strided_slice %177 {offsets = [13, 0], sizes = [1, 8], strides = [1, 1]} : vector<16x8xf32> to vector<1x8xf32>
    %188 = tpu.concatenate %184, %185, %177, %186, %187 in 0 : vector<1x8xf32>, vector<1x8xf32>, vector<16x8xf32>, vector<1x8xf32>, vector<1x8xf32> -> vector<20x8xf32>
    %189 = vector.extract_strided_slice %188 {offsets = [0, 0], sizes = [16, 8], strides = [1, 1]} : vector<20x8xf32> to vector<16x8xf32>
    %cst_158 = arith.constant dense<0.000000e+00> : vector<16x8xf32>
    %190 = tpu.matmul %189, %179, %cst_158 {dimension_numbers = #tpu.dot_dimension_numbers<[1], [0], [0], [1], [0, 0, 1, 1], [], []>} : vector<16x8xf32>, vector<8x8xf32>, vector<16x8xf32> -> vector<16x8xf32>
    %191 = vector.extract_strided_slice %188 {offsets = [2, 0], sizes = [16, 8], strides = [1, 1]} : vector<20x8xf32> to vector<16x8xf32>
    %cst_159 = arith.constant dense<0.000000e+00> : vector<16x8xf32>
    %192 = tpu.matmul %191, %181, %cst_159 {dimension_numbers = #tpu.dot_dimension_numbers<[1], [0], [0], [1], [0, 0, 1, 1], [], []>} : vector<16x8xf32>, vector<8x8xf32>, vector<16x8xf32> -> vector<16x8xf32>
    %193 = arith.addf %190, %192 : vector<16x8xf32>
    %194 = vector.extract_strided_slice %188 {offsets = [4, 0], sizes = [16, 8], strides = [1, 1]} : vector<20x8xf32> to vector<16x8xf32>
    %cst_160 = arith.constant dense<0.000000e+00> : vector<16x8xf32>
    %195 = tpu.matmul %194, %183, %cst_160 {dimension_numbers = #tpu.dot_dimension_numbers<[1], [0], [0], [1], [0, 0, 1, 1], [], []>} : vector<16x8xf32>, vector<8x8xf32>, vector<16x8xf32> -> vector<16x8xf32>
    %196 = arith.addf %193, %195 : vector<16x8xf32>
    %c2_161 = arith.constant 2 : index
    %c0_162 = arith.constant 0 : index
    %c0_163 = arith.constant 0 : index
    %197 = vector.load %arg7[%c2_161, %c0_162, %c0_163] : memref<9x3x8xf32, #tpu.memory_space<vmem>>, vector<1x1x8xf32>
    %198 = vector.shape_cast %197 : vector<1x1x8xf32> to vector<1x8xf32>
    %199 = vector.broadcast %198 : vector<1x8xf32> to vector<16x8xf32>
    %200 = arith.addf %196, %199 : vector<16x8xf32>
    %cst_164 = arith.constant 0.000000e+00 : f32
    %201 = vector.broadcast %cst_164 : f32 to vector<16x8xf32>
    %202 = arith.maximumf %200, %201 : vector<16x8xf32>
    %c2_165 = arith.constant 2 : index
    %c1_166 = arith.constant 1 : index
    %c0_167 = arith.constant 0 : index
    %203 = vector.load %arg7[%c2_165, %c1_166, %c0_167] : memref<9x3x8xf32, #tpu.memory_space<vmem>>, vector<1x1x8xf32>
    %204 = vector.shape_cast %203 : vector<1x1x8xf32> to vector<1x8xf32>
    %205 = vector.broadcast %204 : vector<1x8xf32> to vector<16x8xf32>
    %206 = arith.mulf %202, %205 : vector<16x8xf32>
    %c2_168 = arith.constant 2 : index
    %c2_169 = arith.constant 2 : index
    %c0_170 = arith.constant 0 : index
    %207 = vector.load %arg7[%c2_168, %c2_169, %c0_170] : memref<9x3x8xf32, #tpu.memory_space<vmem>>, vector<1x1x8xf32>
    %208 = vector.shape_cast %207 : vector<1x1x8xf32> to vector<1x8xf32>
    %209 = vector.broadcast %208 : vector<1x8xf32> to vector<16x8xf32>
    %210 = arith.addf %206, %209 : vector<16x8xf32>
    %c0_171 = arith.constant 0 : index
    %c0_172 = arith.constant 0 : index
    %c0_173 = arith.constant 0 : index
    %c0_174 = arith.constant 0 : index
    %211 = vector.load %arg8[%c0_171, %c0_172, %c0_173, %c0_174] : memref<3x4x8x32xf32, #tpu.memory_space<vmem>>, vector<1x1x8x32xf32>
    %212 = vector.shape_cast %211 : vector<1x1x8x32xf32> to vector<8x32xf32>
    %cst_175 = arith.constant dense<0.000000e+00> : vector<16x32xf32>
    %213 = tpu.matmul %58, %212, %cst_175 {dimension_numbers = #tpu.dot_dimension_numbers<[1], [0], [0], [1], [0, 0, 1, 1], [], []>} : vector<16x8xf32>, vector<8x32xf32>, vector<16x32xf32> -> vector<16x32xf32>
    %c0_176 = arith.constant 0 : index
    %c1_177 = arith.constant 1 : index
    %c0_178 = arith.constant 0 : index
    %c0_179 = arith.constant 0 : index
    %214 = vector.load %arg8[%c0_176, %c1_177, %c0_178, %c0_179] : memref<3x4x8x32xf32, #tpu.memory_space<vmem>>, vector<1x1x8x32xf32>
    %215 = vector.shape_cast %214 : vector<1x1x8x32xf32> to vector<8x32xf32>
    %cst_180 = arith.constant dense<0.000000e+00> : vector<16x32xf32>
    %216 = tpu.matmul %142, %215, %cst_180 {dimension_numbers = #tpu.dot_dimension_numbers<[1], [0], [0], [1], [0, 0, 1, 1], [], []>} : vector<16x8xf32>, vector<8x32xf32>, vector<16x32xf32> -> vector<16x32xf32>
    %217 = arith.addf %213, %216 : vector<16x32xf32>
    %c0_181 = arith.constant 0 : index
    %c2_182 = arith.constant 2 : index
    %c0_183 = arith.constant 0 : index
    %c0_184 = arith.constant 0 : index
    %218 = vector.load %arg8[%c0_181, %c2_182, %c0_183, %c0_184] : memref<3x4x8x32xf32, #tpu.memory_space<vmem>>, vector<1x1x8x32xf32>
    %219 = vector.shape_cast %218 : vector<1x1x8x32xf32> to vector<8x32xf32>
    %cst_185 = arith.constant dense<0.000000e+00> : vector<16x32xf32>
    %220 = tpu.matmul %176, %219, %cst_185 {dimension_numbers = #tpu.dot_dimension_numbers<[1], [0], [0], [1], [0, 0, 1, 1], [], []>} : vector<16x8xf32>, vector<8x32xf32>, vector<16x32xf32> -> vector<16x32xf32>
    %221 = arith.addf %217, %220 : vector<16x32xf32>
    %c0_186 = arith.constant 0 : index
    %c3_187 = arith.constant 3 : index
    %c0_188 = arith.constant 0 : index
    %c0_189 = arith.constant 0 : index
    %222 = vector.load %arg8[%c0_186, %c3_187, %c0_188, %c0_189] : memref<3x4x8x32xf32, #tpu.memory_space<vmem>>, vector<1x1x8x32xf32>
    %223 = vector.shape_cast %222 : vector<1x1x8x32xf32> to vector<8x32xf32>
    %cst_190 = arith.constant dense<0.000000e+00> : vector<16x32xf32>
    %224 = tpu.matmul %210, %223, %cst_190 {dimension_numbers = #tpu.dot_dimension_numbers<[1], [0], [0], [1], [0, 0, 1, 1], [], []>} : vector<16x8xf32>, vector<8x32xf32>, vector<16x32xf32> -> vector<16x32xf32>
    %225 = arith.addf %221, %224 : vector<16x32xf32>
    %c0_191 = arith.constant 0 : index
    %c0_192 = arith.constant 0 : index
    %c0_193 = arith.constant 0 : index
    %226 = vector.load %arg9[%c0_191, %c0_192, %c0_193] : memref<3x3x32xf32, #tpu.memory_space<vmem>>, vector<1x1x32xf32>
    %227 = vector.shape_cast %226 : vector<1x1x32xf32> to vector<1x32xf32>
    %228 = vector.broadcast %227 : vector<1x32xf32> to vector<16x32xf32>
    %229 = arith.addf %225, %228 : vector<16x32xf32>
    %cst_194 = arith.constant 0.000000e+00 : f32
    %230 = vector.broadcast %cst_194 : f32 to vector<16x32xf32>
    %231 = arith.maximumf %229, %230 : vector<16x32xf32>
    %c0_195 = arith.constant 0 : index
    %c1_196 = arith.constant 1 : index
    %c0_197 = arith.constant 0 : index
    %232 = vector.load %arg9[%c0_195, %c1_196, %c0_197] : memref<3x3x32xf32, #tpu.memory_space<vmem>>, vector<1x1x32xf32>
    %233 = vector.shape_cast %232 : vector<1x1x32xf32> to vector<1x32xf32>
    %234 = vector.broadcast %233 : vector<1x32xf32> to vector<16x32xf32>
    %235 = arith.mulf %231, %234 : vector<16x32xf32>
    %c0_198 = arith.constant 0 : index
    %c2_199 = arith.constant 2 : index
    %c0_200 = arith.constant 0 : index
    %236 = vector.load %arg9[%c0_198, %c2_199, %c0_200] : memref<3x3x32xf32, #tpu.memory_space<vmem>>, vector<1x1x32xf32>
    %237 = vector.shape_cast %236 : vector<1x1x32xf32> to vector<1x32xf32>
    %238 = vector.broadcast %237 : vector<1x32xf32> to vector<16x32xf32>
    %239 = arith.addf %235, %238 : vector<16x32xf32>
    %cst_201 = arith.constant dense<0.000000e+00> : vector<32xf32>
    %240 = vector.multi_reduction <add>, %239, %cst_201 [0] : vector<16x32xf32> to vector<32xf32>
    %241 = vector.shape_cast %240 : vector<32xf32> to vector<1x32xf32>
    %cst_202 = arith.constant 6.250000e-02 : f32
    %242 = vector.broadcast %cst_202 : f32 to vector<1x32xf32>
    %243 = arith.mulf %241, %242 : vector<1x32xf32>
    %c0_203 = arith.constant 0 : index
    %c0_204 = arith.constant 0 : index
    %c0_205 = arith.constant 0 : index
    %244 = vector.load %arg10[%c0_203, %c0_204, %c0_205] : memref<3x32x16xf32, #tpu.memory_space<vmem>>, vector<1x32x16xf32>
    %245 = vector.shape_cast %244 : vector<1x32x16xf32> to vector<32x16xf32>
    %cst_206 = arith.constant dense<0.000000e+00> : vector<1x16xf32>
    %246 = tpu.matmul %243, %245, %cst_206 {dimension_numbers = #tpu.dot_dimension_numbers<[1], [0], [0], [1], [0, 0, 1, 1], [], []>} : vector<1x32xf32>, vector<32x16xf32>, vector<1x16xf32> -> vector<1x16xf32>
    %c0_207 = arith.constant 0 : index
    %c0_208 = arith.constant 0 : index
    %247 = vector.load %arg11[%c0_207, %c0_208] : memref<3x16xf32, #tpu.memory_space<vmem>>, vector<1x16xf32>
    %248 = arith.addf %246, %247 : vector<1x16xf32>
    %cst_209 = arith.constant 0.000000e+00 : f32
    %249 = vector.broadcast %cst_209 : f32 to vector<1x16xf32>
    %250 = arith.maximumf %248, %249 : vector<1x16xf32>
    %c0_210 = arith.constant 0 : index
    %c0_211 = arith.constant 0 : index
    %c0_212 = arith.constant 0 : index
    %251 = vector.load %arg12[%c0_210, %c0_211, %c0_212] : memref<3x16x32xf32, #tpu.memory_space<vmem>>, vector<1x16x32xf32>
    %252 = vector.shape_cast %251 : vector<1x16x32xf32> to vector<16x32xf32>
    %cst_213 = arith.constant dense<0.000000e+00> : vector<1x32xf32>
    %253 = tpu.matmul %250, %252, %cst_213 {dimension_numbers = #tpu.dot_dimension_numbers<[1], [0], [0], [1], [0, 0, 1, 1], [], []>} : vector<1x16xf32>, vector<16x32xf32>, vector<1x32xf32> -> vector<1x32xf32>
    %c0_214 = arith.constant 0 : index
    %c0_215 = arith.constant 0 : index
    %254 = vector.load %arg13[%c0_214, %c0_215] : memref<3x32xf32, #tpu.memory_space<vmem>>, vector<1x32xf32>
    %255 = arith.addf %253, %254 : vector<1x32xf32>
    %256 = arith.negf %255 : vector<1x32xf32>
    %257 = math.exp %256 : vector<1x32xf32>
    %cst_216 = arith.constant 1.000000e+00 : f32
    %258 = vector.broadcast %cst_216 : f32 to vector<1x32xf32>
    %259 = arith.addf %258, %257 : vector<1x32xf32>
    %260 = arith.divf %258, %259 : vector<1x32xf32>
    %261 = vector.broadcast %260 : vector<1x32xf32> to vector<16x32xf32>
    %262 = arith.mulf %239, %261 : vector<16x32xf32>
    %263 = arith.addf %262, %41 : vector<16x32xf32>
    %c1_217 = arith.constant 1 : index
    %c0_218 = arith.constant 0 : index
    %c0_219 = arith.constant 0 : index
    %c0_220 = arith.constant 0 : index
    %264 = vector.load %arg4[%c1_217, %c0_218, %c0_219, %c0_220] : memref<3x4x32x8xf32, #tpu.memory_space<vmem>>, vector<1x1x32x8xf32>
    %265 = vector.shape_cast %264 : vector<1x1x32x8xf32> to vector<32x8xf32>
    %cst_221 = arith.constant dense<0.000000e+00> : vector<16x8xf32>
    %266 = tpu.matmul %263, %265, %cst_221 {dimension_numbers = #tpu.dot_dimension_numbers<[1], [0], [0], [1], [0, 0, 1, 1], [], []>} : vector<16x32xf32>, vector<32x8xf32>, vector<16x8xf32> -> vector<16x8xf32>
    %c1_222 = arith.constant 1 : index
    %c0_223 = arith.constant 0 : index
    %c0_224 = arith.constant 0 : index
    %c0_225 = arith.constant 0 : index
    %267 = vector.load %arg5[%c1_222, %c0_223, %c0_224, %c0_225] : memref<3x3x4x8xf32, #tpu.memory_space<vmem>>, vector<1x1x1x8xf32>
    %268 = vector.shape_cast %267 : vector<1x1x1x8xf32> to vector<1x8xf32>
    %269 = vector.broadcast %268 : vector<1x8xf32> to vector<16x8xf32>
    %270 = arith.addf %266, %269 : vector<16x8xf32>
    %cst_226 = arith.constant 0.000000e+00 : f32
    %271 = vector.broadcast %cst_226 : f32 to vector<16x8xf32>
    %272 = arith.maximumf %270, %271 : vector<16x8xf32>
    %c1_227 = arith.constant 1 : index
    %c1_228 = arith.constant 1 : index
    %c0_229 = arith.constant 0 : index
    %c0_230 = arith.constant 0 : index
    %273 = vector.load %arg5[%c1_227, %c1_228, %c0_229, %c0_230] : memref<3x3x4x8xf32, #tpu.memory_space<vmem>>, vector<1x1x1x8xf32>
    %274 = vector.shape_cast %273 : vector<1x1x1x8xf32> to vector<1x8xf32>
    %275 = vector.broadcast %274 : vector<1x8xf32> to vector<16x8xf32>
    %276 = arith.mulf %272, %275 : vector<16x8xf32>
    %c1_231 = arith.constant 1 : index
    %c2_232 = arith.constant 2 : index
    %c0_233 = arith.constant 0 : index
    %c0_234 = arith.constant 0 : index
    %277 = vector.load %arg5[%c1_231, %c2_232, %c0_233, %c0_234] : memref<3x3x4x8xf32, #tpu.memory_space<vmem>>, vector<1x1x1x8xf32>
    %278 = vector.shape_cast %277 : vector<1x1x1x8xf32> to vector<1x8xf32>
    %279 = vector.broadcast %278 : vector<1x8xf32> to vector<16x8xf32>
    %280 = arith.addf %276, %279 : vector<16x8xf32>
    %c1_235 = arith.constant 1 : index
    %c1_236 = arith.constant 1 : index
    %c0_237 = arith.constant 0 : index
    %c0_238 = arith.constant 0 : index
    %281 = vector.load %arg4[%c1_235, %c1_236, %c0_237, %c0_238] : memref<3x4x32x8xf32, #tpu.memory_space<vmem>>, vector<1x1x32x8xf32>
    %282 = vector.shape_cast %281 : vector<1x1x32x8xf32> to vector<32x8xf32>
    %cst_239 = arith.constant dense<0.000000e+00> : vector<16x8xf32>
    %283 = tpu.matmul %263, %282, %cst_239 {dimension_numbers = #tpu.dot_dimension_numbers<[1], [0], [0], [1], [0, 0, 1, 1], [], []>} : vector<16x32xf32>, vector<32x8xf32>, vector<16x8xf32> -> vector<16x8xf32>
    %c1_240 = arith.constant 1 : index
    %c0_241 = arith.constant 0 : index
    %c1_242 = arith.constant 1 : index
    %c0_243 = arith.constant 0 : index
    %284 = vector.load %arg5[%c1_240, %c0_241, %c1_242, %c0_243] : memref<3x3x4x8xf32, #tpu.memory_space<vmem>>, vector<1x1x1x8xf32>
    %285 = vector.shape_cast %284 : vector<1x1x1x8xf32> to vector<1x8xf32>
    %286 = vector.broadcast %285 : vector<1x8xf32> to vector<16x8xf32>
    %287 = arith.addf %283, %286 : vector<16x8xf32>
    %cst_244 = arith.constant 0.000000e+00 : f32
    %288 = vector.broadcast %cst_244 : f32 to vector<16x8xf32>
    %289 = arith.maximumf %287, %288 : vector<16x8xf32>
    %c1_245 = arith.constant 1 : index
    %c1_246 = arith.constant 1 : index
    %c1_247 = arith.constant 1 : index
    %c0_248 = arith.constant 0 : index
    %290 = vector.load %arg5[%c1_245, %c1_246, %c1_247, %c0_248] : memref<3x3x4x8xf32, #tpu.memory_space<vmem>>, vector<1x1x1x8xf32>
    %291 = vector.shape_cast %290 : vector<1x1x1x8xf32> to vector<1x8xf32>
    %292 = vector.broadcast %291 : vector<1x8xf32> to vector<16x8xf32>
    %293 = arith.mulf %289, %292 : vector<16x8xf32>
    %c1_249 = arith.constant 1 : index
    %c2_250 = arith.constant 2 : index
    %c1_251 = arith.constant 1 : index
    %c0_252 = arith.constant 0 : index
    %294 = vector.load %arg5[%c1_249, %c2_250, %c1_251, %c0_252] : memref<3x3x4x8xf32, #tpu.memory_space<vmem>>, vector<1x1x1x8xf32>
    %295 = vector.shape_cast %294 : vector<1x1x1x8xf32> to vector<1x8xf32>
    %296 = vector.broadcast %295 : vector<1x8xf32> to vector<16x8xf32>
    %297 = arith.addf %293, %296 : vector<16x8xf32>
    %c1_253 = arith.constant 1 : index
    %c2_254 = arith.constant 2 : index
    %c0_255 = arith.constant 0 : index
    %c0_256 = arith.constant 0 : index
    %298 = vector.load %arg4[%c1_253, %c2_254, %c0_255, %c0_256] : memref<3x4x32x8xf32, #tpu.memory_space<vmem>>, vector<1x1x32x8xf32>
    %299 = vector.shape_cast %298 : vector<1x1x32x8xf32> to vector<32x8xf32>
    %cst_257 = arith.constant dense<0.000000e+00> : vector<16x8xf32>
    %300 = tpu.matmul %263, %299, %cst_257 {dimension_numbers = #tpu.dot_dimension_numbers<[1], [0], [0], [1], [0, 0, 1, 1], [], []>} : vector<16x32xf32>, vector<32x8xf32>, vector<16x8xf32> -> vector<16x8xf32>
    %c1_258 = arith.constant 1 : index
    %c0_259 = arith.constant 0 : index
    %c2_260 = arith.constant 2 : index
    %c0_261 = arith.constant 0 : index
    %301 = vector.load %arg5[%c1_258, %c0_259, %c2_260, %c0_261] : memref<3x3x4x8xf32, #tpu.memory_space<vmem>>, vector<1x1x1x8xf32>
    %302 = vector.shape_cast %301 : vector<1x1x1x8xf32> to vector<1x8xf32>
    %303 = vector.broadcast %302 : vector<1x8xf32> to vector<16x8xf32>
    %304 = arith.addf %300, %303 : vector<16x8xf32>
    %cst_262 = arith.constant 0.000000e+00 : f32
    %305 = vector.broadcast %cst_262 : f32 to vector<16x8xf32>
    %306 = arith.maximumf %304, %305 : vector<16x8xf32>
    %c1_263 = arith.constant 1 : index
    %c1_264 = arith.constant 1 : index
    %c2_265 = arith.constant 2 : index
    %c0_266 = arith.constant 0 : index
    %307 = vector.load %arg5[%c1_263, %c1_264, %c2_265, %c0_266] : memref<3x3x4x8xf32, #tpu.memory_space<vmem>>, vector<1x1x1x8xf32>
    %308 = vector.shape_cast %307 : vector<1x1x1x8xf32> to vector<1x8xf32>
    %309 = vector.broadcast %308 : vector<1x8xf32> to vector<16x8xf32>
    %310 = arith.mulf %306, %309 : vector<16x8xf32>
    %c1_267 = arith.constant 1 : index
    %c2_268 = arith.constant 2 : index
    %c2_269 = arith.constant 2 : index
    %c0_270 = arith.constant 0 : index
    %311 = vector.load %arg5[%c1_267, %c2_268, %c2_269, %c0_270] : memref<3x3x4x8xf32, #tpu.memory_space<vmem>>, vector<1x1x1x8xf32>
    %312 = vector.shape_cast %311 : vector<1x1x1x8xf32> to vector<1x8xf32>
    %313 = vector.broadcast %312 : vector<1x8xf32> to vector<16x8xf32>
    %314 = arith.addf %310, %313 : vector<16x8xf32>
    %c1_271 = arith.constant 1 : index
    %c3_272 = arith.constant 3 : index
    %c0_273 = arith.constant 0 : index
    %c0_274 = arith.constant 0 : index
    %315 = vector.load %arg4[%c1_271, %c3_272, %c0_273, %c0_274] : memref<3x4x32x8xf32, #tpu.memory_space<vmem>>, vector<1x1x32x8xf32>
    %316 = vector.shape_cast %315 : vector<1x1x32x8xf32> to vector<32x8xf32>
    %cst_275 = arith.constant dense<0.000000e+00> : vector<16x8xf32>
    %317 = tpu.matmul %263, %316, %cst_275 {dimension_numbers = #tpu.dot_dimension_numbers<[1], [0], [0], [1], [0, 0, 1, 1], [], []>} : vector<16x32xf32>, vector<32x8xf32>, vector<16x8xf32> -> vector<16x8xf32>
    %c1_276 = arith.constant 1 : index
    %c0_277 = arith.constant 0 : index
    %c3_278 = arith.constant 3 : index
    %c0_279 = arith.constant 0 : index
    %318 = vector.load %arg5[%c1_276, %c0_277, %c3_278, %c0_279] : memref<3x3x4x8xf32, #tpu.memory_space<vmem>>, vector<1x1x1x8xf32>
    %319 = vector.shape_cast %318 : vector<1x1x1x8xf32> to vector<1x8xf32>
    %320 = vector.broadcast %319 : vector<1x8xf32> to vector<16x8xf32>
    %321 = arith.addf %317, %320 : vector<16x8xf32>
    %cst_280 = arith.constant 0.000000e+00 : f32
    %322 = vector.broadcast %cst_280 : f32 to vector<16x8xf32>
    %323 = arith.maximumf %321, %322 : vector<16x8xf32>
    %c1_281 = arith.constant 1 : index
    %c1_282 = arith.constant 1 : index
    %c3_283 = arith.constant 3 : index
    %c0_284 = arith.constant 0 : index
    %324 = vector.load %arg5[%c1_281, %c1_282, %c3_283, %c0_284] : memref<3x3x4x8xf32, #tpu.memory_space<vmem>>, vector<1x1x1x8xf32>
    %325 = vector.shape_cast %324 : vector<1x1x1x8xf32> to vector<1x8xf32>
    %326 = vector.broadcast %325 : vector<1x8xf32> to vector<16x8xf32>
    %327 = arith.mulf %323, %326 : vector<16x8xf32>
    %c1_285 = arith.constant 1 : index
    %c2_286 = arith.constant 2 : index
    %c3_287 = arith.constant 3 : index
    %c0_288 = arith.constant 0 : index
    %328 = vector.load %arg5[%c1_285, %c2_286, %c3_287, %c0_288] : memref<3x3x4x8xf32, #tpu.memory_space<vmem>>, vector<1x1x1x8xf32>
    %329 = vector.shape_cast %328 : vector<1x1x1x8xf32> to vector<1x8xf32>
    %330 = vector.broadcast %329 : vector<1x8xf32> to vector<16x8xf32>
    %331 = arith.addf %327, %330 : vector<16x8xf32>
    %c3_289 = arith.constant 3 : index
    %c0_290 = arith.constant 0 : index
    %c0_291 = arith.constant 0 : index
    %c0_292 = arith.constant 0 : index
    %332 = vector.load %arg6[%c3_289, %c0_290, %c0_291, %c0_292] : memref<9x3x8x8xf32, #tpu.memory_space<vmem>>, vector<1x1x8x8xf32>
    %333 = vector.shape_cast %332 : vector<1x1x8x8xf32> to vector<8x8xf32>
    %c3_293 = arith.constant 3 : index
    %c1_294 = arith.constant 1 : index
    %c0_295 = arith.constant 0 : index
    %c0_296 = arith.constant 0 : index
    %334 = vector.load %arg6[%c3_293, %c1_294, %c0_295, %c0_296] : memref<9x3x8x8xf32, #tpu.memory_space<vmem>>, vector<1x1x8x8xf32>
    %335 = vector.shape_cast %334 : vector<1x1x8x8xf32> to vector<8x8xf32>
    %c3_297 = arith.constant 3 : index
    %c2_298 = arith.constant 2 : index
    %c0_299 = arith.constant 0 : index
    %c0_300 = arith.constant 0 : index
    %336 = vector.load %arg6[%c3_297, %c2_298, %c0_299, %c0_300] : memref<9x3x8x8xf32, #tpu.memory_space<vmem>>, vector<1x1x8x8xf32>
    %337 = vector.shape_cast %336 : vector<1x1x8x8xf32> to vector<8x8xf32>
    %338 = vector.extract_strided_slice %297 {offsets = [3, 0], sizes = [1, 8], strides = [1, 1]} : vector<16x8xf32> to vector<1x8xf32>
    %339 = vector.extract_strided_slice %297 {offsets = [2, 0], sizes = [1, 8], strides = [1, 1]} : vector<16x8xf32> to vector<1x8xf32>
    %340 = vector.extract_strided_slice %297 {offsets = [1, 0], sizes = [1, 8], strides = [1, 1]} : vector<16x8xf32> to vector<1x8xf32>
    %341 = vector.extract_strided_slice %297 {offsets = [14, 0], sizes = [1, 8], strides = [1, 1]} : vector<16x8xf32> to vector<1x8xf32>
    %342 = vector.extract_strided_slice %297 {offsets = [13, 0], sizes = [1, 8], strides = [1, 1]} : vector<16x8xf32> to vector<1x8xf32>
    %343 = vector.extract_strided_slice %297 {offsets = [12, 0], sizes = [1, 8], strides = [1, 1]} : vector<16x8xf32> to vector<1x8xf32>
    %344 = tpu.concatenate %338, %339, %340, %297, %341, %342, %343 in 0 : vector<1x8xf32>, vector<1x8xf32>, vector<1x8xf32>, vector<16x8xf32>, vector<1x8xf32>, vector<1x8xf32>, vector<1x8xf32> -> vector<22x8xf32>
    %345 = vector.extract_strided_slice %344 {offsets = [0, 0], sizes = [16, 8], strides = [1, 1]} : vector<22x8xf32> to vector<16x8xf32>
    %cst_301 = arith.constant dense<0.000000e+00> : vector<16x8xf32>
    %346 = tpu.matmul %345, %333, %cst_301 {dimension_numbers = #tpu.dot_dimension_numbers<[1], [0], [0], [1], [0, 0, 1, 1], [], []>} : vector<16x8xf32>, vector<8x8xf32>, vector<16x8xf32> -> vector<16x8xf32>
    %347 = vector.extract_strided_slice %344 {offsets = [3, 0], sizes = [16, 8], strides = [1, 1]} : vector<22x8xf32> to vector<16x8xf32>
    %cst_302 = arith.constant dense<0.000000e+00> : vector<16x8xf32>
    %348 = tpu.matmul %347, %335, %cst_302 {dimension_numbers = #tpu.dot_dimension_numbers<[1], [0], [0], [1], [0, 0, 1, 1], [], []>} : vector<16x8xf32>, vector<8x8xf32>, vector<16x8xf32> -> vector<16x8xf32>
    %349 = arith.addf %346, %348 : vector<16x8xf32>
    %350 = vector.extract_strided_slice %344 {offsets = [6, 0], sizes = [16, 8], strides = [1, 1]} : vector<22x8xf32> to vector<16x8xf32>
    %cst_303 = arith.constant dense<0.000000e+00> : vector<16x8xf32>
    %351 = tpu.matmul %350, %337, %cst_303 {dimension_numbers = #tpu.dot_dimension_numbers<[1], [0], [0], [1], [0, 0, 1, 1], [], []>} : vector<16x8xf32>, vector<8x8xf32>, vector<16x8xf32> -> vector<16x8xf32>
    %352 = arith.addf %349, %351 : vector<16x8xf32>
    %c3_304 = arith.constant 3 : index
    %c0_305 = arith.constant 0 : index
    %c0_306 = arith.constant 0 : index
    %353 = vector.load %arg7[%c3_304, %c0_305, %c0_306] : memref<9x3x8xf32, #tpu.memory_space<vmem>>, vector<1x1x8xf32>
    %354 = vector.shape_cast %353 : vector<1x1x8xf32> to vector<1x8xf32>
    %355 = vector.broadcast %354 : vector<1x8xf32> to vector<16x8xf32>
    %356 = arith.addf %352, %355 : vector<16x8xf32>
    %cst_307 = arith.constant 0.000000e+00 : f32
    %357 = vector.broadcast %cst_307 : f32 to vector<16x8xf32>
    %358 = arith.maximumf %356, %357 : vector<16x8xf32>
    %c3_308 = arith.constant 3 : index
    %c1_309 = arith.constant 1 : index
    %c0_310 = arith.constant 0 : index
    %359 = vector.load %arg7[%c3_308, %c1_309, %c0_310] : memref<9x3x8xf32, #tpu.memory_space<vmem>>, vector<1x1x8xf32>
    %360 = vector.shape_cast %359 : vector<1x1x8xf32> to vector<1x8xf32>
    %361 = vector.broadcast %360 : vector<1x8xf32> to vector<16x8xf32>
    %362 = arith.mulf %358, %361 : vector<16x8xf32>
    %c3_311 = arith.constant 3 : index
    %c2_312 = arith.constant 2 : index
    %c0_313 = arith.constant 0 : index
    %363 = vector.load %arg7[%c3_311, %c2_312, %c0_313] : memref<9x3x8xf32, #tpu.memory_space<vmem>>, vector<1x1x8xf32>
    %364 = vector.shape_cast %363 : vector<1x1x8xf32> to vector<1x8xf32>
    %365 = vector.broadcast %364 : vector<1x8xf32> to vector<16x8xf32>
    %366 = arith.addf %362, %365 : vector<16x8xf32>
    %367 = arith.addf %314, %366 : vector<16x8xf32>
    %c4_314 = arith.constant 4 : index
    %c0_315 = arith.constant 0 : index
    %c0_316 = arith.constant 0 : index
    %c0_317 = arith.constant 0 : index
    %368 = vector.load %arg6[%c4_314, %c0_315, %c0_316, %c0_317] : memref<9x3x8x8xf32, #tpu.memory_space<vmem>>, vector<1x1x8x8xf32>
    %369 = vector.shape_cast %368 : vector<1x1x8x8xf32> to vector<8x8xf32>
    %c4_318 = arith.constant 4 : index
    %c1_319 = arith.constant 1 : index
    %c0_320 = arith.constant 0 : index
    %c0_321 = arith.constant 0 : index
    %370 = vector.load %arg6[%c4_318, %c1_319, %c0_320, %c0_321] : memref<9x3x8x8xf32, #tpu.memory_space<vmem>>, vector<1x1x8x8xf32>
    %371 = vector.shape_cast %370 : vector<1x1x8x8xf32> to vector<8x8xf32>
    %c4_322 = arith.constant 4 : index
    %c2_323 = arith.constant 2 : index
    %c0_324 = arith.constant 0 : index
    %c0_325 = arith.constant 0 : index
    %372 = vector.load %arg6[%c4_322, %c2_323, %c0_324, %c0_325] : memref<9x3x8x8xf32, #tpu.memory_space<vmem>>, vector<1x1x8x8xf32>
    %373 = vector.shape_cast %372 : vector<1x1x8x8xf32> to vector<8x8xf32>
    %374 = vector.extract_strided_slice %367 {offsets = [3, 0], sizes = [1, 8], strides = [1, 1]} : vector<16x8xf32> to vector<1x8xf32>
    %375 = vector.extract_strided_slice %367 {offsets = [2, 0], sizes = [1, 8], strides = [1, 1]} : vector<16x8xf32> to vector<1x8xf32>
    %376 = vector.extract_strided_slice %367 {offsets = [1, 0], sizes = [1, 8], strides = [1, 1]} : vector<16x8xf32> to vector<1x8xf32>
    %377 = vector.extract_strided_slice %367 {offsets = [14, 0], sizes = [1, 8], strides = [1, 1]} : vector<16x8xf32> to vector<1x8xf32>
    %378 = vector.extract_strided_slice %367 {offsets = [13, 0], sizes = [1, 8], strides = [1, 1]} : vector<16x8xf32> to vector<1x8xf32>
    %379 = vector.extract_strided_slice %367 {offsets = [12, 0], sizes = [1, 8], strides = [1, 1]} : vector<16x8xf32> to vector<1x8xf32>
    %380 = tpu.concatenate %374, %375, %376, %367, %377, %378, %379 in 0 : vector<1x8xf32>, vector<1x8xf32>, vector<1x8xf32>, vector<16x8xf32>, vector<1x8xf32>, vector<1x8xf32>, vector<1x8xf32> -> vector<22x8xf32>
    %381 = vector.extract_strided_slice %380 {offsets = [0, 0], sizes = [16, 8], strides = [1, 1]} : vector<22x8xf32> to vector<16x8xf32>
    %cst_326 = arith.constant dense<0.000000e+00> : vector<16x8xf32>
    %382 = tpu.matmul %381, %369, %cst_326 {dimension_numbers = #tpu.dot_dimension_numbers<[1], [0], [0], [1], [0, 0, 1, 1], [], []>} : vector<16x8xf32>, vector<8x8xf32>, vector<16x8xf32> -> vector<16x8xf32>
    %383 = vector.extract_strided_slice %380 {offsets = [3, 0], sizes = [16, 8], strides = [1, 1]} : vector<22x8xf32> to vector<16x8xf32>
    %cst_327 = arith.constant dense<0.000000e+00> : vector<16x8xf32>
    %384 = tpu.matmul %383, %371, %cst_327 {dimension_numbers = #tpu.dot_dimension_numbers<[1], [0], [0], [1], [0, 0, 1, 1], [], []>} : vector<16x8xf32>, vector<8x8xf32>, vector<16x8xf32> -> vector<16x8xf32>
    %385 = arith.addf %382, %384 : vector<16x8xf32>
    %386 = vector.extract_strided_slice %380 {offsets = [6, 0], sizes = [16, 8], strides = [1, 1]} : vector<22x8xf32> to vector<16x8xf32>
    %cst_328 = arith.constant dense<0.000000e+00> : vector<16x8xf32>
    %387 = tpu.matmul %386, %373, %cst_328 {dimension_numbers = #tpu.dot_dimension_numbers<[1], [0], [0], [1], [0, 0, 1, 1], [], []>} : vector<16x8xf32>, vector<8x8xf32>, vector<16x8xf32> -> vector<16x8xf32>
    %388 = arith.addf %385, %387 : vector<16x8xf32>
    %c4_329 = arith.constant 4 : index
    %c0_330 = arith.constant 0 : index
    %c0_331 = arith.constant 0 : index
    %389 = vector.load %arg7[%c4_329, %c0_330, %c0_331] : memref<9x3x8xf32, #tpu.memory_space<vmem>>, vector<1x1x8xf32>
    %390 = vector.shape_cast %389 : vector<1x1x8xf32> to vector<1x8xf32>
    %391 = vector.broadcast %390 : vector<1x8xf32> to vector<16x8xf32>
    %392 = arith.addf %388, %391 : vector<16x8xf32>
    %cst_332 = arith.constant 0.000000e+00 : f32
    %393 = vector.broadcast %cst_332 : f32 to vector<16x8xf32>
    %394 = arith.maximumf %392, %393 : vector<16x8xf32>
    %c4_333 = arith.constant 4 : index
    %c1_334 = arith.constant 1 : index
    %c0_335 = arith.constant 0 : index
    %395 = vector.load %arg7[%c4_333, %c1_334, %c0_335] : memref<9x3x8xf32, #tpu.memory_space<vmem>>, vector<1x1x8xf32>
    %396 = vector.shape_cast %395 : vector<1x1x8xf32> to vector<1x8xf32>
    %397 = vector.broadcast %396 : vector<1x8xf32> to vector<16x8xf32>
    %398 = arith.mulf %394, %397 : vector<16x8xf32>
    %c4_336 = arith.constant 4 : index
    %c2_337 = arith.constant 2 : index
    %c0_338 = arith.constant 0 : index
    %399 = vector.load %arg7[%c4_336, %c2_337, %c0_338] : memref<9x3x8xf32, #tpu.memory_space<vmem>>, vector<1x1x8xf32>
    %400 = vector.shape_cast %399 : vector<1x1x8xf32> to vector<1x8xf32>
    %401 = vector.broadcast %400 : vector<1x8xf32> to vector<16x8xf32>
    %402 = arith.addf %398, %401 : vector<16x8xf32>
    %403 = arith.addf %331, %402 : vector<16x8xf32>
    %c5 = arith.constant 5 : index
    %c0_339 = arith.constant 0 : index
    %c0_340 = arith.constant 0 : index
    %c0_341 = arith.constant 0 : index
    %404 = vector.load %arg6[%c5, %c0_339, %c0_340, %c0_341] : memref<9x3x8x8xf32, #tpu.memory_space<vmem>>, vector<1x1x8x8xf32>
    %405 = vector.shape_cast %404 : vector<1x1x8x8xf32> to vector<8x8xf32>
    %c5_342 = arith.constant 5 : index
    %c1_343 = arith.constant 1 : index
    %c0_344 = arith.constant 0 : index
    %c0_345 = arith.constant 0 : index
    %406 = vector.load %arg6[%c5_342, %c1_343, %c0_344, %c0_345] : memref<9x3x8x8xf32, #tpu.memory_space<vmem>>, vector<1x1x8x8xf32>
    %407 = vector.shape_cast %406 : vector<1x1x8x8xf32> to vector<8x8xf32>
    %c5_346 = arith.constant 5 : index
    %c2_347 = arith.constant 2 : index
    %c0_348 = arith.constant 0 : index
    %c0_349 = arith.constant 0 : index
    %408 = vector.load %arg6[%c5_346, %c2_347, %c0_348, %c0_349] : memref<9x3x8x8xf32, #tpu.memory_space<vmem>>, vector<1x1x8x8xf32>
    %409 = vector.shape_cast %408 : vector<1x1x8x8xf32> to vector<8x8xf32>
    %410 = vector.extract_strided_slice %403 {offsets = [3, 0], sizes = [1, 8], strides = [1, 1]} : vector<16x8xf32> to vector<1x8xf32>
    %411 = vector.extract_strided_slice %403 {offsets = [2, 0], sizes = [1, 8], strides = [1, 1]} : vector<16x8xf32> to vector<1x8xf32>
    %412 = vector.extract_strided_slice %403 {offsets = [1, 0], sizes = [1, 8], strides = [1, 1]} : vector<16x8xf32> to vector<1x8xf32>
    %413 = vector.extract_strided_slice %403 {offsets = [14, 0], sizes = [1, 8], strides = [1, 1]} : vector<16x8xf32> to vector<1x8xf32>
    %414 = vector.extract_strided_slice %403 {offsets = [13, 0], sizes = [1, 8], strides = [1, 1]} : vector<16x8xf32> to vector<1x8xf32>
    %415 = vector.extract_strided_slice %403 {offsets = [12, 0], sizes = [1, 8], strides = [1, 1]} : vector<16x8xf32> to vector<1x8xf32>
    %416 = tpu.concatenate %410, %411, %412, %403, %413, %414, %415 in 0 : vector<1x8xf32>, vector<1x8xf32>, vector<1x8xf32>, vector<16x8xf32>, vector<1x8xf32>, vector<1x8xf32>, vector<1x8xf32> -> vector<22x8xf32>
    %417 = vector.extract_strided_slice %416 {offsets = [0, 0], sizes = [16, 8], strides = [1, 1]} : vector<22x8xf32> to vector<16x8xf32>
    %cst_350 = arith.constant dense<0.000000e+00> : vector<16x8xf32>
    %418 = tpu.matmul %417, %405, %cst_350 {dimension_numbers = #tpu.dot_dimension_numbers<[1], [0], [0], [1], [0, 0, 1, 1], [], []>} : vector<16x8xf32>, vector<8x8xf32>, vector<16x8xf32> -> vector<16x8xf32>
    %419 = vector.extract_strided_slice %416 {offsets = [3, 0], sizes = [16, 8], strides = [1, 1]} : vector<22x8xf32> to vector<16x8xf32>
    %cst_351 = arith.constant dense<0.000000e+00> : vector<16x8xf32>
    %420 = tpu.matmul %419, %407, %cst_351 {dimension_numbers = #tpu.dot_dimension_numbers<[1], [0], [0], [1], [0, 0, 1, 1], [], []>} : vector<16x8xf32>, vector<8x8xf32>, vector<16x8xf32> -> vector<16x8xf32>
    %421 = arith.addf %418, %420 : vector<16x8xf32>
    %422 = vector.extract_strided_slice %416 {offsets = [6, 0], sizes = [16, 8], strides = [1, 1]} : vector<22x8xf32> to vector<16x8xf32>
    %cst_352 = arith.constant dense<0.000000e+00> : vector<16x8xf32>
    %423 = tpu.matmul %422, %409, %cst_352 {dimension_numbers = #tpu.dot_dimension_numbers<[1], [0], [0], [1], [0, 0, 1, 1], [], []>} : vector<16x8xf32>, vector<8x8xf32>, vector<16x8xf32> -> vector<16x8xf32>
    %424 = arith.addf %421, %423 : vector<16x8xf32>
    %c5_353 = arith.constant 5 : index
    %c0_354 = arith.constant 0 : index
    %c0_355 = arith.constant 0 : index
    %425 = vector.load %arg7[%c5_353, %c0_354, %c0_355] : memref<9x3x8xf32, #tpu.memory_space<vmem>>, vector<1x1x8xf32>
    %426 = vector.shape_cast %425 : vector<1x1x8xf32> to vector<1x8xf32>
    %427 = vector.broadcast %426 : vector<1x8xf32> to vector<16x8xf32>
    %428 = arith.addf %424, %427 : vector<16x8xf32>
    %cst_356 = arith.constant 0.000000e+00 : f32
    %429 = vector.broadcast %cst_356 : f32 to vector<16x8xf32>
    %430 = arith.maximumf %428, %429 : vector<16x8xf32>
    %c5_357 = arith.constant 5 : index
    %c1_358 = arith.constant 1 : index
    %c0_359 = arith.constant 0 : index
    %431 = vector.load %arg7[%c5_357, %c1_358, %c0_359] : memref<9x3x8xf32, #tpu.memory_space<vmem>>, vector<1x1x8xf32>
    %432 = vector.shape_cast %431 : vector<1x1x8xf32> to vector<1x8xf32>
    %433 = vector.broadcast %432 : vector<1x8xf32> to vector<16x8xf32>
    %434 = arith.mulf %430, %433 : vector<16x8xf32>
    %c5_360 = arith.constant 5 : index
    %c2_361 = arith.constant 2 : index
    %c0_362 = arith.constant 0 : index
    %435 = vector.load %arg7[%c5_360, %c2_361, %c0_362] : memref<9x3x8xf32, #tpu.memory_space<vmem>>, vector<1x1x8xf32>
    %436 = vector.shape_cast %435 : vector<1x1x8xf32> to vector<1x8xf32>
    %437 = vector.broadcast %436 : vector<1x8xf32> to vector<16x8xf32>
    %438 = arith.addf %434, %437 : vector<16x8xf32>
    %c1_363 = arith.constant 1 : index
    %c0_364 = arith.constant 0 : index
    %c0_365 = arith.constant 0 : index
    %c0_366 = arith.constant 0 : index
    %439 = vector.load %arg8[%c1_363, %c0_364, %c0_365, %c0_366] : memref<3x4x8x32xf32, #tpu.memory_space<vmem>>, vector<1x1x8x32xf32>
    %440 = vector.shape_cast %439 : vector<1x1x8x32xf32> to vector<8x32xf32>
    %cst_367 = arith.constant dense<0.000000e+00> : vector<16x32xf32>
    %441 = tpu.matmul %280, %440, %cst_367 {dimension_numbers = #tpu.dot_dimension_numbers<[1], [0], [0], [1], [0, 0, 1, 1], [], []>} : vector<16x8xf32>, vector<8x32xf32>, vector<16x32xf32> -> vector<16x32xf32>
    %c1_368 = arith.constant 1 : index
    %c1_369 = arith.constant 1 : index
    %c0_370 = arith.constant 0 : index
    %c0_371 = arith.constant 0 : index
    %442 = vector.load %arg8[%c1_368, %c1_369, %c0_370, %c0_371] : memref<3x4x8x32xf32, #tpu.memory_space<vmem>>, vector<1x1x8x32xf32>
    %443 = vector.shape_cast %442 : vector<1x1x8x32xf32> to vector<8x32xf32>
    %cst_372 = arith.constant dense<0.000000e+00> : vector<16x32xf32>
    %444 = tpu.matmul %366, %443, %cst_372 {dimension_numbers = #tpu.dot_dimension_numbers<[1], [0], [0], [1], [0, 0, 1, 1], [], []>} : vector<16x8xf32>, vector<8x32xf32>, vector<16x32xf32> -> vector<16x32xf32>
    %445 = arith.addf %441, %444 : vector<16x32xf32>
    %c1_373 = arith.constant 1 : index
    %c2_374 = arith.constant 2 : index
    %c0_375 = arith.constant 0 : index
    %c0_376 = arith.constant 0 : index
    %446 = vector.load %arg8[%c1_373, %c2_374, %c0_375, %c0_376] : memref<3x4x8x32xf32, #tpu.memory_space<vmem>>, vector<1x1x8x32xf32>
    %447 = vector.shape_cast %446 : vector<1x1x8x32xf32> to vector<8x32xf32>
    %cst_377 = arith.constant dense<0.000000e+00> : vector<16x32xf32>
    %448 = tpu.matmul %402, %447, %cst_377 {dimension_numbers = #tpu.dot_dimension_numbers<[1], [0], [0], [1], [0, 0, 1, 1], [], []>} : vector<16x8xf32>, vector<8x32xf32>, vector<16x32xf32> -> vector<16x32xf32>
    %449 = arith.addf %445, %448 : vector<16x32xf32>
    %c1_378 = arith.constant 1 : index
    %c3_379 = arith.constant 3 : index
    %c0_380 = arith.constant 0 : index
    %c0_381 = arith.constant 0 : index
    %450 = vector.load %arg8[%c1_378, %c3_379, %c0_380, %c0_381] : memref<3x4x8x32xf32, #tpu.memory_space<vmem>>, vector<1x1x8x32xf32>
    %451 = vector.shape_cast %450 : vector<1x1x8x32xf32> to vector<8x32xf32>
    %cst_382 = arith.constant dense<0.000000e+00> : vector<16x32xf32>
    %452 = tpu.matmul %438, %451, %cst_382 {dimension_numbers = #tpu.dot_dimension_numbers<[1], [0], [0], [1], [0, 0, 1, 1], [], []>} : vector<16x8xf32>, vector<8x32xf32>, vector<16x32xf32> -> vector<16x32xf32>
    %453 = arith.addf %449, %452 : vector<16x32xf32>
    %c1_383 = arith.constant 1 : index
    %c0_384 = arith.constant 0 : index
    %c0_385 = arith.constant 0 : index
    %454 = vector.load %arg9[%c1_383, %c0_384, %c0_385] : memref<3x3x32xf32, #tpu.memory_space<vmem>>, vector<1x1x32xf32>
    %455 = vector.shape_cast %454 : vector<1x1x32xf32> to vector<1x32xf32>
    %456 = vector.broadcast %455 : vector<1x32xf32> to vector<16x32xf32>
    %457 = arith.addf %453, %456 : vector<16x32xf32>
    %cst_386 = arith.constant 0.000000e+00 : f32
    %458 = vector.broadcast %cst_386 : f32 to vector<16x32xf32>
    %459 = arith.maximumf %457, %458 : vector<16x32xf32>
    %c1_387 = arith.constant 1 : index
    %c1_388 = arith.constant 1 : index
    %c0_389 = arith.constant 0 : index
    %460 = vector.load %arg9[%c1_387, %c1_388, %c0_389] : memref<3x3x32xf32, #tpu.memory_space<vmem>>, vector<1x1x32xf32>
    %461 = vector.shape_cast %460 : vector<1x1x32xf32> to vector<1x32xf32>
    %462 = vector.broadcast %461 : vector<1x32xf32> to vector<16x32xf32>
    %463 = arith.mulf %459, %462 : vector<16x32xf32>
    %c1_390 = arith.constant 1 : index
    %c2_391 = arith.constant 2 : index
    %c0_392 = arith.constant 0 : index
    %464 = vector.load %arg9[%c1_390, %c2_391, %c0_392] : memref<3x3x32xf32, #tpu.memory_space<vmem>>, vector<1x1x32xf32>
    %465 = vector.shape_cast %464 : vector<1x1x32xf32> to vector<1x32xf32>
    %466 = vector.broadcast %465 : vector<1x32xf32> to vector<16x32xf32>
    %467 = arith.addf %463, %466 : vector<16x32xf32>
    %cst_393 = arith.constant dense<0.000000e+00> : vector<32xf32>
    %468 = vector.multi_reduction <add>, %467, %cst_393 [0] : vector<16x32xf32> to vector<32xf32>
    %469 = vector.shape_cast %468 : vector<32xf32> to vector<1x32xf32>
    %cst_394 = arith.constant 6.250000e-02 : f32
    %470 = vector.broadcast %cst_394 : f32 to vector<1x32xf32>
    %471 = arith.mulf %469, %470 : vector<1x32xf32>
    %c1_395 = arith.constant 1 : index
    %c0_396 = arith.constant 0 : index
    %c0_397 = arith.constant 0 : index
    %472 = vector.load %arg10[%c1_395, %c0_396, %c0_397] : memref<3x32x16xf32, #tpu.memory_space<vmem>>, vector<1x32x16xf32>
    %473 = vector.shape_cast %472 : vector<1x32x16xf32> to vector<32x16xf32>
    %cst_398 = arith.constant dense<0.000000e+00> : vector<1x16xf32>
    %474 = tpu.matmul %471, %473, %cst_398 {dimension_numbers = #tpu.dot_dimension_numbers<[1], [0], [0], [1], [0, 0, 1, 1], [], []>} : vector<1x32xf32>, vector<32x16xf32>, vector<1x16xf32> -> vector<1x16xf32>
    %c1_399 = arith.constant 1 : index
    %c0_400 = arith.constant 0 : index
    %475 = vector.load %arg11[%c1_399, %c0_400] : memref<3x16xf32, #tpu.memory_space<vmem>>, vector<1x16xf32>
    %476 = arith.addf %474, %475 : vector<1x16xf32>
    %cst_401 = arith.constant 0.000000e+00 : f32
    %477 = vector.broadcast %cst_401 : f32 to vector<1x16xf32>
    %478 = arith.maximumf %476, %477 : vector<1x16xf32>
    %c1_402 = arith.constant 1 : index
    %c0_403 = arith.constant 0 : index
    %c0_404 = arith.constant 0 : index
    %479 = vector.load %arg12[%c1_402, %c0_403, %c0_404] : memref<3x16x32xf32, #tpu.memory_space<vmem>>, vector<1x16x32xf32>
    %480 = vector.shape_cast %479 : vector<1x16x32xf32> to vector<16x32xf32>
    %cst_405 = arith.constant dense<0.000000e+00> : vector<1x32xf32>
    %481 = tpu.matmul %478, %480, %cst_405 {dimension_numbers = #tpu.dot_dimension_numbers<[1], [0], [0], [1], [0, 0, 1, 1], [], []>} : vector<1x16xf32>, vector<16x32xf32>, vector<1x32xf32> -> vector<1x32xf32>
    %c1_406 = arith.constant 1 : index
    %c0_407 = arith.constant 0 : index
    %482 = vector.load %arg13[%c1_406, %c0_407] : memref<3x32xf32, #tpu.memory_space<vmem>>, vector<1x32xf32>
    %483 = arith.addf %481, %482 : vector<1x32xf32>
    %484 = arith.negf %483 : vector<1x32xf32>
    %485 = math.exp %484 : vector<1x32xf32>
    %cst_408 = arith.constant 1.000000e+00 : f32
    %486 = vector.broadcast %cst_408 : f32 to vector<1x32xf32>
    %487 = arith.addf %486, %485 : vector<1x32xf32>
    %488 = arith.divf %486, %487 : vector<1x32xf32>
    %489 = vector.broadcast %488 : vector<1x32xf32> to vector<16x32xf32>
    %490 = arith.mulf %467, %489 : vector<16x32xf32>
    %491 = arith.addf %490, %263 : vector<16x32xf32>
    %c2_409 = arith.constant 2 : index
    %c0_410 = arith.constant 0 : index
    %c0_411 = arith.constant 0 : index
    %c0_412 = arith.constant 0 : index
    %492 = vector.load %arg4[%c2_409, %c0_410, %c0_411, %c0_412] : memref<3x4x32x8xf32, #tpu.memory_space<vmem>>, vector<1x1x32x8xf32>
    %493 = vector.shape_cast %492 : vector<1x1x32x8xf32> to vector<32x8xf32>
    %cst_413 = arith.constant dense<0.000000e+00> : vector<16x8xf32>
    %494 = tpu.matmul %491, %493, %cst_413 {dimension_numbers = #tpu.dot_dimension_numbers<[1], [0], [0], [1], [0, 0, 1, 1], [], []>} : vector<16x32xf32>, vector<32x8xf32>, vector<16x8xf32> -> vector<16x8xf32>
    %c2_414 = arith.constant 2 : index
    %c0_415 = arith.constant 0 : index
    %c0_416 = arith.constant 0 : index
    %c0_417 = arith.constant 0 : index
    %495 = vector.load %arg5[%c2_414, %c0_415, %c0_416, %c0_417] : memref<3x3x4x8xf32, #tpu.memory_space<vmem>>, vector<1x1x1x8xf32>
    %496 = vector.shape_cast %495 : vector<1x1x1x8xf32> to vector<1x8xf32>
    %497 = vector.broadcast %496 : vector<1x8xf32> to vector<16x8xf32>
    %498 = arith.addf %494, %497 : vector<16x8xf32>
    %cst_418 = arith.constant 0.000000e+00 : f32
    %499 = vector.broadcast %cst_418 : f32 to vector<16x8xf32>
    %500 = arith.maximumf %498, %499 : vector<16x8xf32>
    %c2_419 = arith.constant 2 : index
    %c1_420 = arith.constant 1 : index
    %c0_421 = arith.constant 0 : index
    %c0_422 = arith.constant 0 : index
    %501 = vector.load %arg5[%c2_419, %c1_420, %c0_421, %c0_422] : memref<3x3x4x8xf32, #tpu.memory_space<vmem>>, vector<1x1x1x8xf32>
    %502 = vector.shape_cast %501 : vector<1x1x1x8xf32> to vector<1x8xf32>
    %503 = vector.broadcast %502 : vector<1x8xf32> to vector<16x8xf32>
    %504 = arith.mulf %500, %503 : vector<16x8xf32>
    %c2_423 = arith.constant 2 : index
    %c2_424 = arith.constant 2 : index
    %c0_425 = arith.constant 0 : index
    %c0_426 = arith.constant 0 : index
    %505 = vector.load %arg5[%c2_423, %c2_424, %c0_425, %c0_426] : memref<3x3x4x8xf32, #tpu.memory_space<vmem>>, vector<1x1x1x8xf32>
    %506 = vector.shape_cast %505 : vector<1x1x1x8xf32> to vector<1x8xf32>
    %507 = vector.broadcast %506 : vector<1x8xf32> to vector<16x8xf32>
    %508 = arith.addf %504, %507 : vector<16x8xf32>
    %c2_427 = arith.constant 2 : index
    %c1_428 = arith.constant 1 : index
    %c0_429 = arith.constant 0 : index
    %c0_430 = arith.constant 0 : index
    %509 = vector.load %arg4[%c2_427, %c1_428, %c0_429, %c0_430] : memref<3x4x32x8xf32, #tpu.memory_space<vmem>>, vector<1x1x32x8xf32>
    %510 = vector.shape_cast %509 : vector<1x1x32x8xf32> to vector<32x8xf32>
    %cst_431 = arith.constant dense<0.000000e+00> : vector<16x8xf32>
    %511 = tpu.matmul %491, %510, %cst_431 {dimension_numbers = #tpu.dot_dimension_numbers<[1], [0], [0], [1], [0, 0, 1, 1], [], []>} : vector<16x32xf32>, vector<32x8xf32>, vector<16x8xf32> -> vector<16x8xf32>
    %c2_432 = arith.constant 2 : index
    %c0_433 = arith.constant 0 : index
    %c1_434 = arith.constant 1 : index
    %c0_435 = arith.constant 0 : index
    %512 = vector.load %arg5[%c2_432, %c0_433, %c1_434, %c0_435] : memref<3x3x4x8xf32, #tpu.memory_space<vmem>>, vector<1x1x1x8xf32>
    %513 = vector.shape_cast %512 : vector<1x1x1x8xf32> to vector<1x8xf32>
    %514 = vector.broadcast %513 : vector<1x8xf32> to vector<16x8xf32>
    %515 = arith.addf %511, %514 : vector<16x8xf32>
    %cst_436 = arith.constant 0.000000e+00 : f32
    %516 = vector.broadcast %cst_436 : f32 to vector<16x8xf32>
    %517 = arith.maximumf %515, %516 : vector<16x8xf32>
    %c2_437 = arith.constant 2 : index
    %c1_438 = arith.constant 1 : index
    %c1_439 = arith.constant 1 : index
    %c0_440 = arith.constant 0 : index
    %518 = vector.load %arg5[%c2_437, %c1_438, %c1_439, %c0_440] : memref<3x3x4x8xf32, #tpu.memory_space<vmem>>, vector<1x1x1x8xf32>
    %519 = vector.shape_cast %518 : vector<1x1x1x8xf32> to vector<1x8xf32>
    %520 = vector.broadcast %519 : vector<1x8xf32> to vector<16x8xf32>
    %521 = arith.mulf %517, %520 : vector<16x8xf32>
    %c2_441 = arith.constant 2 : index
    %c2_442 = arith.constant 2 : index
    %c1_443 = arith.constant 1 : index
    %c0_444 = arith.constant 0 : index
    %522 = vector.load %arg5[%c2_441, %c2_442, %c1_443, %c0_444] : memref<3x3x4x8xf32, #tpu.memory_space<vmem>>, vector<1x1x1x8xf32>
    %523 = vector.shape_cast %522 : vector<1x1x1x8xf32> to vector<1x8xf32>
    %524 = vector.broadcast %523 : vector<1x8xf32> to vector<16x8xf32>
    %525 = arith.addf %521, %524 : vector<16x8xf32>
    %c2_445 = arith.constant 2 : index
    %c2_446 = arith.constant 2 : index
    %c0_447 = arith.constant 0 : index
    %c0_448 = arith.constant 0 : index
    %526 = vector.load %arg4[%c2_445, %c2_446, %c0_447, %c0_448] : memref<3x4x32x8xf32, #tpu.memory_space<vmem>>, vector<1x1x32x8xf32>
    %527 = vector.shape_cast %526 : vector<1x1x32x8xf32> to vector<32x8xf32>
    %cst_449 = arith.constant dense<0.000000e+00> : vector<16x8xf32>
    %528 = tpu.matmul %491, %527, %cst_449 {dimension_numbers = #tpu.dot_dimension_numbers<[1], [0], [0], [1], [0, 0, 1, 1], [], []>} : vector<16x32xf32>, vector<32x8xf32>, vector<16x8xf32> -> vector<16x8xf32>
    %c2_450 = arith.constant 2 : index
    %c0_451 = arith.constant 0 : index
    %c2_452 = arith.constant 2 : index
    %c0_453 = arith.constant 0 : index
    %529 = vector.load %arg5[%c2_450, %c0_451, %c2_452, %c0_453] : memref<3x3x4x8xf32, #tpu.memory_space<vmem>>, vector<1x1x1x8xf32>
    %530 = vector.shape_cast %529 : vector<1x1x1x8xf32> to vector<1x8xf32>
    %531 = vector.broadcast %530 : vector<1x8xf32> to vector<16x8xf32>
    %532 = arith.addf %528, %531 : vector<16x8xf32>
    %cst_454 = arith.constant 0.000000e+00 : f32
    %533 = vector.broadcast %cst_454 : f32 to vector<16x8xf32>
    %534 = arith.maximumf %532, %533 : vector<16x8xf32>
    %c2_455 = arith.constant 2 : index
    %c1_456 = arith.constant 1 : index
    %c2_457 = arith.constant 2 : index
    %c0_458 = arith.constant 0 : index
    %535 = vector.load %arg5[%c2_455, %c1_456, %c2_457, %c0_458] : memref<3x3x4x8xf32, #tpu.memory_space<vmem>>, vector<1x1x1x8xf32>
    %536 = vector.shape_cast %535 : vector<1x1x1x8xf32> to vector<1x8xf32>
    %537 = vector.broadcast %536 : vector<1x8xf32> to vector<16x8xf32>
    %538 = arith.mulf %534, %537 : vector<16x8xf32>
    %c2_459 = arith.constant 2 : index
    %c2_460 = arith.constant 2 : index
    %c2_461 = arith.constant 2 : index
    %c0_462 = arith.constant 0 : index
    %539 = vector.load %arg5[%c2_459, %c2_460, %c2_461, %c0_462] : memref<3x3x4x8xf32, #tpu.memory_space<vmem>>, vector<1x1x1x8xf32>
    %540 = vector.shape_cast %539 : vector<1x1x1x8xf32> to vector<1x8xf32>
    %541 = vector.broadcast %540 : vector<1x8xf32> to vector<16x8xf32>
    %542 = arith.addf %538, %541 : vector<16x8xf32>
    %c2_463 = arith.constant 2 : index
    %c3_464 = arith.constant 3 : index
    %c0_465 = arith.constant 0 : index
    %c0_466 = arith.constant 0 : index
    %543 = vector.load %arg4[%c2_463, %c3_464, %c0_465, %c0_466] : memref<3x4x32x8xf32, #tpu.memory_space<vmem>>, vector<1x1x32x8xf32>
    %544 = vector.shape_cast %543 : vector<1x1x32x8xf32> to vector<32x8xf32>
    %cst_467 = arith.constant dense<0.000000e+00> : vector<16x8xf32>
    %545 = tpu.matmul %491, %544, %cst_467 {dimension_numbers = #tpu.dot_dimension_numbers<[1], [0], [0], [1], [0, 0, 1, 1], [], []>} : vector<16x32xf32>, vector<32x8xf32>, vector<16x8xf32> -> vector<16x8xf32>
    %c2_468 = arith.constant 2 : index
    %c0_469 = arith.constant 0 : index
    %c3_470 = arith.constant 3 : index
    %c0_471 = arith.constant 0 : index
    %546 = vector.load %arg5[%c2_468, %c0_469, %c3_470, %c0_471] : memref<3x3x4x8xf32, #tpu.memory_space<vmem>>, vector<1x1x1x8xf32>
    %547 = vector.shape_cast %546 : vector<1x1x1x8xf32> to vector<1x8xf32>
    %548 = vector.broadcast %547 : vector<1x8xf32> to vector<16x8xf32>
    %549 = arith.addf %545, %548 : vector<16x8xf32>
    %cst_472 = arith.constant 0.000000e+00 : f32
    %550 = vector.broadcast %cst_472 : f32 to vector<16x8xf32>
    %551 = arith.maximumf %549, %550 : vector<16x8xf32>
    %c2_473 = arith.constant 2 : index
    %c1_474 = arith.constant 1 : index
    %c3_475 = arith.constant 3 : index
    %c0_476 = arith.constant 0 : index
    %552 = vector.load %arg5[%c2_473, %c1_474, %c3_475, %c0_476] : memref<3x3x4x8xf32, #tpu.memory_space<vmem>>, vector<1x1x1x8xf32>
    %553 = vector.shape_cast %552 : vector<1x1x1x8xf32> to vector<1x8xf32>
    %554 = vector.broadcast %553 : vector<1x8xf32> to vector<16x8xf32>
    %555 = arith.mulf %551, %554 : vector<16x8xf32>
    %c2_477 = arith.constant 2 : index
    %c2_478 = arith.constant 2 : index
    %c3_479 = arith.constant 3 : index
    %c0_480 = arith.constant 0 : index
    %556 = vector.load %arg5[%c2_477, %c2_478, %c3_479, %c0_480] : memref<3x3x4x8xf32, #tpu.memory_space<vmem>>, vector<1x1x1x8xf32>
    %557 = vector.shape_cast %556 : vector<1x1x1x8xf32> to vector<1x8xf32>
    %558 = vector.broadcast %557 : vector<1x8xf32> to vector<16x8xf32>
    %559 = arith.addf %555, %558 : vector<16x8xf32>
    %c6 = arith.constant 6 : index
    %c0_481 = arith.constant 0 : index
    %c0_482 = arith.constant 0 : index
    %c0_483 = arith.constant 0 : index
    %560 = vector.load %arg6[%c6, %c0_481, %c0_482, %c0_483] : memref<9x3x8x8xf32, #tpu.memory_space<vmem>>, vector<1x1x8x8xf32>
    %561 = vector.shape_cast %560 : vector<1x1x8x8xf32> to vector<8x8xf32>
    %c6_484 = arith.constant 6 : index
    %c1_485 = arith.constant 1 : index
    %c0_486 = arith.constant 0 : index
    %c0_487 = arith.constant 0 : index
    %562 = vector.load %arg6[%c6_484, %c1_485, %c0_486, %c0_487] : memref<9x3x8x8xf32, #tpu.memory_space<vmem>>, vector<1x1x8x8xf32>
    %563 = vector.shape_cast %562 : vector<1x1x8x8xf32> to vector<8x8xf32>
    %c6_488 = arith.constant 6 : index
    %c2_489 = arith.constant 2 : index
    %c0_490 = arith.constant 0 : index
    %c0_491 = arith.constant 0 : index
    %564 = vector.load %arg6[%c6_488, %c2_489, %c0_490, %c0_491] : memref<9x3x8x8xf32, #tpu.memory_space<vmem>>, vector<1x1x8x8xf32>
    %565 = vector.shape_cast %564 : vector<1x1x8x8xf32> to vector<8x8xf32>
    %566 = vector.extract_strided_slice %525 {offsets = [4, 0], sizes = [1, 8], strides = [1, 1]} : vector<16x8xf32> to vector<1x8xf32>
    %567 = vector.extract_strided_slice %525 {offsets = [3, 0], sizes = [1, 8], strides = [1, 1]} : vector<16x8xf32> to vector<1x8xf32>
    %568 = vector.extract_strided_slice %525 {offsets = [2, 0], sizes = [1, 8], strides = [1, 1]} : vector<16x8xf32> to vector<1x8xf32>
    %569 = vector.extract_strided_slice %525 {offsets = [1, 0], sizes = [1, 8], strides = [1, 1]} : vector<16x8xf32> to vector<1x8xf32>
    %570 = vector.extract_strided_slice %525 {offsets = [14, 0], sizes = [1, 8], strides = [1, 1]} : vector<16x8xf32> to vector<1x8xf32>
    %571 = vector.extract_strided_slice %525 {offsets = [13, 0], sizes = [1, 8], strides = [1, 1]} : vector<16x8xf32> to vector<1x8xf32>
    %572 = vector.extract_strided_slice %525 {offsets = [12, 0], sizes = [1, 8], strides = [1, 1]} : vector<16x8xf32> to vector<1x8xf32>
    %573 = vector.extract_strided_slice %525 {offsets = [11, 0], sizes = [1, 8], strides = [1, 1]} : vector<16x8xf32> to vector<1x8xf32>
    %574 = tpu.concatenate %566, %567, %568, %569, %525, %570, %571, %572, %573 in 0 : vector<1x8xf32>, vector<1x8xf32>, vector<1x8xf32>, vector<1x8xf32>, vector<16x8xf32>, vector<1x8xf32>, vector<1x8xf32>, vector<1x8xf32>, vector<1x8xf32> -> vector<24x8xf32>
    %575 = vector.extract_strided_slice %574 {offsets = [0, 0], sizes = [16, 8], strides = [1, 1]} : vector<24x8xf32> to vector<16x8xf32>
    %cst_492 = arith.constant dense<0.000000e+00> : vector<16x8xf32>
    %576 = tpu.matmul %575, %561, %cst_492 {dimension_numbers = #tpu.dot_dimension_numbers<[1], [0], [0], [1], [0, 0, 1, 1], [], []>} : vector<16x8xf32>, vector<8x8xf32>, vector<16x8xf32> -> vector<16x8xf32>
    %577 = vector.extract_strided_slice %574 {offsets = [4, 0], sizes = [16, 8], strides = [1, 1]} : vector<24x8xf32> to vector<16x8xf32>
    %cst_493 = arith.constant dense<0.000000e+00> : vector<16x8xf32>
    %578 = tpu.matmul %577, %563, %cst_493 {dimension_numbers = #tpu.dot_dimension_numbers<[1], [0], [0], [1], [0, 0, 1, 1], [], []>} : vector<16x8xf32>, vector<8x8xf32>, vector<16x8xf32> -> vector<16x8xf32>
    %579 = arith.addf %576, %578 : vector<16x8xf32>
    %580 = vector.extract_strided_slice %574 {offsets = [8, 0], sizes = [16, 8], strides = [1, 1]} : vector<24x8xf32> to vector<16x8xf32>
    %cst_494 = arith.constant dense<0.000000e+00> : vector<16x8xf32>
    %581 = tpu.matmul %580, %565, %cst_494 {dimension_numbers = #tpu.dot_dimension_numbers<[1], [0], [0], [1], [0, 0, 1, 1], [], []>} : vector<16x8xf32>, vector<8x8xf32>, vector<16x8xf32> -> vector<16x8xf32>
    %582 = arith.addf %579, %581 : vector<16x8xf32>
    %c6_495 = arith.constant 6 : index
    %c0_496 = arith.constant 0 : index
    %c0_497 = arith.constant 0 : index
    %583 = vector.load %arg7[%c6_495, %c0_496, %c0_497] : memref<9x3x8xf32, #tpu.memory_space<vmem>>, vector<1x1x8xf32>
    %584 = vector.shape_cast %583 : vector<1x1x8xf32> to vector<1x8xf32>
    %585 = vector.broadcast %584 : vector<1x8xf32> to vector<16x8xf32>
    %586 = arith.addf %582, %585 : vector<16x8xf32>
    %cst_498 = arith.constant 0.000000e+00 : f32
    %587 = vector.broadcast %cst_498 : f32 to vector<16x8xf32>
    %588 = arith.maximumf %586, %587 : vector<16x8xf32>
    %c6_499 = arith.constant 6 : index
    %c1_500 = arith.constant 1 : index
    %c0_501 = arith.constant 0 : index
    %589 = vector.load %arg7[%c6_499, %c1_500, %c0_501] : memref<9x3x8xf32, #tpu.memory_space<vmem>>, vector<1x1x8xf32>
    %590 = vector.shape_cast %589 : vector<1x1x8xf32> to vector<1x8xf32>
    %591 = vector.broadcast %590 : vector<1x8xf32> to vector<16x8xf32>
    %592 = arith.mulf %588, %591 : vector<16x8xf32>
    %c6_502 = arith.constant 6 : index
    %c2_503 = arith.constant 2 : index
    %c0_504 = arith.constant 0 : index
    %593 = vector.load %arg7[%c6_502, %c2_503, %c0_504] : memref<9x3x8xf32, #tpu.memory_space<vmem>>, vector<1x1x8xf32>
    %594 = vector.shape_cast %593 : vector<1x1x8xf32> to vector<1x8xf32>
    %595 = vector.broadcast %594 : vector<1x8xf32> to vector<16x8xf32>
    %596 = arith.addf %592, %595 : vector<16x8xf32>
    %597 = arith.addf %542, %596 : vector<16x8xf32>
    %c7 = arith.constant 7 : index
    %c0_505 = arith.constant 0 : index
    %c0_506 = arith.constant 0 : index
    %c0_507 = arith.constant 0 : index
    %598 = vector.load %arg6[%c7, %c0_505, %c0_506, %c0_507] : memref<9x3x8x8xf32, #tpu.memory_space<vmem>>, vector<1x1x8x8xf32>
    %599 = vector.shape_cast %598 : vector<1x1x8x8xf32> to vector<8x8xf32>
    %c7_508 = arith.constant 7 : index
    %c1_509 = arith.constant 1 : index
    %c0_510 = arith.constant 0 : index
    %c0_511 = arith.constant 0 : index
    %600 = vector.load %arg6[%c7_508, %c1_509, %c0_510, %c0_511] : memref<9x3x8x8xf32, #tpu.memory_space<vmem>>, vector<1x1x8x8xf32>
    %601 = vector.shape_cast %600 : vector<1x1x8x8xf32> to vector<8x8xf32>
    %c7_512 = arith.constant 7 : index
    %c2_513 = arith.constant 2 : index
    %c0_514 = arith.constant 0 : index
    %c0_515 = arith.constant 0 : index
    %602 = vector.load %arg6[%c7_512, %c2_513, %c0_514, %c0_515] : memref<9x3x8x8xf32, #tpu.memory_space<vmem>>, vector<1x1x8x8xf32>
    %603 = vector.shape_cast %602 : vector<1x1x8x8xf32> to vector<8x8xf32>
    %604 = vector.extract_strided_slice %597 {offsets = [4, 0], sizes = [1, 8], strides = [1, 1]} : vector<16x8xf32> to vector<1x8xf32>
    %605 = vector.extract_strided_slice %597 {offsets = [3, 0], sizes = [1, 8], strides = [1, 1]} : vector<16x8xf32> to vector<1x8xf32>
    %606 = vector.extract_strided_slice %597 {offsets = [2, 0], sizes = [1, 8], strides = [1, 1]} : vector<16x8xf32> to vector<1x8xf32>
    %607 = vector.extract_strided_slice %597 {offsets = [1, 0], sizes = [1, 8], strides = [1, 1]} : vector<16x8xf32> to vector<1x8xf32>
    %608 = vector.extract_strided_slice %597 {offsets = [14, 0], sizes = [1, 8], strides = [1, 1]} : vector<16x8xf32> to vector<1x8xf32>
    %609 = vector.extract_strided_slice %597 {offsets = [13, 0], sizes = [1, 8], strides = [1, 1]} : vector<16x8xf32> to vector<1x8xf32>
    %610 = vector.extract_strided_slice %597 {offsets = [12, 0], sizes = [1, 8], strides = [1, 1]} : vector<16x8xf32> to vector<1x8xf32>
    %611 = vector.extract_strided_slice %597 {offsets = [11, 0], sizes = [1, 8], strides = [1, 1]} : vector<16x8xf32> to vector<1x8xf32>
    %612 = tpu.concatenate %604, %605, %606, %607, %597, %608, %609, %610, %611 in 0 : vector<1x8xf32>, vector<1x8xf32>, vector<1x8xf32>, vector<1x8xf32>, vector<16x8xf32>, vector<1x8xf32>, vector<1x8xf32>, vector<1x8xf32>, vector<1x8xf32> -> vector<24x8xf32>
    %613 = vector.extract_strided_slice %612 {offsets = [0, 0], sizes = [16, 8], strides = [1, 1]} : vector<24x8xf32> to vector<16x8xf32>
    %cst_516 = arith.constant dense<0.000000e+00> : vector<16x8xf32>
    %614 = tpu.matmul %613, %599, %cst_516 {dimension_numbers = #tpu.dot_dimension_numbers<[1], [0], [0], [1], [0, 0, 1, 1], [], []>} : vector<16x8xf32>, vector<8x8xf32>, vector<16x8xf32> -> vector<16x8xf32>
    %615 = vector.extract_strided_slice %612 {offsets = [4, 0], sizes = [16, 8], strides = [1, 1]} : vector<24x8xf32> to vector<16x8xf32>
    %cst_517 = arith.constant dense<0.000000e+00> : vector<16x8xf32>
    %616 = tpu.matmul %615, %601, %cst_517 {dimension_numbers = #tpu.dot_dimension_numbers<[1], [0], [0], [1], [0, 0, 1, 1], [], []>} : vector<16x8xf32>, vector<8x8xf32>, vector<16x8xf32> -> vector<16x8xf32>
    %617 = arith.addf %614, %616 : vector<16x8xf32>
    %618 = vector.extract_strided_slice %612 {offsets = [8, 0], sizes = [16, 8], strides = [1, 1]} : vector<24x8xf32> to vector<16x8xf32>
    %cst_518 = arith.constant dense<0.000000e+00> : vector<16x8xf32>
    %619 = tpu.matmul %618, %603, %cst_518 {dimension_numbers = #tpu.dot_dimension_numbers<[1], [0], [0], [1], [0, 0, 1, 1], [], []>} : vector<16x8xf32>, vector<8x8xf32>, vector<16x8xf32> -> vector<16x8xf32>
    %620 = arith.addf %617, %619 : vector<16x8xf32>
    %c7_519 = arith.constant 7 : index
    %c0_520 = arith.constant 0 : index
    %c0_521 = arith.constant 0 : index
    %621 = vector.load %arg7[%c7_519, %c0_520, %c0_521] : memref<9x3x8xf32, #tpu.memory_space<vmem>>, vector<1x1x8xf32>
    %622 = vector.shape_cast %621 : vector<1x1x8xf32> to vector<1x8xf32>
    %623 = vector.broadcast %622 : vector<1x8xf32> to vector<16x8xf32>
    %624 = arith.addf %620, %623 : vector<16x8xf32>
    %cst_522 = arith.constant 0.000000e+00 : f32
    %625 = vector.broadcast %cst_522 : f32 to vector<16x8xf32>
    %626 = arith.maximumf %624, %625 : vector<16x8xf32>
    %c7_523 = arith.constant 7 : index
    %c1_524 = arith.constant 1 : index
    %c0_525 = arith.constant 0 : index
    %627 = vector.load %arg7[%c7_523, %c1_524, %c0_525] : memref<9x3x8xf32, #tpu.memory_space<vmem>>, vector<1x1x8xf32>
    %628 = vector.shape_cast %627 : vector<1x1x8xf32> to vector<1x8xf32>
    %629 = vector.broadcast %628 : vector<1x8xf32> to vector<16x8xf32>
    %630 = arith.mulf %626, %629 : vector<16x8xf32>
    %c7_526 = arith.constant 7 : index
    %c2_527 = arith.constant 2 : index
    %c0_528 = arith.constant 0 : index
    %631 = vector.load %arg7[%c7_526, %c2_527, %c0_528] : memref<9x3x8xf32, #tpu.memory_space<vmem>>, vector<1x1x8xf32>
    %632 = vector.shape_cast %631 : vector<1x1x8xf32> to vector<1x8xf32>
    %633 = vector.broadcast %632 : vector<1x8xf32> to vector<16x8xf32>
    %634 = arith.addf %630, %633 : vector<16x8xf32>
    %635 = arith.addf %559, %634 : vector<16x8xf32>
    %c8 = arith.constant 8 : index
    %c0_529 = arith.constant 0 : index
    %c0_530 = arith.constant 0 : index
    %c0_531 = arith.constant 0 : index
    %636 = vector.load %arg6[%c8, %c0_529, %c0_530, %c0_531] : memref<9x3x8x8xf32, #tpu.memory_space<vmem>>, vector<1x1x8x8xf32>
    %637 = vector.shape_cast %636 : vector<1x1x8x8xf32> to vector<8x8xf32>
    %c8_532 = arith.constant 8 : index
    %c1_533 = arith.constant 1 : index
    %c0_534 = arith.constant 0 : index
    %c0_535 = arith.constant 0 : index
    %638 = vector.load %arg6[%c8_532, %c1_533, %c0_534, %c0_535] : memref<9x3x8x8xf32, #tpu.memory_space<vmem>>, vector<1x1x8x8xf32>
    %639 = vector.shape_cast %638 : vector<1x1x8x8xf32> to vector<8x8xf32>
    %c8_536 = arith.constant 8 : index
    %c2_537 = arith.constant 2 : index
    %c0_538 = arith.constant 0 : index
    %c0_539 = arith.constant 0 : index
    %640 = vector.load %arg6[%c8_536, %c2_537, %c0_538, %c0_539] : memref<9x3x8x8xf32, #tpu.memory_space<vmem>>, vector<1x1x8x8xf32>
    %641 = vector.shape_cast %640 : vector<1x1x8x8xf32> to vector<8x8xf32>
    %642 = vector.extract_strided_slice %635 {offsets = [4, 0], sizes = [1, 8], strides = [1, 1]} : vector<16x8xf32> to vector<1x8xf32>
    %643 = vector.extract_strided_slice %635 {offsets = [3, 0], sizes = [1, 8], strides = [1, 1]} : vector<16x8xf32> to vector<1x8xf32>
    %644 = vector.extract_strided_slice %635 {offsets = [2, 0], sizes = [1, 8], strides = [1, 1]} : vector<16x8xf32> to vector<1x8xf32>
    %645 = vector.extract_strided_slice %635 {offsets = [1, 0], sizes = [1, 8], strides = [1, 1]} : vector<16x8xf32> to vector<1x8xf32>
    %646 = vector.extract_strided_slice %635 {offsets = [14, 0], sizes = [1, 8], strides = [1, 1]} : vector<16x8xf32> to vector<1x8xf32>
    %647 = vector.extract_strided_slice %635 {offsets = [13, 0], sizes = [1, 8], strides = [1, 1]} : vector<16x8xf32> to vector<1x8xf32>
    %648 = vector.extract_strided_slice %635 {offsets = [12, 0], sizes = [1, 8], strides = [1, 1]} : vector<16x8xf32> to vector<1x8xf32>
    %649 = vector.extract_strided_slice %635 {offsets = [11, 0], sizes = [1, 8], strides = [1, 1]} : vector<16x8xf32> to vector<1x8xf32>
    %650 = tpu.concatenate %642, %643, %644, %645, %635, %646, %647, %648, %649 in 0 : vector<1x8xf32>, vector<1x8xf32>, vector<1x8xf32>, vector<1x8xf32>, vector<16x8xf32>, vector<1x8xf32>, vector<1x8xf32>, vector<1x8xf32>, vector<1x8xf32> -> vector<24x8xf32>
    %651 = vector.extract_strided_slice %650 {offsets = [0, 0], sizes = [16, 8], strides = [1, 1]} : vector<24x8xf32> to vector<16x8xf32>
    %cst_540 = arith.constant dense<0.000000e+00> : vector<16x8xf32>
    %652 = tpu.matmul %651, %637, %cst_540 {dimension_numbers = #tpu.dot_dimension_numbers<[1], [0], [0], [1], [0, 0, 1, 1], [], []>} : vector<16x8xf32>, vector<8x8xf32>, vector<16x8xf32> -> vector<16x8xf32>
    %653 = vector.extract_strided_slice %650 {offsets = [4, 0], sizes = [16, 8], strides = [1, 1]} : vector<24x8xf32> to vector<16x8xf32>
    %cst_541 = arith.constant dense<0.000000e+00> : vector<16x8xf32>
    %654 = tpu.matmul %653, %639, %cst_541 {dimension_numbers = #tpu.dot_dimension_numbers<[1], [0], [0], [1], [0, 0, 1, 1], [], []>} : vector<16x8xf32>, vector<8x8xf32>, vector<16x8xf32> -> vector<16x8xf32>
    %655 = arith.addf %652, %654 : vector<16x8xf32>
    %656 = vector.extract_strided_slice %650 {offsets = [8, 0], sizes = [16, 8], strides = [1, 1]} : vector<24x8xf32> to vector<16x8xf32>
    %cst_542 = arith.constant dense<0.000000e+00> : vector<16x8xf32>
    %657 = tpu.matmul %656, %641, %cst_542 {dimension_numbers = #tpu.dot_dimension_numbers<[1], [0], [0], [1], [0, 0, 1, 1], [], []>} : vector<16x8xf32>, vector<8x8xf32>, vector<16x8xf32> -> vector<16x8xf32>
    %658 = arith.addf %655, %657 : vector<16x8xf32>
    %c8_543 = arith.constant 8 : index
    %c0_544 = arith.constant 0 : index
    %c0_545 = arith.constant 0 : index
    %659 = vector.load %arg7[%c8_543, %c0_544, %c0_545] : memref<9x3x8xf32, #tpu.memory_space<vmem>>, vector<1x1x8xf32>
    %660 = vector.shape_cast %659 : vector<1x1x8xf32> to vector<1x8xf32>
    %661 = vector.broadcast %660 : vector<1x8xf32> to vector<16x8xf32>
    %662 = arith.addf %658, %661 : vector<16x8xf32>
    %cst_546 = arith.constant 0.000000e+00 : f32
    %663 = vector.broadcast %cst_546 : f32 to vector<16x8xf32>
    %664 = arith.maximumf %662, %663 : vector<16x8xf32>
    %c8_547 = arith.constant 8 : index
    %c1_548 = arith.constant 1 : index
    %c0_549 = arith.constant 0 : index
    %665 = vector.load %arg7[%c8_547, %c1_548, %c0_549] : memref<9x3x8xf32, #tpu.memory_space<vmem>>, vector<1x1x8xf32>
    %666 = vector.shape_cast %665 : vector<1x1x8xf32> to vector<1x8xf32>
    %667 = vector.broadcast %666 : vector<1x8xf32> to vector<16x8xf32>
    %668 = arith.mulf %664, %667 : vector<16x8xf32>
    %c8_550 = arith.constant 8 : index
    %c2_551 = arith.constant 2 : index
    %c0_552 = arith.constant 0 : index
    %669 = vector.load %arg7[%c8_550, %c2_551, %c0_552] : memref<9x3x8xf32, #tpu.memory_space<vmem>>, vector<1x1x8xf32>
    %670 = vector.shape_cast %669 : vector<1x1x8xf32> to vector<1x8xf32>
    %671 = vector.broadcast %670 : vector<1x8xf32> to vector<16x8xf32>
    %672 = arith.addf %668, %671 : vector<16x8xf32>
    %c2_553 = arith.constant 2 : index
    %c0_554 = arith.constant 0 : index
    %c0_555 = arith.constant 0 : index
    %c0_556 = arith.constant 0 : index
    %673 = vector.load %arg8[%c2_553, %c0_554, %c0_555, %c0_556] : memref<3x4x8x32xf32, #tpu.memory_space<vmem>>, vector<1x1x8x32xf32>
    %674 = vector.shape_cast %673 : vector<1x1x8x32xf32> to vector<8x32xf32>
    %cst_557 = arith.constant dense<0.000000e+00> : vector<16x32xf32>
    %675 = tpu.matmul %508, %674, %cst_557 {dimension_numbers = #tpu.dot_dimension_numbers<[1], [0], [0], [1], [0, 0, 1, 1], [], []>} : vector<16x8xf32>, vector<8x32xf32>, vector<16x32xf32> -> vector<16x32xf32>
    %c2_558 = arith.constant 2 : index
    %c1_559 = arith.constant 1 : index
    %c0_560 = arith.constant 0 : index
    %c0_561 = arith.constant 0 : index
    %676 = vector.load %arg8[%c2_558, %c1_559, %c0_560, %c0_561] : memref<3x4x8x32xf32, #tpu.memory_space<vmem>>, vector<1x1x8x32xf32>
    %677 = vector.shape_cast %676 : vector<1x1x8x32xf32> to vector<8x32xf32>
    %cst_562 = arith.constant dense<0.000000e+00> : vector<16x32xf32>
    %678 = tpu.matmul %596, %677, %cst_562 {dimension_numbers = #tpu.dot_dimension_numbers<[1], [0], [0], [1], [0, 0, 1, 1], [], []>} : vector<16x8xf32>, vector<8x32xf32>, vector<16x32xf32> -> vector<16x32xf32>
    %679 = arith.addf %675, %678 : vector<16x32xf32>
    %c2_563 = arith.constant 2 : index
    %c2_564 = arith.constant 2 : index
    %c0_565 = arith.constant 0 : index
    %c0_566 = arith.constant 0 : index
    %680 = vector.load %arg8[%c2_563, %c2_564, %c0_565, %c0_566] : memref<3x4x8x32xf32, #tpu.memory_space<vmem>>, vector<1x1x8x32xf32>
    %681 = vector.shape_cast %680 : vector<1x1x8x32xf32> to vector<8x32xf32>
    %cst_567 = arith.constant dense<0.000000e+00> : vector<16x32xf32>
    %682 = tpu.matmul %634, %681, %cst_567 {dimension_numbers = #tpu.dot_dimension_numbers<[1], [0], [0], [1], [0, 0, 1, 1], [], []>} : vector<16x8xf32>, vector<8x32xf32>, vector<16x32xf32> -> vector<16x32xf32>
    %683 = arith.addf %679, %682 : vector<16x32xf32>
    %c2_568 = arith.constant 2 : index
    %c3_569 = arith.constant 3 : index
    %c0_570 = arith.constant 0 : index
    %c0_571 = arith.constant 0 : index
    %684 = vector.load %arg8[%c2_568, %c3_569, %c0_570, %c0_571] : memref<3x4x8x32xf32, #tpu.memory_space<vmem>>, vector<1x1x8x32xf32>
    %685 = vector.shape_cast %684 : vector<1x1x8x32xf32> to vector<8x32xf32>
    %cst_572 = arith.constant dense<0.000000e+00> : vector<16x32xf32>
    %686 = tpu.matmul %672, %685, %cst_572 {dimension_numbers = #tpu.dot_dimension_numbers<[1], [0], [0], [1], [0, 0, 1, 1], [], []>} : vector<16x8xf32>, vector<8x32xf32>, vector<16x32xf32> -> vector<16x32xf32>
    %687 = arith.addf %683, %686 : vector<16x32xf32>
    %c2_573 = arith.constant 2 : index
    %c0_574 = arith.constant 0 : index
    %c0_575 = arith.constant 0 : index
    %688 = vector.load %arg9[%c2_573, %c0_574, %c0_575] : memref<3x3x32xf32, #tpu.memory_space<vmem>>, vector<1x1x32xf32>
    %689 = vector.shape_cast %688 : vector<1x1x32xf32> to vector<1x32xf32>
    %690 = vector.broadcast %689 : vector<1x32xf32> to vector<16x32xf32>
    %691 = arith.addf %687, %690 : vector<16x32xf32>
    %cst_576 = arith.constant 0.000000e+00 : f32
    %692 = vector.broadcast %cst_576 : f32 to vector<16x32xf32>
    %693 = arith.maximumf %691, %692 : vector<16x32xf32>
    %c2_577 = arith.constant 2 : index
    %c1_578 = arith.constant 1 : index
    %c0_579 = arith.constant 0 : index
    %694 = vector.load %arg9[%c2_577, %c1_578, %c0_579] : memref<3x3x32xf32, #tpu.memory_space<vmem>>, vector<1x1x32xf32>
    %695 = vector.shape_cast %694 : vector<1x1x32xf32> to vector<1x32xf32>
    %696 = vector.broadcast %695 : vector<1x32xf32> to vector<16x32xf32>
    %697 = arith.mulf %693, %696 : vector<16x32xf32>
    %c2_580 = arith.constant 2 : index
    %c2_581 = arith.constant 2 : index
    %c0_582 = arith.constant 0 : index
    %698 = vector.load %arg9[%c2_580, %c2_581, %c0_582] : memref<3x3x32xf32, #tpu.memory_space<vmem>>, vector<1x1x32xf32>
    %699 = vector.shape_cast %698 : vector<1x1x32xf32> to vector<1x32xf32>
    %700 = vector.broadcast %699 : vector<1x32xf32> to vector<16x32xf32>
    %701 = arith.addf %697, %700 : vector<16x32xf32>
    %cst_583 = arith.constant dense<0.000000e+00> : vector<32xf32>
    %702 = vector.multi_reduction <add>, %701, %cst_583 [0] : vector<16x32xf32> to vector<32xf32>
    %703 = vector.shape_cast %702 : vector<32xf32> to vector<1x32xf32>
    %cst_584 = arith.constant 6.250000e-02 : f32
    %704 = vector.broadcast %cst_584 : f32 to vector<1x32xf32>
    %705 = arith.mulf %703, %704 : vector<1x32xf32>
    %c2_585 = arith.constant 2 : index
    %c0_586 = arith.constant 0 : index
    %c0_587 = arith.constant 0 : index
    %706 = vector.load %arg10[%c2_585, %c0_586, %c0_587] : memref<3x32x16xf32, #tpu.memory_space<vmem>>, vector<1x32x16xf32>
    %707 = vector.shape_cast %706 : vector<1x32x16xf32> to vector<32x16xf32>
    %cst_588 = arith.constant dense<0.000000e+00> : vector<1x16xf32>
    %708 = tpu.matmul %705, %707, %cst_588 {dimension_numbers = #tpu.dot_dimension_numbers<[1], [0], [0], [1], [0, 0, 1, 1], [], []>} : vector<1x32xf32>, vector<32x16xf32>, vector<1x16xf32> -> vector<1x16xf32>
    %c2_589 = arith.constant 2 : index
    %c0_590 = arith.constant 0 : index
    %709 = vector.load %arg11[%c2_589, %c0_590] : memref<3x16xf32, #tpu.memory_space<vmem>>, vector<1x16xf32>
    %710 = arith.addf %708, %709 : vector<1x16xf32>
    %cst_591 = arith.constant 0.000000e+00 : f32
    %711 = vector.broadcast %cst_591 : f32 to vector<1x16xf32>
    %712 = arith.maximumf %710, %711 : vector<1x16xf32>
    %c2_592 = arith.constant 2 : index
    %c0_593 = arith.constant 0 : index
    %c0_594 = arith.constant 0 : index
    %713 = vector.load %arg12[%c2_592, %c0_593, %c0_594] : memref<3x16x32xf32, #tpu.memory_space<vmem>>, vector<1x16x32xf32>
    %714 = vector.shape_cast %713 : vector<1x16x32xf32> to vector<16x32xf32>
    %cst_595 = arith.constant dense<0.000000e+00> : vector<1x32xf32>
    %715 = tpu.matmul %712, %714, %cst_595 {dimension_numbers = #tpu.dot_dimension_numbers<[1], [0], [0], [1], [0, 0, 1, 1], [], []>} : vector<1x16xf32>, vector<16x32xf32>, vector<1x32xf32> -> vector<1x32xf32>
    %c2_596 = arith.constant 2 : index
    %c0_597 = arith.constant 0 : index
    %716 = vector.load %arg13[%c2_596, %c0_597] : memref<3x32xf32, #tpu.memory_space<vmem>>, vector<1x32xf32>
    %717 = arith.addf %715, %716 : vector<1x32xf32>
    %718 = arith.negf %717 : vector<1x32xf32>
    %719 = math.exp %718 : vector<1x32xf32>
    %cst_598 = arith.constant 1.000000e+00 : f32
    %720 = vector.broadcast %cst_598 : f32 to vector<1x32xf32>
    %721 = arith.addf %720, %719 : vector<1x32xf32>
    %722 = arith.divf %720, %721 : vector<1x32xf32>
    %723 = vector.broadcast %722 : vector<1x32xf32> to vector<16x32xf32>
    %724 = arith.mulf %701, %723 : vector<16x32xf32>
    %725 = arith.addf %724, %491 : vector<16x32xf32>
    %c0_599 = arith.constant 0 : index
    %c0_600 = arith.constant 0 : index
    %c0_601 = arith.constant 0 : index
    %726 = vector.load %arg14[%c0_599, %c0_600, %c0_601] : memref<3x32x96xf32, #tpu.memory_space<vmem>>, vector<1x32x96xf32>
    %727 = vector.shape_cast %726 : vector<1x32x96xf32> to vector<32x96xf32>
    %cst_602 = arith.constant dense<0.000000e+00> : vector<16x96xf32>
    %728 = tpu.matmul %263, %727, %cst_602 {dimension_numbers = #tpu.dot_dimension_numbers<[1], [0], [0], [1], [0, 0, 1, 1], [], []>} : vector<16x32xf32>, vector<32x96xf32>, vector<16x96xf32> -> vector<16x96xf32>
    %c1_603 = arith.constant 1 : index
    %c0_604 = arith.constant 0 : index
    %c0_605 = arith.constant 0 : index
    %729 = vector.load %arg14[%c1_603, %c0_604, %c0_605] : memref<3x32x96xf32, #tpu.memory_space<vmem>>, vector<1x32x96xf32>
    %730 = vector.shape_cast %729 : vector<1x32x96xf32> to vector<32x96xf32>
    %cst_606 = arith.constant dense<0.000000e+00> : vector<16x96xf32>
    %731 = tpu.matmul %491, %730, %cst_606 {dimension_numbers = #tpu.dot_dimension_numbers<[1], [0], [0], [1], [0, 0, 1, 1], [], []>} : vector<16x32xf32>, vector<32x96xf32>, vector<16x96xf32> -> vector<16x96xf32>
    %732 = arith.addf %728, %731 : vector<16x96xf32>
    %c2_607 = arith.constant 2 : index
    %c0_608 = arith.constant 0 : index
    %c0_609 = arith.constant 0 : index
    %733 = vector.load %arg14[%c2_607, %c0_608, %c0_609] : memref<3x32x96xf32, #tpu.memory_space<vmem>>, vector<1x32x96xf32>
    %734 = vector.shape_cast %733 : vector<1x32x96xf32> to vector<32x96xf32>
    %cst_610 = arith.constant dense<0.000000e+00> : vector<16x96xf32>
    %735 = tpu.matmul %725, %734, %cst_610 {dimension_numbers = #tpu.dot_dimension_numbers<[1], [0], [0], [1], [0, 0, 1, 1], [], []>} : vector<16x32xf32>, vector<32x96xf32>, vector<16x96xf32> -> vector<16x96xf32>
    %736 = arith.addf %732, %735 : vector<16x96xf32>
    %c0_611 = arith.constant 0 : index
    %c0_612 = arith.constant 0 : index
    %737 = vector.load %arg15[%c0_611, %c0_612] : memref<3x96xf32, #tpu.memory_space<vmem>>, vector<1x96xf32>
    %738 = vector.broadcast %737 : vector<1x96xf32> to vector<16x96xf32>
    %739 = arith.addf %736, %738 : vector<16x96xf32>
    %cst_613 = arith.constant 0.000000e+00 : f32
    %740 = vector.broadcast %cst_613 : f32 to vector<16x96xf32>
    %741 = arith.maximumf %739, %740 : vector<16x96xf32>
    %c1_614 = arith.constant 1 : index
    %c0_615 = arith.constant 0 : index
    %742 = vector.load %arg15[%c1_614, %c0_615] : memref<3x96xf32, #tpu.memory_space<vmem>>, vector<1x96xf32>
    %743 = vector.broadcast %742 : vector<1x96xf32> to vector<16x96xf32>
    %744 = arith.mulf %741, %743 : vector<16x96xf32>
    %c2_616 = arith.constant 2 : index
    %c0_617 = arith.constant 0 : index
    %745 = vector.load %arg15[%c2_616, %c0_617] : memref<3x96xf32, #tpu.memory_space<vmem>>, vector<1x96xf32>
    %746 = vector.broadcast %745 : vector<1x96xf32> to vector<16x96xf32>
    %747 = arith.addf %744, %746 : vector<16x96xf32>
    %cst_618 = arith.constant dense<0.000000e+00> : vector<96xf32>
    %748 = vector.multi_reduction <add>, %747, %cst_618 [0] : vector<16x96xf32> to vector<96xf32>
    %749 = vector.shape_cast %748 : vector<96xf32> to vector<1x96xf32>
    %cst_619 = arith.constant 6.250000e-02 : f32
    %750 = vector.broadcast %cst_619 : f32 to vector<1x96xf32>
    %751 = arith.mulf %749, %750 : vector<1x96xf32>
    %752 = vector.broadcast %751 : vector<1x96xf32> to vector<16x96xf32>
    %753 = arith.subf %747, %752 : vector<16x96xf32>
    %754 = arith.mulf %753, %753 : vector<16x96xf32>
    %cst_620 = arith.constant dense<0.000000e+00> : vector<96xf32>
    %755 = vector.multi_reduction <add>, %754, %cst_620 [0] : vector<16x96xf32> to vector<96xf32>
    %756 = vector.shape_cast %755 : vector<96xf32> to vector<1x96xf32>
    %cst_621 = arith.constant 6.250000e-02 : f32
    %757 = vector.broadcast %cst_621 : f32 to vector<1x96xf32>
    %758 = arith.mulf %756, %757 : vector<1x96xf32>
    %cst_622 = arith.constant 9.99999996E-13 : f32
    %759 = vector.broadcast %cst_622 : f32 to vector<1x96xf32>
    %760 = arith.maximumf %758, %759 : vector<1x96xf32>
    %761 = math.sqrt %760 : vector<1x96xf32>
    %c0_623 = arith.constant 0 : index
    %c0_624 = arith.constant 0 : index
    %c0_625 = arith.constant 0 : index
    %762 = vector.load %arg16[%c0_623, %c0_624, %c0_625] : memref<3x96x16xf32, #tpu.memory_space<vmem>>, vector<1x96x16xf32>
    %763 = vector.shape_cast %762 : vector<1x96x16xf32> to vector<96x16xf32>
    %cst_626 = arith.constant dense<0.000000e+00> : vector<16x16xf32>
    %764 = tpu.matmul %747, %763, %cst_626 {dimension_numbers = #tpu.dot_dimension_numbers<[1], [0], [0], [1], [0, 0, 1, 1], [], []>} : vector<16x96xf32>, vector<96x16xf32>, vector<16x16xf32> -> vector<16x16xf32>
    %c1_627 = arith.constant 1 : index
    %c0_628 = arith.constant 0 : index
    %c0_629 = arith.constant 0 : index
    %765 = vector.load %arg16[%c1_627, %c0_628, %c0_629] : memref<3x96x16xf32, #tpu.memory_space<vmem>>, vector<1x96x16xf32>
    %766 = vector.shape_cast %765 : vector<1x96x16xf32> to vector<96x16xf32>
    %cst_630 = arith.constant dense<0.000000e+00> : vector<1x16xf32>
    %767 = tpu.matmul %751, %766, %cst_630 {dimension_numbers = #tpu.dot_dimension_numbers<[1], [0], [0], [1], [0, 0, 1, 1], [], []>} : vector<1x96xf32>, vector<96x16xf32>, vector<1x16xf32> -> vector<1x16xf32>
    %768 = vector.broadcast %767 : vector<1x16xf32> to vector<16x16xf32>
    %769 = arith.addf %764, %768 : vector<16x16xf32>
    %c2_631 = arith.constant 2 : index
    %c0_632 = arith.constant 0 : index
    %c0_633 = arith.constant 0 : index
    %770 = vector.load %arg16[%c2_631, %c0_632, %c0_633] : memref<3x96x16xf32, #tpu.memory_space<vmem>>, vector<1x96x16xf32>
    %771 = vector.shape_cast %770 : vector<1x96x16xf32> to vector<96x16xf32>
    %cst_634 = arith.constant dense<0.000000e+00> : vector<1x16xf32>
    %772 = tpu.matmul %761, %771, %cst_634 {dimension_numbers = #tpu.dot_dimension_numbers<[1], [0], [0], [1], [0, 0, 1, 1], [], []>} : vector<1x96xf32>, vector<96x16xf32>, vector<1x16xf32> -> vector<1x16xf32>
    %773 = vector.broadcast %772 : vector<1x16xf32> to vector<16x16xf32>
    %774 = arith.addf %769, %773 : vector<16x16xf32>
    %c0_635 = arith.constant 0 : index
    %c0_636 = arith.constant 0 : index
    %775 = vector.load %arg17[%c0_635, %c0_636] : memref<3x16xf32, #tpu.memory_space<vmem>>, vector<1x16xf32>
    %776 = vector.broadcast %775 : vector<1x16xf32> to vector<16x16xf32>
    %777 = arith.addf %774, %776 : vector<16x16xf32>
    %cst_637 = arith.constant 0.000000e+00 : f32
    %778 = vector.broadcast %cst_637 : f32 to vector<16x16xf32>
    %779 = arith.maximumf %777, %778 : vector<16x16xf32>
    %c1_638 = arith.constant 1 : index
    %c0_639 = arith.constant 0 : index
    %780 = vector.load %arg17[%c1_638, %c0_639] : memref<3x16xf32, #tpu.memory_space<vmem>>, vector<1x16xf32>
    %781 = vector.broadcast %780 : vector<1x16xf32> to vector<16x16xf32>
    %782 = arith.mulf %779, %781 : vector<16x16xf32>
    %c2_640 = arith.constant 2 : index
    %c0_641 = arith.constant 0 : index
    %783 = vector.load %arg17[%c2_640, %c0_641] : memref<3x16xf32, #tpu.memory_space<vmem>>, vector<1x16xf32>
    %784 = vector.broadcast %783 : vector<1x16xf32> to vector<16x16xf32>
    %785 = arith.addf %782, %784 : vector<16x16xf32>
    %786 = math.tanh %785 : vector<16x16xf32>
    %c0_642 = arith.constant 0 : index
    %c0_643 = arith.constant 0 : index
    %787 = vector.load %arg18[%c0_642, %c0_643] : memref<16x96xf32, #tpu.memory_space<vmem>>, vector<16x96xf32>
    %cst_644 = arith.constant dense<0.000000e+00> : vector<16x96xf32>
    %788 = tpu.matmul %786, %787, %cst_644 {dimension_numbers = #tpu.dot_dimension_numbers<[1], [0], [0], [1], [0, 0, 1, 1], [], []>} : vector<16x16xf32>, vector<16x96xf32>, vector<16x96xf32> -> vector<16x96xf32>
    %c0_645 = arith.constant 0 : index
    %c0_646 = arith.constant 0 : index
    %789 = vector.load %arg19[%c0_645, %c0_646] : memref<1x96xf32, #tpu.memory_space<vmem>>, vector<1x96xf32>
    %790 = vector.broadcast %789 : vector<1x96xf32> to vector<16x96xf32>
    %791 = arith.addf %788, %790 : vector<16x96xf32>
    %cst_647 = arith.constant dense<0xFF800000> : vector<96xf32>
    %792 = vector.multi_reduction <maximumf>, %791, %cst_647 [0] : vector<16x96xf32> to vector<96xf32>
    %793 = vector.shape_cast %792 : vector<96xf32> to vector<1x96xf32>
    %794 = vector.broadcast %793 : vector<1x96xf32> to vector<16x96xf32>
    %795 = arith.subf %791, %794 : vector<16x96xf32>
    %796 = math.exp %795 : vector<16x96xf32>
    %cst_648 = arith.constant dense<0.000000e+00> : vector<96xf32>
    %797 = vector.multi_reduction <add>, %796, %cst_648 [0] : vector<16x96xf32> to vector<96xf32>
    %798 = vector.shape_cast %797 : vector<96xf32> to vector<1x96xf32>
    %799 = vector.broadcast %798 : vector<1x96xf32> to vector<16x96xf32>
    %800 = arith.divf %796, %799 : vector<16x96xf32>
    %801 = arith.mulf %800, %747 : vector<16x96xf32>
    %cst_649 = arith.constant dense<0.000000e+00> : vector<96xf32>
    %802 = vector.multi_reduction <add>, %801, %cst_649 [0] : vector<16x96xf32> to vector<96xf32>
    %803 = vector.shape_cast %802 : vector<96xf32> to vector<1x96xf32>
    %804 = vector.broadcast %803 : vector<1x96xf32> to vector<16x96xf32>
    %805 = arith.subf %747, %804 : vector<16x96xf32>
    %806 = arith.mulf %805, %805 : vector<16x96xf32>
    %807 = arith.mulf %800, %806 : vector<16x96xf32>
    %cst_650 = arith.constant dense<0.000000e+00> : vector<96xf32>
    %808 = vector.multi_reduction <add>, %807, %cst_650 [0] : vector<16x96xf32> to vector<96xf32>
    %809 = vector.shape_cast %808 : vector<96xf32> to vector<1x96xf32>
    %cst_651 = arith.constant 9.99999996E-13 : f32
    %810 = vector.broadcast %cst_651 : f32 to vector<1x96xf32>
    %811 = arith.maximumf %809, %810 : vector<1x96xf32>
    %812 = math.sqrt %811 : vector<1x96xf32>
    %c0_652 = arith.constant 0 : index
    %c0_653 = arith.constant 0 : index
    %c0_654 = arith.constant 0 : index
    %813 = vector.load %arg20[%c0_652, %c0_653, %c0_654] : memref<2x96x32xf32, #tpu.memory_space<vmem>>, vector<1x96x32xf32>
    %814 = vector.shape_cast %813 : vector<1x96x32xf32> to vector<96x32xf32>
    %cst_655 = arith.constant dense<0.000000e+00> : vector<1x32xf32>
    %815 = tpu.matmul %803, %814, %cst_655 {dimension_numbers = #tpu.dot_dimension_numbers<[1], [0], [0], [1], [0, 0, 1, 1], [], []>} : vector<1x96xf32>, vector<96x32xf32>, vector<1x32xf32> -> vector<1x32xf32>
    %c1_656 = arith.constant 1 : index
    %c0_657 = arith.constant 0 : index
    %c0_658 = arith.constant 0 : index
    %816 = vector.load %arg20[%c1_656, %c0_657, %c0_658] : memref<2x96x32xf32, #tpu.memory_space<vmem>>, vector<1x96x32xf32>
    %817 = vector.shape_cast %816 : vector<1x96x32xf32> to vector<96x32xf32>
    %cst_659 = arith.constant dense<0.000000e+00> : vector<1x32xf32>
    %818 = tpu.matmul %812, %817, %cst_659 {dimension_numbers = #tpu.dot_dimension_numbers<[1], [0], [0], [1], [0, 0, 1, 1], [], []>} : vector<1x96xf32>, vector<96x32xf32>, vector<1x32xf32> -> vector<1x32xf32>
    %819 = arith.addf %815, %818 : vector<1x32xf32>
    %c0_660 = arith.constant 0 : index
    %c0_661 = arith.constant 0 : index
    %820 = vector.load %arg21[%c0_660, %c0_661] : memref<1x32xf32, #tpu.memory_space<vmem>>, vector<1x32xf32>
    %821 = arith.addf %819, %820 : vector<1x32xf32>
    %c0_662 = arith.constant 0 : index
    %c0_663 = arith.constant 0 : index
    %c0_664 = arith.constant 0 : index
    %822 = vector.load %arg22[%c0_662, %c0_663, %c0_664] : memref<1x1x32xf32, #tpu.memory_space<vmem>>, vector<1x1x32xf32>
    %823 = vector.shape_cast %822 : vector<1x1x32xf32> to vector<1x32xf32>
    %824 = vector.shape_cast %821 : vector<1x32xf32> to vector<1x1x32xf32>
    tpu.vector_store %arg22[%c0_662, %c0_663, %c0_664], %824 {strides = array<i32>} : memref<1x1x32xf32, #tpu.memory_space<vmem>>, vector<1x1x32xf32>,
    return
  }
  func.func @transform_0(%arg0: i32) -> (i32, i32, i32) {
    %c0_i32 = arith.constant 0 : i32
    %c0_i32_0 = arith.constant 0 : i32
    %c0_i32_1 = arith.constant 0 : i32
    return %arg0, %c0_i32, %c0_i32_0 : i32, i32, i32
  }
  func.func @transform_1(%arg0: i32) -> (i32, i32, i32) {
    %c0_i32 = arith.constant 0 : i32
    %c0_i32_0 = arith.constant 0 : i32
    %c0_i32_1 = arith.constant 0 : i32
    %c0_i32_2 = arith.constant 0 : i32
    return %c0_i32, %c0_i32_0, %c0_i32_1 : i32, i32, i32
  }
  func.func @transform_2(%arg0: i32) -> (i32, i32) {
    %c0_i32 = arith.constant 0 : i32
    %c0_i32_0 = arith.constant 0 : i32
    %c0_i32_1 = arith.constant 0 : i32
    return %c0_i32, %c0_i32_0 : i32, i32
  }
  func.func @transform_3(%arg0: i32) -> (i32, i32, i32, i32) {
    %c0_i32 = arith.constant 0 : i32
    %c0_i32_0 = arith.constant 0 : i32
    %c0_i32_1 = arith.constant 0 : i32
    %c0_i32_2 = arith.constant 0 : i32
    %c0_i32_3 = arith.constant 0 : i32
    return %c0_i32, %c0_i32_0, %c0_i32_1, %c0_i32_2 : i32, i32, i32, i32
  }
  func.func @transform_4(%arg0: i32) -> (i32, i32, i32, i32) {
    %c0_i32 = arith.constant 0 : i32
    %c0_i32_0 = arith.constant 0 : i32
    %c0_i32_1 = arith.constant 0 : i32
    %c0_i32_2 = arith.constant 0 : i32
    %c0_i32_3 = arith.constant 0 : i32
    return %c0_i32, %c0_i32_0, %c0_i32_1, %c0_i32_2 : i32, i32, i32, i32
  }
  func.func @transform_5(%arg0: i32) -> (i32, i32, i32, i32) {
    %c0_i32 = arith.constant 0 : i32
    %c0_i32_0 = arith.constant 0 : i32
    %c0_i32_1 = arith.constant 0 : i32
    %c0_i32_2 = arith.constant 0 : i32
    %c0_i32_3 = arith.constant 0 : i32
    return %c0_i32, %c0_i32_0, %c0_i32_1, %c0_i32_2 : i32, i32, i32, i32
  }
  func.func @transform_6(%arg0: i32) -> (i32, i32, i32) {
    %c0_i32 = arith.constant 0 : i32
    %c0_i32_0 = arith.constant 0 : i32
    %c0_i32_1 = arith.constant 0 : i32
    %c0_i32_2 = arith.constant 0 : i32
    return %c0_i32, %c0_i32_0, %c0_i32_1 : i32, i32, i32
  }
  func.func @transform_7(%arg0: i32) -> (i32, i32, i32, i32) {
    %c0_i32 = arith.constant 0 : i32
    %c0_i32_0 = arith.constant 0 : i32
    %c0_i32_1 = arith.constant 0 : i32
    %c0_i32_2 = arith.constant 0 : i32
    %c0_i32_3 = arith.constant 0 : i32
    return %c0_i32, %c0_i32_0, %c0_i32_1, %c0_i32_2 : i32, i32, i32, i32
  }
  func.func @transform_8(%arg0: i32) -> (i32, i32, i32) {
    %c0_i32 = arith.constant 0 : i32
    %c0_i32_0 = arith.constant 0 : i32
    %c0_i32_1 = arith.constant 0 : i32
    %c0_i32_2 = arith.constant 0 : i32
    return %c0_i32, %c0_i32_0, %c0_i32_1 : i32, i32, i32
  }
  func.func @transform_9(%arg0: i32) -> (i32, i32, i32) {
    %c0_i32 = arith.constant 0 : i32
    %c0_i32_0 = arith.constant 0 : i32
    %c0_i32_1 = arith.constant 0 : i32
    %c0_i32_2 = arith.constant 0 : i32
    return %c0_i32, %c0_i32_0, %c0_i32_1 : i32, i32, i32
  }
  func.func @transform_10(%arg0: i32) -> (i32, i32) {
    %c0_i32 = arith.constant 0 : i32
    %c0_i32_0 = arith.constant 0 : i32
    %c0_i32_1 = arith.constant 0 : i32
    return %c0_i32, %c0_i32_0 : i32, i32
  }
  func.func @transform_11(%arg0: i32) -> (i32, i32, i32) {
    %c0_i32 = arith.constant 0 : i32
    %c0_i32_0 = arith.constant 0 : i32
    %c0_i32_1 = arith.constant 0 : i32
    %c0_i32_2 = arith.constant 0 : i32
    return %c0_i32, %c0_i32_0, %c0_i32_1 : i32, i32, i32
  }
  func.func @transform_12(%arg0: i32) -> (i32, i32) {
    %c0_i32 = arith.constant 0 : i32
    %c0_i32_0 = arith.constant 0 : i32
    %c0_i32_1 = arith.constant 0 : i32
    return %c0_i32, %c0_i32_0 : i32, i32
  }
  func.func @transform_13(%arg0: i32) -> (i32, i32, i32) {
    %c0_i32 = arith.constant 0 : i32
    %c0_i32_0 = arith.constant 0 : i32
    %c0_i32_1 = arith.constant 0 : i32
    %c0_i32_2 = arith.constant 0 : i32
    return %c0_i32, %c0_i32_0, %c0_i32_1 : i32, i32, i32
  }
  func.func @transform_14(%arg0: i32) -> (i32, i32) {
    %c0_i32 = arith.constant 0 : i32
    %c0_i32_0 = arith.constant 0 : i32
    %c0_i32_1 = arith.constant 0 : i32
    return %c0_i32, %c0_i32_0 : i32, i32
  }
  func.func @transform_15(%arg0: i32) -> (i32, i32, i32) {
    %c0_i32 = arith.constant 0 : i32
    %c0_i32_0 = arith.constant 0 : i32
    %c0_i32_1 = arith.constant 0 : i32
    %c0_i32_2 = arith.constant 0 : i32
    return %c0_i32, %c0_i32_0, %c0_i32_1 : i32, i32, i32
  }
  func.func @transform_16(%arg0: i32) -> (i32, i32) {
    %c0_i32 = arith.constant 0 : i32
    %c0_i32_0 = arith.constant 0 : i32
    %c0_i32_1 = arith.constant 0 : i32
    return %c0_i32, %c0_i32_0 : i32, i32
  }
  func.func @transform_17(%arg0: i32) -> (i32, i32) {
    %c0_i32 = arith.constant 0 : i32
    %c0_i32_0 = arith.constant 0 : i32
    %c0_i32_1 = arith.constant 0 : i32
    return %c0_i32, %c0_i32_0 : i32, i32
  }
  func.func @transform_18(%arg0: i32) -> (i32, i32) {
    %c0_i32 = arith.constant 0 : i32
    %c0_i32_0 = arith.constant 0 : i32
    %c0_i32_1 = arith.constant 0 : i32
    return %c0_i32, %c0_i32_0 : i32, i32
  }
  func.func @transform_19(%arg0: i32) -> (i32, i32, i32) {
    %c0_i32 = arith.constant 0 : i32
    %c0_i32_0 = arith.constant 0 : i32
    %c0_i32_1 = arith.constant 0 : i32
    %c0_i32_2 = arith.constant 0 : i32
    return %c0_i32, %c0_i32_0, %c0_i32_1 : i32, i32, i32
  }
  func.func @transform_20(%arg0: i32) -> (i32, i32) {
    %c0_i32 = arith.constant 0 : i32
    %c0_i32_0 = arith.constant 0 : i32
    %c0_i32_1 = arith.constant 0 : i32
    return %c0_i32, %c0_i32_0 : i32, i32
  }
  func.func @transform_21(%arg0: i32) -> (i32, i32, i32) {
    %c0_i32 = arith.constant 0 : i32
    %c0_i32_0 = arith.constant 0 : i32
    %c0_i32_1 = arith.constant 0 : i32
    return %arg0, %c0_i32, %c0_i32_0 : i32, i32, i32
  }
}

</mosaic_0001>

<llo_original>
// kernel: ecapa_forward_pallas.1
$region0: #{ecapa_forward_pallas.1}
  #allocation0 [shape = 'u32[]', space=smem, size = 0x4, offset = 0x4, fixed_abs, tag = 'smem constant byte address 0x4 - core index']
  #allocation1 [shape = 'u32[72,128]{1,0:T(1,128)}', space=vmem, size = 0x9000, scoped, tag = 'internal scratch']
  %s0 = inlined_call_operand.vmem [shape: f32[2,16,16], index: 0, kind: input, shape index: {}]
  %s1 = inlined_call_operand.vmem [shape: f32[5,16,32], index: 1, kind: input, shape index: {}]
  %s2 = inlined_call_operand.vmem [shape: f32[3,32], index: 2, kind: input, shape index: {}]
  %s3 = inlined_call_operand.vmem [shape: f32[3,4,32,8], index: 3, kind: input, shape index: {}]
  %s4 = inlined_call_operand.vmem [shape: f32[3,3,4,8], index: 4, kind: input, shape index: {}]
  %s5 = inlined_call_operand.vmem [shape: f32[9,3,8,8], index: 5, kind: input, shape index: {}]
  %s6 = inlined_call_operand.vmem [shape: f32[9,3,8], index: 6, kind: input, shape index: {}]
  %s7 = inlined_call_operand.vmem [shape: f32[3,4,8,32], index: 7, kind: input, shape index: {}]
  %s8 = inlined_call_operand.vmem [shape: f32[3,3,32], index: 8, kind: input, shape index: {}]
  %s9 = inlined_call_operand.vmem [shape: f32[3,32,16], index: 9, kind: input, shape index: {}]
  %s10 = inlined_call_operand.vmem [shape: f32[3,16], index: 10, kind: input, shape index: {}]
  %s11 = inlined_call_operand.vmem [shape: f32[3,16,32], index: 11, kind: input, shape index: {}]
  %s12 = inlined_call_operand.vmem [shape: f32[3,32], index: 12, kind: input, shape index: {}]
  %s13 = inlined_call_operand.vmem [shape: f32[3,32,96], index: 13, kind: input, shape index: {}]
  %s14 = inlined_call_operand.vmem [shape: f32[3,96], index: 14, kind: input, shape index: {}]
  %s15 = inlined_call_operand.vmem [shape: f32[3,96,16], index: 15, kind: input, shape index: {}]
  %s16 = inlined_call_operand.vmem [shape: f32[3,16], index: 16, kind: input, shape index: {}]
  %s17 = inlined_call_operand.vmem [shape: f32[16,96], index: 17, kind: input, shape index: {}]
  %s18 = inlined_call_operand.vmem [shape: f32[1,96], index: 18, kind: input, shape index: {}]
  %s19 = inlined_call_operand.vmem [shape: f32[2,96,32], index: 19, kind: input, shape index: {}]
  %s20 = inlined_call_operand.vmem [shape: f32[1,32], index: 20, kind: input, shape index: {}]
  %s21 = inlined_call_operand.hbm [shape: f32[2,1,32], index: 21, kind: output, shape index: {}]
  %s22 = sld [smem:[#allocation0]]
  $region117: #{ecapa_forward_pallas.1} parent=0
    _
  %s24 = ssub.s32 1, %s22
  %s25 = scalar_select 0, %s24, %s22
  $region1: #{ecapa_forward_pallas.1} parent=0
    #allocation2 [shape = 'u8[1024]{0}', space=vmem, size = 0x400, scoped, tag = 'output window, operand 0']
    #allocation3 [shape = 's32[2]{0}', space=sflag, size = 0x8, scoped, tag = 'scoped memory for ecapa_forward_pallas.1']
    %26 = vsyncpa [#allocation3], 0
    %s27 = scalar_lea.sflag [#allocation3], 1
    %28 = vsyncpa %s27, 0
    loop: start=0, step=1, limit=4
    $region2: #{ecapa_forward_pallas.1} parent=1 // loop_pre_header
      _
    $region3: #{ecapa_forward_pallas.1} parent=1 // loop_header
      %s30 = sphi 0, %s34
      %p31 = scmp.ge.s32.totalorder %s30, 4
      %s40 = sphi 0, %s42
      %s43 = sphi 0, %s40
      %s44 = sphi 0, %s43
      %s60 = sphi 0, %s44
      %s64 = sphi 0, %s64
      %s66 = sphi 0, %s64
      %s67 = sphi 0, %s66
      %s81 = sphi 0, %s67
      %s85 = sphi 0, %s85
      %s87 = sphi 0, %s85
      %s88 = sphi 0, %s87
      %s102 = sphi 0, %s88
      %s106 = sphi 0, %s106
      %s108 = sphi 0, %s106
      %s109 = sphi 0, %s108
      %s123 = sphi 0, %s109
      %s127 = sphi 0, %s127
      %s129 = sphi 0, %s127
      %s130 = sphi 0, %s129
      %s144 = sphi 0, %s130
      %s148 = sphi 0, %s148
      %s150 = sphi 0, %s148
      %s151 = sphi 0, %s150
      %s165 = sphi 0, %s151
      %s169 = sphi 0, %s169
      %s171 = sphi 0, %s169
      %s172 = sphi 0, %s171
      %s186 = sphi 0, %s172
      %s190 = sphi 0, %s190
      %s192 = sphi 0, %s190
      %s193 = sphi 0, %s192
      %s207 = sphi 0, %s193
      %s211 = sphi 0, %s211
      %s213 = sphi 0, %s211
      %s214 = sphi 0, %s213
      %s228 = sphi 0, %s214
      %s232 = sphi 0, %s232
      %s234 = sphi 0, %s232
      %s235 = sphi 0, %s234
      %s249 = sphi 0, %s235
      %s253 = sphi 0, %s253
      %s255 = sphi 0, %s253
      %s256 = sphi 0, %s255
      %s270 = sphi 0, %s256
      %s274 = sphi 0, %s274
      %s276 = sphi 0, %s274
      %s277 = sphi 0, %s276
      %s291 = sphi 0, %s277
      %s295 = sphi 0, %s295
      %s297 = sphi 0, %s295
      %s298 = sphi 0, %s297
      %s312 = sphi 0, %s298
      %s316 = sphi 0, %s316
      %s318 = sphi 0, %s316
      %s319 = sphi 0, %s318
      %s333 = sphi 0, %s319
      %s337 = sphi 0, %s337
      %s339 = sphi 0, %s337
      %s340 = sphi 0, %s339
      %s354 = sphi 0, %s340
      %s358 = sphi 0, %s358
      %s360 = sphi 0, %s358
      %s361 = sphi 0, %s360
      %s375 = sphi 0, %s361
      %s379 = sphi 0, %s379
      %s381 = sphi 0, %s379
      %s382 = sphi 0, %s381
      %s396 = sphi 0, %s382
      %s400 = sphi 0, %s400
      %s402 = sphi 0, %s400
      %s403 = sphi 0, %s402
      %s417 = sphi 0, %s403
      %s421 = sphi 0, %s421
      %s423 = sphi 0, %s421
      %s424 = sphi 0, %s423
      %s438 = sphi 0, %s424
      %s442 = sphi 0, %s442
      %s444 = sphi 0, %s442
      %s445 = sphi 0, %s444
      %s459 = sphi 0, %s445
      %s463 = sphi 0, %s463
      %s465 = sphi 0, %s463
      %s466 = sphi 0, %s465
      %s480 = sphi 0, %s466
      %s486 = sphi 0, %s488
      %s489 = sphi 0, %s486
      %s490 = sphi 0, %s489
      %s506 = sphi 0, %s490
    $region4: #{ecapa_forward_pallas.1} parent=1 // loop_header_branch
      %33 = sbr.rel (%p31) target = $region8
    $region5: #{ecapa_forward_pallas.1} parent=1 // loop_body
      %s35 = ssub.s32 %s30, 1
      %s36 = ssub.s32 %s30, 2
      %s37 = sadd.s32 %s30, 1
      %s38 = ssub.s32 %s30, %s37
      %p39 = scmp.eq.s32.totalorder %s38, 0
      %s41 = sadd.s32 %s40, 1
      %s42 = scalar_select %p39, %s40, %s41
      %p45 = pneg %p39
      %p46 = scmp.eq.s32.totalorder %s30, 1
      %p47 = por %p45, %p46
      %p48 = scmp.ne.s32.totalorder %s40, %s43
      %p49 = scmp.eq.s32.totalorder %s30, 0
      %p50 = por %p48, %p49
      %p51 = scmp.ne.s32.totalorder %s40, %s43
      %p52 = scmp.eq.s32.totalorder %s35, 1
      %p53 = por %p51, %p52
      %p54 = scmp.ne.s32.totalorder %s43, %s44
      %p55 = scmp.eq.s32.totalorder %s35, 0
      %p56 = por %p54, %p55
      %p57 = scmp.ne.s32.totalorder %s43, %s44
      %p58 = scmp.eq.s32.totalorder %s36, 1
      %p59 = por %p57, %p58
      %p61 = scmp.ne.s32.totalorder %s44, %s60
      %p62 = scmp.eq.s32.totalorder %s36, 0
      %p63 = por %p61, %p62
      %s65 = sadd.s32 %s64, 1
      %p68 = scmp.eq.s32.totalorder %s30, 1
      %p69 = scmp.ne.s32.totalorder %s64, %s66
      %p70 = scmp.eq.s32.totalorder %s30, 0
      %p71 = por %p69, %p70
      %p72 = scmp.ne.s32.totalorder %s64, %s66
      %p73 = scmp.eq.s32.totalorder %s35, 1
      %p74 = por %p72, %p73
      %p75 = scmp.ne.s32.totalorder %s66, %s67
      %p76 = scmp.eq.s32.totalorder %s35, 0
      %p77 = por %p75, %p76
      %p78 = scmp.ne.s32.totalorder %s66, %s67
      %p79 = scmp.eq.s32.totalorder %s36, 1
      %p80 = por %p78, %p79
      %p82 = scmp.ne.s32.totalorder %s67, %s81
      %p83 = scmp.eq.s32.totalorder %s36, 0
      %p84 = por %p82, %p83
      %s86 = sadd.s32 %s85, 1
      %p89 = scmp.eq.s32.totalorder %s30, 1
      %p90 = scmp.ne.s32.totalorder %s85, %s87
      %p91 = scmp.eq.s32.totalorder %s30, 0
      %p92 = por %p90, %p91
      %p93 = scmp.ne.s32.totalorder %s85, %s87
      %p94 = scmp.eq.s32.totalorder %s35, 1
      %p95 = por %p93, %p94
      %p96 = scmp.ne.s32.totalorder %s87, %s88
      %p97 = scmp.eq.s32.totalorder %s35, 0
      %p98 = por %p96, %p97
      %p99 = scmp.ne.s32.totalorder %s87, %s88
      %p100 = scmp.eq.s32.totalorder %s36, 1
      %p101 = por %p99, %p100
      %p103 = scmp.ne.s32.totalorder %s88, %s102
      %p104 = scmp.eq.s32.totalorder %s36, 0
      %p105 = por %p103, %p104
      %s107 = sadd.s32 %s106, 1
      %p110 = scmp.eq.s32.totalorder %s30, 1
      %p111 = scmp.ne.s32.totalorder %s106, %s108
      %p112 = scmp.eq.s32.totalorder %s30, 0
      %p113 = por %p111, %p112
      %p114 = scmp.ne.s32.totalorder %s106, %s108
      %p115 = scmp.eq.s32.totalorder %s35, 1
      %p116 = por %p114, %p115
      %p117 = scmp.ne.s32.totalorder %s108, %s109
      %p118 = scmp.eq.s32.totalorder %s35, 0
      %p119 = por %p117, %p118
      %p120 = scmp.ne.s32.totalorder %s108, %s109
      %p121 = scmp.eq.s32.totalorder %s36, 1
      %p122 = por %p120, %p121
      %p124 = scmp.ne.s32.totalorder %s109, %s123
      %p125 = scmp.eq.s32.totalorder %s36, 0
      %p126 = por %p124, %p125
      %s128 = sadd.s32 %s127, 1
      %p131 = scmp.eq.s32.totalorder %s30, 1
      %p132 = scmp.ne.s32.totalorder %s127, %s129
      %p133 = scmp.eq.s32.totalorder %s30, 0
      %p134 = por %p132, %p133
      %p135 = scmp.ne.s32.totalorder %s127, %s129
      %p136 = scmp.eq.s32.totalorder %s35, 1
      %p137 = por %p135, %p136
      %p138 = scmp.ne.s32.totalorder %s129, %s130
      %p139 = scmp.eq.s32.totalorder %s35, 0
      %p140 = por %p138, %p139
      %p141 = scmp.ne.s32.totalorder %s129, %s130
      %p142 = scmp.eq.s32.totalorder %s36, 1
      %p143 = por %p141, %p142
      %p145 = scmp.ne.s32.totalorder %s130, %s144
      %p146 = scmp.eq.s32.totalorder %s36, 0
      %p147 = por %p145, %p146
      %s149 = sadd.s32 %s148, 1
      %p152 = scmp.eq.s32.totalorder %s30, 1
      %p153 = scmp.ne.s32.totalorder %s148, %s150
      %p154 = scmp.eq.s32.totalorder %s30, 0
      %p155 = por %p153, %p154
      %p156 = scmp.ne.s32.totalorder %s148, %s150
      %p157 = scmp.eq.s32.totalorder %s35, 1
      %p158 = por %p156, %p157
      %p159 = scmp.ne.s32.totalorder %s150, %s151
      %p160 = scmp.eq.s32.totalorder %s35, 0
      %p161 = por %p159, %p160
      %p162 = scmp.ne.s32.totalorder %s150, %s151
      %p163 = scmp.eq.s32.totalorder %s36, 1
      %p164 = por %p162, %p163
      %p166 = scmp.ne.s32.totalorder %s151, %s165
      %p167 = scmp.eq.s32.totalorder %s36, 0
      %p168 = por %p166, %p167
      %s170 = sadd.s32 %s169, 1
      %p173 = scmp.eq.s32.totalorder %s30, 1
      %p174 = scmp.ne.s32.totalorder %s169, %s171
      %p175 = scmp.eq.s32.totalorder %s30, 0
      %p176 = por %p174, %p175
      %p177 = scmp.ne.s32.totalorder %s169, %s171
      %p178 = scmp.eq.s32.totalorder %s35, 1
      %p179 = por %p177, %p178
      %p180 = scmp.ne.s32.totalorder %s171, %s172
      %p181 = scmp.eq.s32.totalorder %s35, 0
      %p182 = por %p180, %p181
      %p183 = scmp.ne.s32.totalorder %s171, %s172
      %p184 = scmp.eq.s32.totalorder %s36, 1
      %p185 = por %p183, %p184
      %p187 = scmp.ne.s32.totalorder %s172, %s186
      %p188 = scmp.eq.s32.totalorder %s36, 0
      %p189 = por %p187, %p188
      %s191 = sadd.s32 %s190, 1
      %p194 = scmp.eq.s32.totalorder %s30, 1
      %p195 = scmp.ne.s32.totalorder %s190, %s192
      %p196 = scmp.eq.s32.totalorder %s30, 0
      %p197 = por %p195, %p196
      %p198 = scmp.ne.s32.totalorder %s190, %s192
      %p199 = scmp.eq.s32.totalorder %s35, 1
      %p200 = por %p198, %p199
      %p201 = scmp.ne.s32.totalorder %s192, %s193
      %p202 = scmp.eq.s32.totalorder %s35, 0
      %p203 = por %p201, %p202
      %p204 = scmp.ne.s32.totalorder %s192, %s193
      %p205 = scmp.eq.s32.totalorder %s36, 1
      %p206 = por %p204, %p205
      %p208 = scmp.ne.s32.totalorder %s193, %s207
      %p209 = scmp.eq.s32.totalorder %s36, 0
      %p210 = por %p208, %p209
      %s212 = sadd.s32 %s211, 1
      %p215 = scmp.eq.s32.totalorder %s30, 1
      %p216 = scmp.ne.s32.totalorder %s211, %s213
      %p217 = scmp.eq.s32.totalorder %s30, 0
      %p218 = por %p216, %p217
      %p219 = scmp.ne.s32.totalorder %s211, %s213
      %p220 = scmp.eq.s32.totalorder %s35, 1
      %p221 = por %p219, %p220
      %p222 = scmp.ne.s32.totalorder %s213, %s214
      %p223 = scmp.eq.s32.totalorder %s35, 0
      %p224 = por %p222, %p223
      %p225 = scmp.ne.s32.totalorder %s213, %s214
      %p226 = scmp.eq.s32.totalorder %s36, 1
      %p227 = por %p225, %p226
      %p229 = scmp.ne.s32.totalorder %s214, %s228
      %p230 = scmp.eq.s32.totalorder %s36, 0
      %p231 = por %p229, %p230
      %s233 = sadd.s32 %s232, 1
      %p236 = scmp.eq.s32.totalorder %s30, 1
      %p237 = scmp.ne.s32.totalorder %s232, %s234
      %p238 = scmp.eq.s32.totalorder %s30, 0
      %p239 = por %p237, %p238
      %p240 = scmp.ne.s32.totalorder %s232, %s234
      %p241 = scmp.eq.s32.totalorder %s35, 1
      %p242 = por %p240, %p241
      %p243 = scmp.ne.s32.totalorder %s234, %s235
      %p244 = scmp.eq.s32.totalorder %s35, 0
      %p245 = por %p243, %p244
      %p246 = scmp.ne.s32.totalorder %s234, %s235
      %p247 = scmp.eq.s32.totalorder %s36, 1
      %p248 = por %p246, %p247
      %p250 = scmp.ne.s32.totalorder %s235, %s249
      %p251 = scmp.eq.s32.totalorder %s36, 0
      %p252 = por %p250, %p251
      %s254 = sadd.s32 %s253, 1
      %p257 = scmp.eq.s32.totalorder %s30, 1
      %p258 = scmp.ne.s32.totalorder %s253, %s255
      %p259 = scmp.eq.s32.totalorder %s30, 0
      %p260 = por %p258, %p259
      %p261 = scmp.ne.s32.totalorder %s253, %s255
      %p262 = scmp.eq.s32.totalorder %s35, 1
      %p263 = por %p261, %p262
      %p264 = scmp.ne.s32.totalorder %s255, %s256
      %p265 = scmp.eq.s32.totalorder %s35, 0
      %p266 = por %p264, %p265
      %p267 = scmp.ne.s32.totalorder %s255, %s256
      %p268 = scmp.eq.s32.totalorder %s36, 1
      %p269 = por %p267, %p268
      %p271 = scmp.ne.s32.totalorder %s256, %s270
      %p272 = scmp.eq.s32.totalorder %s36, 0
      %p273 = por %p271, %p272
      %s275 = sadd.s32 %s274, 1
      %p278 = scmp.eq.s32.totalorder %s30, 1
      %p279 = scmp.ne.s32.totalorder %s274, %s276
      %p280 = scmp.eq.s32.totalorder %s30, 0
      %p281 = por %p279, %p280
      %p282 = scmp.ne.s32.totalorder %s274, %s276
      %p283 = scmp.eq.s32.totalorder %s35, 1
      %p284 = por %p282, %p283
      %p285 = scmp.ne.s32.totalorder %s276, %s277
      %p286 = scmp.eq.s32.totalorder %s35, 0
      %p287 = por %p285, %p286
      %p288 = scmp.ne.s32.totalorder %s276, %s277
      %p289 = scmp.eq.s32.totalorder %s36, 1
      %p290 = por %p288, %p289
      %p292 = scmp.ne.s32.totalorder %s277, %s291
      %p293 = scmp.eq.s32.totalorder %s36, 0
      %p294 = por %p292, %p293
      %s296 = sadd.s32 %s295, 1
      %p299 = scmp.eq.s32.totalorder %s30, 1
      %p300 = scmp.ne.s32.totalorder %s295, %s297
      %p301 = scmp.eq.s32.totalorder %s30, 0
      %p302 = por %p300, %p301
      %p303 = scmp.ne.s32.totalorder %s295, %s297
      %p304 = scmp.eq.s32.totalorder %s35, 1
      %p305 = por %p303, %p304
      %p306 = scmp.ne.s32.totalorder %s297, %s298
      %p307 = scmp.eq.s32.totalorder %s35, 0
      %p308 = por %p306, %p307
      %p309 = scmp.ne.s32.totalorder %s297, %s298
      %p310 = scmp.eq.s32.totalorder %s36, 1
      %p311 = por %p309, %p310
      %p313 = scmp.ne.s32.totalorder %s298, %s312
      %p314 = scmp.eq.s32.totalorder %s36, 0
      %p315 = por %p313, %p314
      %s317 = sadd.s32 %s316, 1
      %p320 = scmp.eq.s32.totalorder %s30, 1
      %p321 = scmp.ne.s32.totalorder %s316, %s318
      %p322 = scmp.eq.s32.totalorder %s30, 0
      %p323 = por %p321, %p322
      %p324 = scmp.ne.s32.totalorder %s316, %s318
      %p325 = scmp.eq.s32.totalorder %s35, 1
      %p326 = por %p324, %p325
      %p327 = scmp.ne.s32.totalorder %s318, %s319
      %p328 = scmp.eq.s32.totalorder %s35, 0
      %p329 = por %p327, %p328
      %p330 = scmp.ne.s32.totalorder %s318, %s319
      %p331 = scmp.eq.s32.totalorder %s36, 1
      %p332 = por %p330, %p331
      %p334 = scmp.ne.s32.totalorder %s319, %s333
      %p335 = scmp.eq.s32.totalorder %s36, 0
      %p336 = por %p334, %p335
      %s338 = sadd.s32 %s337, 1
      %p341 = scmp.eq.s32.totalorder %s30, 1
      %p342 = scmp.ne.s32.totalorder %s337, %s339
      %p343 = scmp.eq.s32.totalorder %s30, 0
      %p344 = por %p342, %p343
      %p345 = scmp.ne.s32.totalorder %s337, %s339
      %p346 = scmp.eq.s32.totalorder %s35, 1
      %p347 = por %p345, %p346
      %p348 = scmp.ne.s32.totalorder %s339, %s340
      %p349 = scmp.eq.s32.totalorder %s35, 0
      %p350 = por %p348, %p349
      %p351 = scmp.ne.s32.totalorder %s339, %s340
      %p352 = scmp.eq.s32.totalorder %s36, 1
      %p353 = por %p351, %p352
      %p355 = scmp.ne.s32.totalorder %s340, %s354
      %p356 = scmp.eq.s32.totalorder %s36, 0
      %p357 = por %p355, %p356
      %s359 = sadd.s32 %s358, 1
      %p362 = scmp.eq.s32.totalorder %s30, 1
      %p363 = scmp.ne.s32.totalorder %s358, %s360
      %p364 = scmp.eq.s32.totalorder %s30, 0
      %p365 = por %p363, %p364
      %p366 = scmp.ne.s32.totalorder %s358, %s360
      %p367 = scmp.eq.s32.totalorder %s35, 1
      %p368 = por %p366, %p367
      %p369 = scmp.ne.s32.totalorder %s360, %s361
      %p370 = scmp.eq.s32.totalorder %s35, 0
      %p371 = por %p369, %p370
      %p372 = scmp.ne.s32.totalorder %s360, %s361
      %p373 = scmp.eq.s32.totalorder %s36, 1
      %p374 = por %p372, %p373
      %p376 = scmp.ne.s32.totalorder %s361, %s375
      %p377 = scmp.eq.s32.totalorder %s36, 0
      %p378 = por %p376, %p377
      %s380 = sadd.s32 %s379, 1
      %p383 = scmp.eq.s32.totalorder %s30, 1
      %p384 = scmp.ne.s32.totalorder %s379, %s381
      %p385 = scmp.eq.s32.totalorder %s30, 0
      %p386 = por %p384, %p385
      %p387 = scmp.ne.s32.totalorder %s379, %s381
      %p388 = scmp.eq.s32.totalorder %s35, 1
      %p389 = por %p387, %p388
      %p390 = scmp.ne.s32.totalorder %s381, %s382
      %p391 = scmp.eq.s32.totalorder %s35, 0
      %p392 = por %p390, %p391
      %p393 = scmp.ne.s32.totalorder %s381, %s382
      %p394 = scmp.eq.s32.totalorder %s36, 1
      %p395 = por %p393, %p394
      %p397 = scmp.ne.s32.totalorder %s382, %s396
      %p398 = scmp.eq.s32.totalorder %s36, 0
      %p399 = por %p397, %p398
      %s401 = sadd.s32 %s400, 1
      %p404 = scmp.eq.s32.totalorder %s30, 1
      %p405 = scmp.ne.s32.totalorder %s400, %s402
      %p406 = scmp.eq.s32.totalorder %s30, 0
      %p407 = por %p405, %p406
      %p408 = scmp.ne.s32.totalorder %s400, %s402
      %p409 = scmp.eq.s32.totalorder %s35, 1
      %p410 = por %p408, %p409
      %p411 = scmp.ne.s32.totalorder %s402, %s403
      %p412 = scmp.eq.s32.totalorder %s35, 0
      %p413 = por %p411, %p412
      %p414 = scmp.ne.s32.totalorder %s402, %s403
      %p415 = scmp.eq.s32.totalorder %s36, 1
      %p416 = por %p414, %p415
      %p418 = scmp.ne.s32.totalorder %s403, %s417
      %p419 = scmp.eq.s32.totalorder %s36, 0
      %p420 = por %p418, %p419
      %s422 = sadd.s32 %s421, 1
      %p425 = scmp.eq.s32.totalorder %s30, 1
      %p426 = scmp.ne.s32.totalorder %s421, %s423
      %p427 = scmp.eq.s32.totalorder %s30, 0
      %p428 = por %p426, %p427
      %p429 = scmp.ne.s32.totalorder %s421, %s423
      %p430 = scmp.eq.s32.totalorder %s35, 1
      %p431 = por %p429, %p430
      %p432 = scmp.ne.s32.totalorder %s423, %s424
      %p433 = scmp.eq.s32.totalorder %s35, 0
      %p434 = por %p432, %p433
      %p435 = scmp.ne.s32.totalorder %s423, %s424
      %p436 = scmp.eq.s32.totalorder %s36, 1
      %p437 = por %p435, %p436
      %p439 = scmp.ne.s32.totalorder %s424, %s438
      %p440 = scmp.eq.s32.totalorder %s36, 0
      %p441 = por %p439, %p440
      %s443 = sadd.s32 %s442, 1
      %p446 = scmp.eq.s32.totalorder %s30, 1
      %p447 = scmp.ne.s32.totalorder %s442, %s444
      %p448 = scmp.eq.s32.totalorder %s30, 0
      %p449 = por %p447, %p448
      %p450 = scmp.ne.s32.totalorder %s442, %s444
      %p451 = scmp.eq.s32.totalorder %s35, 1
      %p452 = por %p450, %p451
      %p453 = scmp.ne.s32.totalorder %s444, %s445
      %p454 = scmp.eq.s32.totalorder %s35, 0
      %p455 = por %p453, %p454
      %p456 = scmp.ne.s32.totalorder %s444, %s445
      %p457 = scmp.eq.s32.totalorder %s36, 1
      %p458 = por %p456, %p457
      %p460 = scmp.ne.s32.totalorder %s445, %s459
      %p461 = scmp.eq.s32.totalorder %s36, 0
      %p462 = por %p460, %p461
      %s464 = sadd.s32 %s463, 1
      %p467 = scmp.eq.s32.totalorder %s30, 1
      %p468 = scmp.ne.s32.totalorder %s463, %s465
      %p469 = scmp.eq.s32.totalorder %s30, 0
      %p470 = por %p468, %p469
      %p471 = scmp.ne.s32.totalorder %s463, %s465
      %p472 = scmp.eq.s32.totalorder %s35, 1
      %p473 = por %p471, %p472
      %p474 = scmp.ne.s32.totalorder %s465, %s466
      %p475 = scmp.eq.s32.totalorder %s35, 0
      %p476 = por %p474, %p475
      %p477 = scmp.ne.s32.totalorder %s465, %s466
      %p478 = scmp.eq.s32.totalorder %s36, 1
      %p479 = por %p477, %p478
      %p481 = scmp.ne.s32.totalorder %s466, %s480
      %p482 = scmp.eq.s32.totalorder %s36, 0
      %p483 = por %p481, %p482
      %s484 = ssub.s32 %s30, %s37
      %p485 = scmp.eq.s32.totalorder %s484, 0
      %s487 = sadd.s32 %s486, 1
      %s488 = scalar_select %p485, %s486, %s487
      %p491 = pneg %p485
      %p492 = scmp.eq.s32.totalorder %s30, 1
      %p493 = por %p491, %p492
      %p494 = scmp.ne.s32.totalorder %s486, %s489
      %p495 = scmp.eq.s32.totalorder %s30, 0
      %p496 = por %p494, %p495
      %p497 = scmp.ne.s32.totalorder %s486, %s489
      %p498 = scmp.eq.s32.totalorder %s35, 1
      %p499 = por %p497, %p498
      %p500 = scmp.ne.s32.totalorder %s489, %s490
      %p501 = scmp.eq.s32.totalorder %s35, 0
      %p502 = por %p500, %p501
      %p503 = scmp.ne.s32.totalorder %s489, %s490
      %p504 = scmp.eq.s32.totalorder %s36, 1
      %p505 = por %p503, %p504
      %p507 = scmp.ne.s32.totalorder %s490, %s506
      %p508 = scmp.eq.s32.totalorder %s36, 0
      %p509 = por %p507, %p508
      %p510 = scmp.le.s32.totalorder 1, %s30
      %p511 = scmp.lt.s32.totalorder %s30, 3
      %p512 = pnand %p510, %p511
      %p513 = pneg %p512
      // Predicated region
      $region9: #{ecapa_forward_pallas.1} parent=5 // pred_check
        _
      $region10: #{ecapa_forward_pallas.1} parent=5 // pred_check_branch
        %515 = sbr.rel (%p512) target = $region12
      $region11: #{ecapa_forward_pallas.1} parent=5 // pred_region
        %s516 = ssub.s32 %s30, 1
        // Predicated region
        $region13: #{ecapa_forward_pallas.1} parent=11 // pred_check
          %p517 = pneg %p77
        $region14: #{ecapa_forward_pallas.1} parent=11 // pred_check_branch
          %519 = sbr.rel (%p517) target = $region16
        $region15: #{ecapa_forward_pallas.1} parent=11 // pred_region
          _
        $region16: #{ecapa_forward_pallas.1} parent=11 // pred_fallthru
          _
        // Predicated region
        $region17: #{ecapa_forward_pallas.1} parent=11 // pred_check
          %p520 = pneg %p98
        $region18: #{ecapa_forward_pallas.1} parent=11 // pred_check_branch
          %522 = sbr.rel (%p520) target = $region20
        $region19: #{ecapa_forward_pallas.1} parent=11 // pred_region
          _
        $region20: #{ecapa_forward_pallas.1} parent=11 // pred_fallthru
          _
        // Predicated region
        $region21: #{ecapa_forward_pallas.1} parent=11 // pred_check
          %p523 = pneg %p119
        $region22: #{ecapa_forward_pallas.1} parent=11 // pred_check_branch
          %525 = sbr.rel (%p523) target = $region24
        $region23: #{ecapa_forward_pallas.1} parent=11 // pred_region
          _
        $region24: #{ecapa_forward_pallas.1} parent=11 // pred_fallthru
          _
        // Predicated region
        $region25: #{ecapa_forward_pallas.1} parent=11 // pred_check
          %p526 = pneg %p140
        $region26: #{ecapa_forward_pallas.1} parent=11 // pred_check_branch
          %528 = sbr.rel (%p526) target = $region28
        $region27: #{ecapa_forward_pallas.1} parent=11 // pred_region
          _
        $region28: #{ecapa_forward_pallas.1} parent=11 // pred_fallthru
          _
        // Predicated region
        $region29: #{ecapa_forward_pallas.1} parent=11 // pred_check
          %p529 = pneg %p161
        $region30: #{ecapa_forward_pallas.1} parent=11 // pred_check_branch
          %531 = sbr.rel (%p529) target = $region32
        $region31: #{ecapa_forward_pallas.1} parent=11 // pred_region
          _
        $region32: #{ecapa_forward_pallas.1} parent=11 // pred_fallthru
          _
        // Predicated region
        $region33: #{ecapa_forward_pallas.1} parent=11 // pred_check
          %p532 = pneg %p182
        $region34: #{ecapa_forward_pallas.1} parent=11 // pred_check_branch
          %534 = sbr.rel (%p532) target = $region36
        $region35: #{ecapa_forward_pallas.1} parent=11 // pred_region
          _
        $region36: #{ecapa_forward_pallas.1} parent=11 // pred_fallthru
          _
        // Predicated region
        $region37: #{ecapa_forward_pallas.1} parent=11 // pred_check
          %p535 = pneg %p203
        $region38: #{ecapa_forward_pallas.1} parent=11 // pred_check_branch
          %537 = sbr.rel (%p535) target = $region40
        $region39: #{ecapa_forward_pallas.1} parent=11 // pred_region
          _
        $region40: #{ecapa_forward_pallas.1} parent=11 // pred_fallthru
          _
        // Predicated region
        $region41: #{ecapa_forward_pallas.1} parent=11 // pred_check
          %p538 = pneg %p224
        $region42: #{ecapa_forward_pallas.1} parent=11 // pred_check_branch
          %540 = sbr.rel (%p538) target = $region44
        $region43: #{ecapa_forward_pallas.1} parent=11 // pred_region
          _
        $region44: #{ecapa_forward_pallas.1} parent=11 // pred_fallthru
          _
        // Predicated region
        $region45: #{ecapa_forward_pallas.1} parent=11 // pred_check
          %p541 = pneg %p245
        $region46: #{ecapa_forward_pallas.1} parent=11 // pred_check_branch
          %543 = sbr.rel (%p541) target = $region48
        $region47: #{ecapa_forward_pallas.1} parent=11 // pred_region
          _
        $region48: #{ecapa_forward_pallas.1} parent=11 // pred_fallthru
          _
        // Predicated region
        $region49: #{ecapa_forward_pallas.1} parent=11 // pred_check
          %p544 = pneg %p266
        $region50: #{ecapa_forward_pallas.1} parent=11 // pred_check_branch
          %546 = sbr.rel (%p544) target = $region52
        $region51: #{ecapa_forward_pallas.1} parent=11 // pred_region
          _
        $region52: #{ecapa_forward_pallas.1} parent=11 // pred_fallthru
          _
        // Predicated region
        $region53: #{ecapa_forward_pallas.1} parent=11 // pred_check
          %p547 = pneg %p287
        $region54: #{ecapa_forward_pallas.1} parent=11 // pred_check_branch
          %549 = sbr.rel (%p547) target = $region56
        $region55: #{ecapa_forward_pallas.1} parent=11 // pred_region
          _
        $region56: #{ecapa_forward_pallas.1} parent=11 // pred_fallthru
          _
        // Predicated region
        $region57: #{ecapa_forward_pallas.1} parent=11 // pred_check
          %p550 = pneg %p308
        $region58: #{ecapa_forward_pallas.1} parent=11 // pred_check_branch
          %552 = sbr.rel (%p550) target = $region60
        $region59: #{ecapa_forward_pallas.1} parent=11 // pred_region
          _
        $region60: #{ecapa_forward_pallas.1} parent=11 // pred_fallthru
          _
        // Predicated region
        $region61: #{ecapa_forward_pallas.1} parent=11 // pred_check
          %p553 = pneg %p329
        $region62: #{ecapa_forward_pallas.1} parent=11 // pred_check_branch
          %555 = sbr.rel (%p553) target = $region64
        $region63: #{ecapa_forward_pallas.1} parent=11 // pred_region
          _
        $region64: #{ecapa_forward_pallas.1} parent=11 // pred_fallthru
          _
        // Predicated region
        $region65: #{ecapa_forward_pallas.1} parent=11 // pred_check
          %p556 = pneg %p350
        $region66: #{ecapa_forward_pallas.1} parent=11 // pred_check_branch
          %558 = sbr.rel (%p556) target = $region68
        $region67: #{ecapa_forward_pallas.1} parent=11 // pred_region
          _
        $region68: #{ecapa_forward_pallas.1} parent=11 // pred_fallthru
          _
        // Predicated region
        $region69: #{ecapa_forward_pallas.1} parent=11 // pred_check
          %p559 = pneg %p371
        $region70: #{ecapa_forward_pallas.1} parent=11 // pred_check_branch
          %561 = sbr.rel (%p559) target = $region72
        $region71: #{ecapa_forward_pallas.1} parent=11 // pred_region
          _
        $region72: #{ecapa_forward_pallas.1} parent=11 // pred_fallthru
          _
        // Predicated region
        $region73: #{ecapa_forward_pallas.1} parent=11 // pred_check
          %p562 = pneg %p392
        $region74: #{ecapa_forward_pallas.1} parent=11 // pred_check_branch
          %564 = sbr.rel (%p562) target = $region76
        $region75: #{ecapa_forward_pallas.1} parent=11 // pred_region
          _
        $region76: #{ecapa_forward_pallas.1} parent=11 // pred_fallthru
          _
        // Predicated region
        $region77: #{ecapa_forward_pallas.1} parent=11 // pred_check
          %p565 = pneg %p413
        $region78: #{ecapa_forward_pallas.1} parent=11 // pred_check_branch
          %567 = sbr.rel (%p565) target = $region80
        $region79: #{ecapa_forward_pallas.1} parent=11 // pred_region
          _
        $region80: #{ecapa_forward_pallas.1} parent=11 // pred_fallthru
          _
        // Predicated region
        $region81: #{ecapa_forward_pallas.1} parent=11 // pred_check
          %p568 = pneg %p434
        $region82: #{ecapa_forward_pallas.1} parent=11 // pred_check_branch
          %570 = sbr.rel (%p568) target = $region84
        $region83: #{ecapa_forward_pallas.1} parent=11 // pred_region
          _
        $region84: #{ecapa_forward_pallas.1} parent=11 // pred_fallthru
          _
        // Predicated region
        $region85: #{ecapa_forward_pallas.1} parent=11 // pred_check
          %p571 = pneg %p455
        $region86: #{ecapa_forward_pallas.1} parent=11 // pred_check_branch
          %573 = sbr.rel (%p571) target = $region88
        $region87: #{ecapa_forward_pallas.1} parent=11 // pred_region
          _
        $region88: #{ecapa_forward_pallas.1} parent=11 // pred_fallthru
          _
        // Predicated region
        $region89: #{ecapa_forward_pallas.1} parent=11 // pred_check
          %p574 = pneg %p476
        $region90: #{ecapa_forward_pallas.1} parent=11 // pred_check_branch
          %576 = sbr.rel (%p574) target = $region92
        $region91: #{ecapa_forward_pallas.1} parent=11 // pred_region
          _
        $region92: #{ecapa_forward_pallas.1} parent=11 // pred_fallthru
          _
      $region12: #{ecapa_forward_pallas.1} parent=5 // pred_fallthru
        _
      %p577 = scmp.lt.s32.totalorder %s30, 2
      // Predicated region
      $region93: #{ecapa_forward_pallas.1} parent=5 // pred_check
        %p578 = pneg %p577
      $region94: #{ecapa_forward_pallas.1} parent=5 // pred_check_branch
        %580 = sbr.rel (%p578) target = $region96
      $region95: #{ecapa_forward_pallas.1} parent=5 // pred_region
        // Predicated region
        $region97: #{ecapa_forward_pallas.1} parent=95 // pred_check
          %p581 = pneg %p50
        $region98: #{ecapa_forward_pallas.1} parent=95 // pred_check_branch
          %583 = sbr.rel (%p581) target = $region100
        $region99: #{ecapa_forward_pallas.1} parent=95 // pred_region
          %p584 = scmp.lt.s32.totalorder %s30, 1
          %s585 = scalar_select %p584, %s30, 1
          %s586 = smul.addr %s585, 2
          %s587 = smul.addr %s586, 8
          %s588 = scalar_lea.vmem %s0, %s587
        $region100: #{ecapa_forward_pallas.1} parent=95 // pred_fallthru
          _
      $region96: #{ecapa_forward_pallas.1} parent=5 // pred_fallthru
        _
      %p589 = scmp.le.s32.totalorder 1, %s30
      %p590 = scmp.lt.s32.totalorder %s30, 3
      %p591 = pnand %p589, %p590
      %p592 = pneg %p591
      // Predicated region
      $region101: #{ecapa_forward_pallas.1} parent=5 // pred_check
        _
      $region102: #{ecapa_forward_pallas.1} parent=5 // pred_check_branch
        %594 = sbr.rel (%p591) target = $region104
      $region103: #{ecapa_forward_pallas.1} parent=5 // pred_region
        %s595 = ssub.s32 %s30, 1
        %p596 = scmp.lt.s32.totalorder %s35, 1
        %s597 = scalar_select %p596, %s35, 1
        %s598 = smul.addr %s597, 2
        %s599 = smul.addr %s598, 8
        %s600 = scalar_lea.vmem %s0, %s599
        %p601 = pneg %p56
        %p602 = pneg %p53
        %p603 = pneg %p77
        %p604 = pneg %p74
        %p605 = pneg %p98
        %p606 = pneg %p95
        %p607 = pneg %p119
        %p608 = pneg %p116
        %p609 = pneg %p140
        %p610 = pneg %p137
        %p611 = pneg %p161
        %p612 = pneg %p158
        %p613 = pneg %p182
        %p614 = pneg %p179
        %p615 = pneg %p203
        %p616 = pneg %p200
        %p617 = pneg %p224
        %p618 = pneg %p221
        %p619 = pneg %p245
        %p620 = pneg %p242
        %p621 = pneg %p266
        %p622 = pneg %p263
        %p623 = pneg %p287
        %p624 = pneg %p284
        %p625 = pneg %p308
        %p626 = pneg %p305
        %p627 = pneg %p329
        %p628 = pneg %p326
        %p629 = pneg %p350
        %p630 = pneg %p347
        %p631 = pneg %p371
        %p632 = pneg %p368
        %p633 = pneg %p392
        %p634 = pneg %p389
        %p635 = pneg %p413
        %p636 = pneg %p410
        %p637 = pneg %p434
        %p638 = pneg %p431
        %p639 = pneg %p455
        %p640 = pneg %p452
        %p641 = pneg %p476
        %p642 = pneg %p473
        %p643 = pneg %p502
        %p644 = pneg %p499
        %s645 = sand.u32 %s489, 1
        %s646 = scalar_lea.sflag [#allocation3], %s645
        %s647 = sand.u32 %s489, 1
        %s648 = scalar_lea.vmem [#allocation2], %s647
        %p649 = scmp.lt.s32.totalorder %s35, 1
        %s650 = scalar_select %p649, %s35, 1
        %s651 = smul.addr %s650, 2
        %s652 = smul.addr %s651, 8
        %s653 = scalar_lea.vmem %s0, %s652
        %v654 = vld [vmem:[%s653] sm:$0xff]
        %v655 = vld [vmem:[%s653 + $0x8] sm:$0xff]
        %v656 = vld [vmem:[%s1] sm:$0xff]
        %v657 = vld [vmem:[%s1 + $0x8] sm:$0xff]
        %s658 = scalar_lea.vmem %s1, 16
        %v659 = vld [vmem:[%s658] sm:$0xff]
        %v660 = vld [vmem:[%s658 + $0x8] sm:$0xff]
        %s661 = scalar_lea.vmem %s1, 32
        %v662 = vld [vmem:[%s661] sm:$0xff]
        %v663 = vld [vmem:[%s661 + $0x8] sm:$0xff]
        %s664 = scalar_lea.vmem %s1, 48
        %v665 = vld [vmem:[%s664] sm:$0xff]
        %v666 = vld [vmem:[%s664 + $0x8] sm:$0xff]
        %s667 = scalar_lea.vmem %s1, 64
        %v668 = vld [vmem:[%s667] sm:$0xff]
        %v669 = vld [vmem:[%s667 + $0x8] sm:$0xff]
        %v671 = vrot.slane %v654, 2
        %vm674 = vcmask 1041408
        %v675 = vrot.slane %v654, 6
        %v676 = vrot.slane %v655, 6
        %v677 = vsel %vm674, %v675, %v676
        %v680 = vrot.slane %v655, 4
        %v682 = vrot.slane %v655, 2
        %vm684 = vcmask 1040384
        %v685 = vsel %vm684, %v671, %v654
        %v686 = vsel %vm674, %v685, %v675
        %v687 = vsel %vm674, %v676, %v680
        %vm688 = vcmask 1042432
        %v689 = vsel %vm688, %v687, %v682
        %vm692 = vcmask 1046528
        %v693 = vrot.slane %v686, 1
        %v694 = vrot.slane %v677, 1
        %v695 = vsel %vm692, %v693, %v694
        %v696 = vrot.slane %v689, 1
        %v697 = vsel %vm692, %v694, %v696
        %vm698 = vcmask 130048
        %v699 = vsel %vm698, %v695, 0
        %v701 = vsel %vm698, %v697, 0
        %703 = vmatpush.msra.mxu0 0.0
        %704 = vmatpush.msra.mxu0 0.0
        %705 = vmatpush.msra.mxu0 0.0
        %706 = vmatpush.msra.mxu0 0.0
        %707 = vmatpush.msra.mxu0 0.0
        %708 = vmatpush.msra.mxu0 0.0
        %709 = vmatpush.msra.mxu0 0.0
        %710 = vmatpush.msra.mxu0 0.0
        %711 = vmatpush.msra.mxu0 0.0
        %712 = vmatpush.msra.mxu0 0.0
        %713 = vmatpush.msra.mxu0 0.0
        %714 = vmatpush.msra.mxu0 0.0
        %715 = vmatpush.msra.mxu0 0.0
        %716 = vmatpush.msra.mxu0 0.0
        %717 = vmatpush.msra.mxu0 %v660
        %718 = vmatpush.msra.mxu0 %v659
        %719 = vmatmul.f32.gmra.mxu0 %v699
        %v720 = vpop.f32.mrf.mxu0
        %v721 = vadd.f32 0.0, %v720
        %722 = vmatmul.f32.gmra.mxu0 %v701
        %v723 = vpop.f32.mrf.mxu0
        %v724 = vadd.f32 0.0, %v723
        %725 = vdwg.mxu0
        %v726 = vsel %vm698, %v686, 0
        %v728 = vsel %vm698, %v677, 0
        %730 = vmatpush.msra.mxu0 0.0
        %731 = vmatpush.msra.mxu0 0.0
        %732 = vmatpush.msra.mxu0 0.0
        %733 = vmatpush.msra.mxu0 0.0
        %734 = vmatpush.msra.mxu0 0.0
        %735 = vmatpush.msra.mxu0 0.0
        %736 = vmatpush.msra.mxu0 0.0
        %737 = vmatpush.msra.mxu0 0.0
        %738 = vmatpush.msra.mxu0 0.0
        %739 = vmatpush.msra.mxu0 0.0
        %740 = vmatpush.msra.mxu0 0.0
        %741 = vmatpush.msra.mxu0 0.0
        %742 = vmatpush.msra.mxu0 0.0
        %743 = vmatpush.msra.mxu0 0.0
        %744 = vmatpush.msra.mxu0 %v657
        %745 = vmatpush.msra.mxu0 %v656
        %746 = vmatmul.f32.gmra.mxu0 %v726
        %v747 = vpop.f32.mrf.mxu0
        %v748 = vadd.f32 %v721, %v747
        %749 = vmatmul.f32.gmra.mxu0 %v728
        %v750 = vpop.f32.mrf.mxu0
        %v751 = vadd.f32 %v724, %v750
        %752 = vdwg.mxu0
        %vm753 = vcmask 1045504
        %v754 = vrot.slane %v686, 2
        %v755 = vrot.slane %v677, 2
        %v756 = vsel %vm753, %v754, %v755
        %v757 = vrot.slane %v689, 2
        %v758 = vsel %vm753, %v755, %v757
        %v759 = vsel %vm698, %v756, 0
        %v761 = vsel %vm698, %v758, 0
        %763 = vmatpush.msra.mxu0 0.0
        %764 = vmatpush.msra.mxu0 0.0
        %765 = vmatpush.msra.mxu0 0.0
        %766 = vmatpush.msra.mxu0 0.0
        %767 = vmatpush.msra.mxu0 0.0
        %768 = vmatpush.msra.mxu0 0.0
        %769 = vmatpush.msra.mxu0 0.0
        %770 = vmatpush.msra.mxu0 0.0
        %771 = vmatpush.msra.mxu0 0.0
        %772 = vmatpush.msra.mxu0 0.0
        %773 = vmatpush.msra.mxu0 0.0
        %774 = vmatpush.msra.mxu0 0.0
        %775 = vmatpush.msra.mxu0 0.0
        %776 = vmatpush.msra.mxu0 0.0
        %777 = vmatpush.msra.mxu0 %v663
        %778 = vmatpush.msra.mxu0 %v662
        %779 = vmatmul.f32.gmra.mxu0 %v759
        %v780 = vpop.f32.mrf.mxu0
        %v781 = vadd.f32 0.0, %v780
        %782 = vmatmul.f32.gmra.mxu0 %v761
        %v783 = vpop.f32.mrf.mxu0
        %v784 = vadd.f32 0.0, %v783
        %785 = vdwg.mxu0
        %v786 = vadd.f32 %v748, %v781
        %v787 = vadd.f32 %v751, %v784
        %vm788 = vcmask 1044480
        %v789 = vrot.slane %v686, 3
        %v790 = vrot.slane %v677, 3
        %v791 = vsel %vm788, %v789, %v790
        %v792 = vrot.slane %v689, 3
        %v793 = vsel %vm788, %v790, %v792
        %v794 = vsel %vm698, %v791, 0
        %v796 = vsel %vm698, %v793, 0
        %798 = vmatpush.msra.mxu0 0.0
        %799 = vmatpush.msra.mxu0 0.0
        %800 = vmatpush.msra.mxu0 0.0
        %801 = vmatpush.msra.mxu0 0.0
        %802 = vmatpush.msra.mxu0 0.0
        %803 = vmatpush.msra.mxu0 0.0
        %804 = vmatpush.msra.mxu0 0.0
        %805 = vmatpush.msra.mxu0 0.0
        %806 = vmatpush.msra.mxu0 0.0
        %807 = vmatpush.msra.mxu0 0.0
        %808 = vmatpush.msra.mxu0 0.0
        %809 = vmatpush.msra.mxu0 0.0
        %810 = vmatpush.msra.mxu0 0.0
        %811 = vmatpush.msra.mxu0 0.0
        %812 = vmatpush.msra.mxu0 %v666
        %813 = vmatpush.msra.mxu0 %v665
        %814 = vmatmul.f32.gmra.mxu0 %v794
        %v815 = vpop.f32.mrf.mxu0
        %v816 = vadd.f32 0.0, %v815
        %817 = vmatmul.f32.gmra.mxu0 %v796
        %v818 = vpop.f32.mrf.mxu0
        %v819 = vadd.f32 0.0, %v818
        %820 = vdwg.mxu0
        %v821 = vadd.f32 %v786, %v816
        %v822 = vadd.f32 %v787, %v819
        %vm823 = vcmask 1043456
        %v824 = vrot.slane %v686, 4
        %v825 = vrot.slane %v677, 4
        %v826 = vsel %vm823, %v824, %v825
        %v827 = vrot.slane %v689, 4
        %v828 = vsel %vm823, %v825, %v827
        %v829 = vsel %vm698, %v826, 0
        %v831 = vsel %vm698, %v828, 0
        %833 = vmatpush.msra.mxu0 0.0
        %834 = vmatpush.msra.mxu0 0.0
        %835 = vmatpush.msra.mxu0 0.0
        %836 = vmatpush.msra.mxu0 0.0
        %837 = vmatpush.msra.mxu0 0.0
        %838 = vmatpush.msra.mxu0 0.0
        %839 = vmatpush.msra.mxu0 0.0
        %840 = vmatpush.msra.mxu0 0.0
        %841 = vmatpush.msra.mxu0 0.0
        %842 = vmatpush.msra.mxu0 0.0
        %843 = vmatpush.msra.mxu0 0.0
        %844 = vmatpush.msra.mxu0 0.0
        %845 = vmatpush.msra.mxu0 0.0
        %846 = vmatpush.msra.mxu0 0.0
        %847 = vmatpush.msra.mxu0 %v669
        %848 = vmatpush.msra.mxu0 %v668
        %849 = vmatmul.f32.gmra.mxu0 %v829
        %v850 = vpop.f32.mrf.mxu0
        %v851 = vadd.f32 0.0, %v850
        %852 = vmatmul.f32.gmra.mxu0 %v831
        %v853 = vpop.f32.mrf.mxu0
        %v854 = vadd.f32 0.0, %v853
        %855 = vdwg.mxu0
        %v856 = vadd.f32 %v821, %v851
        %v857 = vadd.f32 %v822, %v854
        %v858 = vld [vmem:[%s2] sm:$0x1]
        %v859 = vperm.slane %v858, 0
        %v860 = vadd.f32 %v856, %v859
        %v861 = vadd.f32 %v857, %v859
        %v862 = vmax.f32 %v860, 0.0
        %v863 = vmax.f32 %v861, 0.0
        %v864 = vld [vmem:[%s2 + $0x1] sm:$0x1]
        %v865 = vperm.slane %v864, 0
        %v866 = vmul.f32 %v862, %v865
        %v867 = vmul.f32 %v863, %v865
        %v868 = vld [vmem:[%s2 + $0x2] sm:$0x1]
        %v869 = vperm.slane %v868, 0
        %v870 = vadd.f32 %v866, %v869
        %v871 = vadd.f32 %v867, %v869
        %v872 = vld [vmem:[%s3] sm:$0xff]
        %v873 = vld [vmem:[%s3 + $0x8] sm:$0xff]
        %v874 = vld [vmem:[%s3 + $0x10] sm:$0xff]
        %v875 = vld [vmem:[%s3 + $0x18] sm:$0xff]
        %v876 = vld [vmem:[%s4] sm:$0x1]
        %v877 = vperm.slane %v876, 0
        %vm878 = vcmask 261120
        %v880 = vsel %vm878, %v870, 0
        %v883 = vsel %vm878, %v871, 0
        %885 = vmatpush.msra.mxu0 0.0
        %886 = vmatpush.msra.mxu0 0.0
        %887 = vmatpush.msra.mxu0 0.0
        %888 = vmatpush.msra.mxu0 0.0
        %889 = vmatpush.msra.mxu0 0.0
        %890 = vmatpush.msra.mxu0 0.0
        %891 = vmatpush.msra.mxu0 0.0
        %892 = vmatpush.msra.mxu0 0.0
        %893 = vmatpush.msra.mxu0 0.0
        %894 = vmatpush.msra.mxu0 0.0
        %895 = vmatpush.msra.mxu0 0.0
        %896 = vmatpush.msra.mxu0 0.0
        %897 = vmatpush.msra.mxu0 %v875
        %898 = vmatpush.msra.mxu0 %v874
        %899 = vmatpush.msra.mxu0 %v873
        %900 = vmatpush.msra.mxu0 %v872
        %901 = vmatmul.f32.gmra.mxu0 %v880
        %v902 = vpop.f32.mrf.mxu0
        %v903 = vadd.f32 %v877, %v902
        %904 = vmatmul.f32.gmra.mxu0 %v883
        %v905 = vpop.f32.mrf.mxu0
        %v906 = vadd.f32 %v877, %v905
        %907 = vdwg.mxu0
        %v908 = vmax.f32 %v903, 0.0
        %v909 = vmax.f32 %v906, 0.0
        %s910 = scalar_lea.vmem %s4, 4
        %v911 = vld [vmem:[%s910] sm:$0x1]
        %v912 = vperm.slane %v911, 0
        %v913 = vmul.f32 %v908, %v912
        %v914 = vmul.f32 %v909, %v912
        %s915 = scalar_lea.vmem %s4, 8
        %v916 = vld [vmem:[%s915] sm:$0x1]
        %v917 = vperm.slane %v916, 0
        %v918 = vadd.f32 %v913, %v917
        %v919 = vadd.f32 %v914, %v917
        %s920 = scalar_lea.vmem %s3, 32
        %v921 = vld [vmem:[%s920] sm:$0xff]
        %v922 = vld [vmem:[%s920 + $0x8] sm:$0xff]
        %v923 = vld [vmem:[%s920 + $0x10] sm:$0xff]
        %v924 = vld [vmem:[%s920 + $0x18] sm:$0xff]
        %v925 = vld [vmem:[%s4 + $0x1] sm:$0x1]
        %v926 = vperm.slane %v925, 0
        %927 = vmatpush.msra.mxu0 0.0
        %928 = vmatpush.msra.mxu0 0.0
        %929 = vmatpush.msra.mxu0 0.0
        %930 = vmatpush.msra.mxu0 0.0
        %931 = vmatpush.msra.mxu0 0.0
        %932 = vmatpush.msra.mxu0 0.0
        %933 = vmatpush.msra.mxu0 0.0
        %934 = vmatpush.msra.mxu0 0.0
        %935 = vmatpush.msra.mxu0 0.0
        %936 = vmatpush.msra.mxu0 0.0
        %937 = vmatpush.msra.mxu0 0.0
        %938 = vmatpush.msra.mxu0 0.0
        %939 = vmatpush.msra.mxu0 %v924
        %940 = vmatpush.msra.mxu0 %v923
        %941 = vmatpush.msra.mxu0 %v922
        %942 = vmatpush.msra.mxu0 %v921
        %943 = vmatmul.f32.gmra.mxu0 %v880
        %v944 = vpop.f32.mrf.mxu0
        %v945 = vadd.f32 %v926, %v944
        %946 = vmatmul.f32.gmra.mxu0 %v883
        %v947 = vpop.f32.mrf.mxu0
        %v948 = vadd.f32 %v926, %v947
        %949 = vdwg.mxu0
        %v950 = vmax.f32 %v945, 0.0
        %v951 = vmax.f32 %v948, 0.0
        %v952 = vld [vmem:[%s910 + $0x1] sm:$0x1]
        %v953 = vperm.slane %v952, 0
        %v954 = vmul.f32 %v950, %v953
        %v955 = vmul.f32 %v951, %v953
        %v956 = vld [vmem:[%s915 + $0x1] sm:$0x1]
        %v957 = vperm.slane %v956, 0
        %v958 = vadd.f32 %v954, %v957
        %v959 = vadd.f32 %v955, %v957
        %s960 = scalar_lea.vmem %s3, 64
        %v961 = vld [vmem:[%s960] sm:$0xff]
        %v962 = vld [vmem:[%s960 + $0x8] sm:$0xff]
        %v963 = vld [vmem:[%s960 + $0x10] sm:$0xff]
        %v964 = vld [vmem:[%s960 + $0x18] sm:$0xff]
        %v965 = vld [vmem:[%s4 + $0x2] sm:$0x1]
        %v966 = vperm.slane %v965, 0
        %967 = vmatpush.msra.mxu0 0.0
        %968 = vmatpush.msra.mxu0 0.0
        %969 = vmatpush.msra.mxu0 0.0
        %970 = vmatpush.msra.mxu0 0.0
        %971 = vmatpush.msra.mxu0 0.0
        %972 = vmatpush.msra.mxu0 0.0
        %973 = vmatpush.msra.mxu0 0.0
        %974 = vmatpush.msra.mxu0 0.0
        %975 = vmatpush.msra.mxu0 0.0
        %976 = vmatpush.msra.mxu0 0.0
        %977 = vmatpush.msra.mxu0 0.0
        %978 = vmatpush.msra.mxu0 0.0
        %979 = vmatpush.msra.mxu0 %v964
        %980 = vmatpush.msra.mxu0 %v963
        %981 = vmatpush.msra.mxu0 %v962
        %982 = vmatpush.msra.mxu0 %v961
        %983 = vmatmul.f32.gmra.mxu0 %v880
        %v984 = vpop.f32.mrf.mxu0
        %v985 = vadd.f32 %v966, %v984
        %986 = vmatmul.f32.gmra.mxu0 %v883
        %v987 = vpop.f32.mrf.mxu0
        %v988 = vadd.f32 %v966, %v987
        %989 = vdwg.mxu0
        %v990 = vmax.f32 %v985, 0.0
        %v991 = vmax.f32 %v988, 0.0
        %v992 = vld [vmem:[%s910 + $0x2] sm:$0x1]
        %v993 = vperm.slane %v992, 0
        %v994 = vmul.f32 %v990, %v993
        %v995 = vmul.f32 %v991, %v993
        %v996 = vld [vmem:[%s915 + $0x2] sm:$0x1]
        %v997 = vperm.slane %v996, 0
        %v998 = vadd.f32 %v994, %v997
        %v999 = vadd.f32 %v995, %v997
        %s1000 = scalar_lea.vmem %s3, 96
        %v1001 = vld [vmem:[%s1000] sm:$0xff]
        %v1002 = vld [vmem:[%s1000 + $0x8] sm:$0xff]
        %v1003 = vld [vmem:[%s1000 + $0x10] sm:$0xff]
        %v1004 = vld [vmem:[%s1000 + $0x18] sm:$0xff]
        %v1005 = vld [vmem:[%s4 + $0x3] sm:$0x1]
        %v1006 = vperm.slane %v1005, 0
        %1007 = vmatpush.msra.mxu0 0.0
        %1008 = vmatpush.msra.mxu0 0.0
        %1009 = vmatpush.msra.mxu0 0.0
        %1010 = vmatpush.msra.mxu0 0.0
        %1011 = vmatpush.msra.mxu0 0.0
        %1012 = vmatpush.msra.mxu0 0.0
        %1013 = vmatpush.msra.mxu0 0.0
        %1014 = vmatpush.msra.mxu0 0.0
        %1015 = vmatpush.msra.mxu0 0.0
        %1016 = vmatpush.msra.mxu0 0.0
        %1017 = vmatpush.msra.mxu0 0.0
        %1018 = vmatpush.msra.mxu0 0.0
        %1019 = vmatpush.msra.mxu0 %v1004
        %1020 = vmatpush.msra.mxu0 %v1003
        %1021 = vmatpush.msra.mxu0 %v1002
        %1022 = vmatpush.msra.mxu0 %v1001
        %1023 = vmatmul.f32.gmra.mxu0 %v880
        %v1024 = vpop.f32.mrf.mxu0
        %v1025 = vadd.f32 %v1006, %v1024
        %1026 = vmatmul.f32.gmra.mxu0 %v883
        %v1027 = vpop.f32.mrf.mxu0
        %v1028 = vadd.f32 %v1006, %v1027
        %1029 = vdwg.mxu0
        %v1030 = vmax.f32 %v1025, 0.0
        %v1031 = vmax.f32 %v1028, 0.0
        %v1032 = vld [vmem:[%s910 + $0x3] sm:$0x1]
        %v1033 = vperm.slane %v1032, 0
        %v1034 = vmul.f32 %v1030, %v1033
        %v1035 = vmul.f32 %v1031, %v1033
        %v1036 = vld [vmem:[%s915 + $0x3] sm:$0x1]
        %v1037 = vperm.slane %v1036, 0
        %v1038 = vadd.f32 %v1034, %v1037
        %v1039 = vadd.f32 %v1035, %v1037
        %v1040 = vld [vmem:[%s5] sm:$0xff]
        %s1041 = scalar_lea.vmem %s5, 8
        %v1042 = vld [vmem:[%s1041] sm:$0xff]
        %s1043 = scalar_lea.vmem %s5, 16
        %v1044 = vld [vmem:[%s1043] sm:$0xff]
        %v1046 = vrot.slane %v958, 2
        %v1049 = vrot.slane %v958, 6
        %v1050 = vrot.slane %v959, 6
        %v1051 = vsel %vm674, %v1049, %v1050
        %v1054 = vrot.slane %v959, 4
        %v1056 = vrot.slane %v959, 2
        %v1058 = vsel %vm684, %v1046, %v958
        %v1059 = vsel %vm674, %v1058, %v1049
        %v1060 = vsel %vm674, %v1050, %v1054
        %v1061 = vsel %vm688, %v1060, %v1056
        %v1064 = vrot.slane %v1059, 2
        %v1065 = vrot.slane %v1051, 2
        %v1066 = vsel %vm753, %v1064, %v1065
        %v1067 = vrot.slane %v1061, 2
        %v1068 = vsel %vm753, %v1065, %v1067
        %vm1069 = vcmask 64512
        %v1070 = vsel %vm1069, %v1066, 0
        %v1072 = vsel %vm1069, %v1068, 0
        %1074 = vmatpush.msra.mxu0 0.0
        %1075 = vmatpush.msra.mxu0 0.0
        %1076 = vmatpush.msra.mxu0 0.0
        %1077 = vmatpush.msra.mxu0 0.0
        %1078 = vmatpush.msra.mxu0 0.0
        %1079 = vmatpush.msra.mxu0 0.0
        %1080 = vmatpush.msra.mxu0 0.0
        %1081 = vmatpush.msra.mxu0 0.0
        %1082 = vmatpush.msra.mxu0 0.0
        %1083 = vmatpush.msra.mxu0 0.0
        %1084 = vmatpush.msra.mxu0 0.0
        %1085 = vmatpush.msra.mxu0 0.0
        %1086 = vmatpush.msra.mxu0 0.0
        %1087 = vmatpush.msra.mxu0 0.0
        %1088 = vmatpush.msra.mxu0 0.0
        %1089 = vmatpush.msra.mxu0 %v1042
        %1090 = vmatmul.f32.gmra.mxu0 %v1070
        %v1091 = vpop.f32.mrf.mxu0
        %v1092 = vadd.f32 0.0, %v1091
        %1093 = vmatmul.f32.gmra.mxu0 %v1072
        %v1094 = vpop.f32.mrf.mxu0
        %v1095 = vadd.f32 0.0, %v1094
        %1096 = vdwg.mxu0
        %v1097 = vsel %vm1069, %v1059, 0
        %v1099 = vsel %vm1069, %v1051, 0
        %1101 = vmatpush.msra.mxu0 0.0
        %1102 = vmatpush.msra.mxu0 0.0
        %1103 = vmatpush.msra.mxu0 0.0
        %1104 = vmatpush.msra.mxu0 0.0
        %1105 = vmatpush.msra.mxu0 0.0
        %1106 = vmatpush.msra.mxu0 0.0
        %1107 = vmatpush.msra.mxu0 0.0
        %1108 = vmatpush.msra.mxu0 0.0
        %1109 = vmatpush.msra.mxu0 0.0
        %1110 = vmatpush.msra.mxu0 0.0
        %1111 = vmatpush.msra.mxu0 0.0
        %1112 = vmatpush.msra.mxu0 0.0
        %1113 = vmatpush.msra.mxu0 0.0
        %1114 = vmatpush.msra.mxu0 0.0
        %1115 = vmatpush.msra.mxu0 0.0
        %1116 = vmatpush.msra.mxu0 %v1040
        %1117 = vmatmul.f32.gmra.mxu0 %v1097
        %v1118 = vpop.f32.mrf.mxu0
        %v1119 = vadd.f32 %v1092, %v1118
        %1120 = vmatmul.f32.gmra.mxu0 %v1099
        %v1121 = vpop.f32.mrf.mxu0
        %v1122 = vadd.f32 %v1095, %v1121
        %1123 = vdwg.mxu0
        %v1124 = vrot.slane %v1059, 4
        %v1125 = vrot.slane %v1051, 4
        %v1126 = vsel %vm823, %v1124, %v1125
        %v1127 = vrot.slane %v1061, 4
        %v1128 = vsel %vm823, %v1125, %v1127
        %v1129 = vsel %vm1069, %v1126, 0
        %v1131 = vsel %vm1069, %v1128, 0
        %1133 = vmatpush.msra.mxu0 0.0
        %1134 = vmatpush.msra.mxu0 0.0
        %1135 = vmatpush.msra.mxu0 0.0
        %1136 = vmatpush.msra.mxu0 0.0
        %1137 = vmatpush.msra.mxu0 0.0
        %1138 = vmatpush.msra.mxu0 0.0
        %1139 = vmatpush.msra.mxu0 0.0
        %1140 = vmatpush.msra.mxu0 0.0
        %1141 = vmatpush.msra.mxu0 0.0
        %1142 = vmatpush.msra.mxu0 0.0
        %1143 = vmatpush.msra.mxu0 0.0
        %1144 = vmatpush.msra.mxu0 0.0
        %1145 = vmatpush.msra.mxu0 0.0
        %1146 = vmatpush.msra.mxu0 0.0
        %1147 = vmatpush.msra.mxu0 0.0
        %1148 = vmatpush.msra.mxu0 %v1044
        %1149 = vmatmul.f32.gmra.mxu0 %v1129
        %v1150 = vpop.f32.mrf.mxu0
        %v1151 = vadd.f32 0.0, %v1150
        %1152 = vmatmul.f32.gmra.mxu0 %v1131
        %v1153 = vpop.f32.mrf.mxu0
        %v1154 = vadd.f32 0.0, %v1153
        %1155 = vdwg.mxu0
        %v1156 = vadd.f32 %v1119, %v1151
        %v1157 = vadd.f32 %v1122, %v1154
        %v1158 = vld [vmem:[%s6] sm:$0x1]
        %v1159 = vperm.slane %v1158, 0
        %v1160 = vadd.f32 %v1156, %v1159
        %v1161 = vadd.f32 %v1157, %v1159
        %v1162 = vmax.f32 %v1160, 0.0
        %v1163 = vmax.f32 %v1161, 0.0
        %v1164 = vld [vmem:[%s6 + $0x1] sm:$0x1]
        %v1165 = vperm.slane %v1164, 0
        %v1166 = vmul.f32 %v1162, %v1165
        %v1167 = vmul.f32 %v1163, %v1165
        %v1168 = vld [vmem:[%s6 + $0x2] sm:$0x1]
        %v1169 = vperm.slane %v1168, 0
        %v1170 = vadd.f32 %v1166, %v1169
        %v1171 = vadd.f32 %v1167, %v1169
        %v1172 = vadd.f32 %v998, %v1170
        %v1173 = vadd.f32 %v999, %v1171
        %s1174 = scalar_lea.vmem %s5, 24
        %v1175 = vld [vmem:[%s1174] sm:$0xff]
        %s1176 = scalar_lea.vmem %s5, 32
        %v1177 = vld [vmem:[%s1176] sm:$0xff]
        %s1178 = scalar_lea.vmem %s5, 40
        %v1179 = vld [vmem:[%s1178] sm:$0xff]
        %v1181 = vrot.slane %v1172, 2
        %v1184 = vrot.slane %v1172, 6
        %v1185 = vrot.slane %v1173, 6
        %v1186 = vsel %vm674, %v1184, %v1185
        %v1189 = vrot.slane %v1173, 4
        %v1191 = vrot.slane %v1173, 2
        %v1193 = vsel %vm684, %v1181, %v1172
        %v1194 = vsel %vm674, %v1193, %v1184
        %v1195 = vsel %vm674, %v1185, %v1189
        %v1196 = vsel %vm688, %v1195, %v1191
        %v1199 = vrot.slane %v1194, 2
        %v1200 = vrot.slane %v1186, 2
        %v1201 = vsel %vm753, %v1199, %v1200
        %v1202 = vrot.slane %v1196, 2
        %v1203 = vsel %vm753, %v1200, %v1202
        %v1204 = vsel %vm1069, %v1201, 0
        %v1206 = vsel %vm1069, %v1203, 0
        %1208 = vmatpush.msra.mxu0 0.0
        %1209 = vmatpush.msra.mxu0 0.0
        %1210 = vmatpush.msra.mxu0 0.0
        %1211 = vmatpush.msra.mxu0 0.0
        %1212 = vmatpush.msra.mxu0 0.0
        %1213 = vmatpush.msra.mxu0 0.0
        %1214 = vmatpush.msra.mxu0 0.0
        %1215 = vmatpush.msra.mxu0 0.0
        %1216 = vmatpush.msra.mxu0 0.0
        %1217 = vmatpush.msra.mxu0 0.0
        %1218 = vmatpush.msra.mxu0 0.0
        %1219 = vmatpush.msra.mxu0 0.0
        %1220 = vmatpush.msra.mxu0 0.0
        %1221 = vmatpush.msra.mxu0 0.0
        %1222 = vmatpush.msra.mxu0 0.0
        %1223 = vmatpush.msra.mxu0 %v1177
        %1224 = vmatmul.f32.gmra.mxu0 %v1204
        %v1225 = vpop.f32.mrf.mxu0
        %v1226 = vadd.f32 0.0, %v1225
        %1227 = vmatmul.f32.gmra.mxu0 %v1206
        %v1228 = vpop.f32.mrf.mxu0
        %v1229 = vadd.f32 0.0, %v1228
        %1230 = vdwg.mxu0
        %v1231 = vsel %vm1069, %v1194, 0
        %v1233 = vsel %vm1069, %v1186, 0
        %1235 = vmatpush.msra.mxu0 0.0
        %1236 = vmatpush.msra.mxu0 0.0
        %1237 = vmatpush.msra.mxu0 0.0
        %1238 = vmatpush.msra.mxu0 0.0
        %1239 = vmatpush.msra.mxu0 0.0
        %1240 = vmatpush.msra.mxu0 0.0
        %1241 = vmatpush.msra.mxu0 0.0
        %1242 = vmatpush.msra.mxu0 0.0
        %1243 = vmatpush.msra.mxu0 0.0
        %1244 = vmatpush.msra.mxu0 0.0
        %1245 = vmatpush.msra.mxu0 0.0
        %1246 = vmatpush.msra.mxu0 0.0
        %1247 = vmatpush.msra.mxu0 0.0
        %1248 = vmatpush.msra.mxu0 0.0
        %1249 = vmatpush.msra.mxu0 0.0
        %1250 = vmatpush.msra.mxu0 %v1175
        %1251 = vmatmul.f32.gmra.mxu0 %v1231
        %v1252 = vpop.f32.mrf.mxu0
        %v1253 = vadd.f32 %v1226, %v1252
        %1254 = vmatmul.f32.gmra.mxu0 %v1233
        %v1255 = vpop.f32.mrf.mxu0
        %v1256 = vadd.f32 %v1229, %v1255
        %1257 = vdwg.mxu0
        %v1258 = vrot.slane %v1194, 4
        %v1259 = vrot.slane %v1186, 4
        %v1260 = vsel %vm823, %v1258, %v1259
        %v1261 = vrot.slane %v1196, 4
        %v1262 = vsel %vm823, %v1259, %v1261
        %v1263 = vsel %vm1069, %v1260, 0
        %v1265 = vsel %vm1069, %v1262, 0
        %1267 = vmatpush.msra.mxu0 0.0
        %1268 = vmatpush.msra.mxu0 0.0
        %1269 = vmatpush.msra.mxu0 0.0
        %1270 = vmatpush.msra.mxu0 0.0
        %1271 = vmatpush.msra.mxu0 0.0
        %1272 = vmatpush.msra.mxu0 0.0
        %1273 = vmatpush.msra.mxu0 0.0
        %1274 = vmatpush.msra.mxu0 0.0
        %1275 = vmatpush.msra.mxu0 0.0
        %1276 = vmatpush.msra.mxu0 0.0
        %1277 = vmatpush.msra.mxu0 0.0
        %1278 = vmatpush.msra.mxu0 0.0
        %1279 = vmatpush.msra.mxu0 0.0
        %1280 = vmatpush.msra.mxu0 0.0
        %1281 = vmatpush.msra.mxu0 0.0
        %1282 = vmatpush.msra.mxu0 %v1179
        %1283 = vmatmul.f32.gmra.mxu0 %v1263
        %v1284 = vpop.f32.mrf.mxu0
        %v1285 = vadd.f32 0.0, %v1284
        %1286 = vmatmul.f32.gmra.mxu0 %v1265
        %v1287 = vpop.f32.mrf.mxu0
        %v1288 = vadd.f32 0.0, %v1287
        %1289 = vdwg.mxu0
        %v1290 = vadd.f32 %v1253, %v1285
        %v1291 = vadd.f32 %v1256, %v1288
        %s1292 = scalar_lea.vmem %s6, 4
        %v1293 = vld [vmem:[%s1292] sm:$0x1]
        %v1294 = vperm.slane %v1293, 0
        %v1295 = vadd.f32 %v1290, %v1294
        %v1296 = vadd.f32 %v1291, %v1294
        %v1297 = vmax.f32 %v1295, 0.0
        %v1298 = vmax.f32 %v1296, 0.0
        %v1299 = vld [vmem:[%s1292 + $0x1] sm:$0x1]
        %v1300 = vperm.slane %v1299, 0
        %v1301 = vmul.f32 %v1297, %v1300
        %v1302 = vmul.f32 %v1298, %v1300
        %v1303 = vld [vmem:[%s1292 + $0x2] sm:$0x1]
        %v1304 = vperm.slane %v1303, 0
        %v1305 = vadd.f32 %v1301, %v1304
        %v1306 = vadd.f32 %v1302, %v1304
        %v1307 = vadd.f32 %v1038, %v1305
        %v1308 = vadd.f32 %v1039, %v1306
        %s1309 = scalar_lea.vmem %s5, 48
        %v1310 = vld [vmem:[%s1309] sm:$0xff]
        %s1311 = scalar_lea.vmem %s5, 56
        %v1312 = vld [vmem:[%s1311] sm:$0xff]
        %s1313 = scalar_lea.vmem %s5, 64
        %v1314 = vld [vmem:[%s1313] sm:$0xff]
        %v1316 = vrot.slane %v1307, 2
        %v1319 = vrot.slane %v1307, 6
        %v1320 = vrot.slane %v1308, 6
        %v1321 = vsel %vm674, %v1319, %v1320
        %v1324 = vrot.slane %v1308, 4
        %v1326 = vrot.slane %v1308, 2
        %v1328 = vsel %vm684, %v1316, %v1307
        %v1329 = vsel %vm674, %v1328, %v1319
        %v1330 = vsel %vm674, %v1320, %v1324
        %v1331 = vsel %vm688, %v1330, %v1326
        %v1334 = vrot.slane %v1329, 2
        %v1335 = vrot.slane %v1321, 2
        %v1336 = vsel %vm753, %v1334, %v1335
        %v1337 = vrot.slane %v1331, 2
        %v1338 = vsel %vm753, %v1335, %v1337
        %v1339 = vsel %vm1069, %v1336, 0
        %v1341 = vsel %vm1069, %v1338, 0
        %1343 = vmatpush.msra.mxu0 0.0
        %1344 = vmatpush.msra.mxu0 0.0
        %1345 = vmatpush.msra.mxu0 0.0
        %1346 = vmatpush.msra.mxu0 0.0
        %1347 = vmatpush.msra.mxu0 0.0
        %1348 = vmatpush.msra.mxu0 0.0
        %1349 = vmatpush.msra.mxu0 0.0
        %1350 = vmatpush.msra.mxu0 0.0
        %1351 = vmatpush.msra.mxu0 0.0
        %1352 = vmatpush.msra.mxu0 0.0
        %1353 = vmatpush.msra.mxu0 0.0
        %1354 = vmatpush.msra.mxu0 0.0
        %1355 = vmatpush.msra.mxu0 0.0
        %1356 = vmatpush.msra.mxu0 0.0
        %1357 = vmatpush.msra.mxu0 0.0
        %1358 = vmatpush.msra.mxu0 %v1312
        %1359 = vmatmul.f32.gmra.mxu0 %v1339
        %v1360 = vpop.f32.mrf.mxu0
        %v1361 = vadd.f32 0.0, %v1360
        %1362 = vmatmul.f32.gmra.mxu0 %v1341
        %v1363 = vpop.f32.mrf.mxu0
        %v1364 = vadd.f32 0.0, %v1363
        %1365 = vdwg.mxu0
        %v1366 = vsel %vm1069, %v1329, 0
        %v1368 = vsel %vm1069, %v1321, 0
        %1370 = vmatpush.msra.mxu0 0.0
        %1371 = vmatpush.msra.mxu0 0.0
        %1372 = vmatpush.msra.mxu0 0.0
        %1373 = vmatpush.msra.mxu0 0.0
        %1374 = vmatpush.msra.mxu0 0.0
        %1375 = vmatpush.msra.mxu0 0.0
        %1376 = vmatpush.msra.mxu0 0.0
        %1377 = vmatpush.msra.mxu0 0.0
        %1378 = vmatpush.msra.mxu0 0.0
        %1379 = vmatpush.msra.mxu0 0.0
        %1380 = vmatpush.msra.mxu0 0.0
        %1381 = vmatpush.msra.mxu0 0.0
        %1382 = vmatpush.msra.mxu0 0.0
        %1383 = vmatpush.msra.mxu0 0.0
        %1384 = vmatpush.msra.mxu0 0.0
        %1385 = vmatpush.msra.mxu0 %v1310
        %1386 = vmatmul.f32.gmra.mxu0 %v1366
        %v1387 = vpop.f32.mrf.mxu0
        %v1388 = vadd.f32 %v1361, %v1387
        %1389 = vmatmul.f32.gmra.mxu0 %v1368
        %v1390 = vpop.f32.mrf.mxu0
        %v1391 = vadd.f32 %v1364, %v1390
        %1392 = vdwg.mxu0
        %v1393 = vrot.slane %v1329, 4
        %v1394 = vrot.slane %v1321, 4
        %v1395 = vsel %vm823, %v1393, %v1394
        %v1396 = vrot.slane %v1331, 4
        %v1397 = vsel %vm823, %v1394, %v1396
        %v1398 = vsel %vm1069, %v1395, 0
        %v1400 = vsel %vm1069, %v1397, 0
        %1402 = vmatpush.msra.mxu0 0.0
        %1403 = vmatpush.msra.mxu0 0.0
        %1404 = vmatpush.msra.mxu0 0.0
        %1405 = vmatpush.msra.mxu0 0.0
        %1406 = vmatpush.msra.mxu0 0.0
        %1407 = vmatpush.msra.mxu0 0.0
        %1408 = vmatpush.msra.mxu0 0.0
        %1409 = vmatpush.msra.mxu0 0.0
        %1410 = vmatpush.msra.mxu0 0.0
        %1411 = vmatpush.msra.mxu0 0.0
        %1412 = vmatpush.msra.mxu0 0.0
        %1413 = vmatpush.msra.mxu0 0.0
        %1414 = vmatpush.msra.mxu0 0.0
        %1415 = vmatpush.msra.mxu0 0.0
        %1416 = vmatpush.msra.mxu0 0.0
        %1417 = vmatpush.msra.mxu0 %v1314
        %1418 = vmatmul.f32.gmra.mxu0 %v1398
        %v1419 = vpop.f32.mrf.mxu0
        %v1420 = vadd.f32 0.0, %v1419
        %1421 = vmatmul.f32.gmra.mxu0 %v1400
        %v1422 = vpop.f32.mrf.mxu0
        %v1423 = vadd.f32 0.0, %v1422
        %1424 = vdwg.mxu0
        %v1425 = vadd.f32 %v1388, %v1420
        %v1426 = vadd.f32 %v1391, %v1423
        %s1427 = scalar_lea.vmem %s6, 8
        %v1428 = vld [vmem:[%s1427] sm:$0x1]
        %v1429 = vperm.slane %v1428, 0
        %v1430 = vadd.f32 %v1425, %v1429
        %v1431 = vadd.f32 %v1426, %v1429
        %v1432 = vmax.f32 %v1430, 0.0
        %v1433 = vmax.f32 %v1431, 0.0
        %v1434 = vld [vmem:[%s1427 + $0x1] sm:$0x1]
        %v1435 = vperm.slane %v1434, 0
        %v1436 = vmul.f32 %v1432, %v1435
        %v1437 = vmul.f32 %v1433, %v1435
        %v1438 = vld [vmem:[%s1427 + $0x2] sm:$0x1]
        %v1439 = vperm.slane %v1438, 0
        %v1440 = vadd.f32 %v1436, %v1439
        %v1441 = vadd.f32 %v1437, %v1439
        %v1442 = vld [vmem:[%s7] sm:$0xff]
        %s1443 = scalar_lea.vmem %s7, 8
        %v1444 = vld [vmem:[%s1443] sm:$0xff]
        %v1446 = vsel %vm1069, %v1170, 0
        %v1449 = vsel %vm1069, %v1171, 0
        %1451 = vmatpush.msra.mxu0 0.0
        %1452 = vmatpush.msra.mxu0 0.0
        %1453 = vmatpush.msra.mxu0 0.0
        %1454 = vmatpush.msra.mxu0 0.0
        %1455 = vmatpush.msra.mxu0 0.0
        %1456 = vmatpush.msra.mxu0 0.0
        %1457 = vmatpush.msra.mxu0 0.0
        %1458 = vmatpush.msra.mxu0 0.0
        %1459 = vmatpush.msra.mxu0 0.0
        %1460 = vmatpush.msra.mxu0 0.0
        %1461 = vmatpush.msra.mxu0 0.0
        %1462 = vmatpush.msra.mxu0 0.0
        %1463 = vmatpush.msra.mxu0 0.0
        %1464 = vmatpush.msra.mxu0 0.0
        %1465 = vmatpush.msra.mxu0 0.0
        %1466 = vmatpush.msra.mxu0 %v1444
        %1467 = vmatmul.f32.gmra.mxu0 %v1446
        %v1468 = vpop.f32.mrf.mxu0
        %v1469 = vadd.f32 0.0, %v1468
        %1470 = vmatmul.f32.gmra.mxu0 %v1449
        %v1471 = vpop.f32.mrf.mxu0
        %v1472 = vadd.f32 0.0, %v1471
        %1473 = vdwg.mxu0
        %v1475 = vsel %vm1069, %v918, 0
        %v1478 = vsel %vm1069, %v919, 0
        %1480 = vmatpush.msra.mxu0 0.0
        %1481 = vmatpush.msra.mxu0 0.0
        %1482 = vmatpush.msra.mxu0 0.0
        %1483 = vmatpush.msra.mxu0 0.0
        %1484 = vmatpush.msra.mxu0 0.0
        %1485 = vmatpush.msra.mxu0 0.0
        %1486 = vmatpush.msra.mxu0 0.0
        %1487 = vmatpush.msra.mxu0 0.0
        %1488 = vmatpush.msra.mxu0 0.0
        %1489 = vmatpush.msra.mxu0 0.0
        %1490 = vmatpush.msra.mxu0 0.0
        %1491 = vmatpush.msra.mxu0 0.0
        %1492 = vmatpush.msra.mxu0 0.0
        %1493 = vmatpush.msra.mxu0 0.0
        %1494 = vmatpush.msra.mxu0 0.0
        %1495 = vmatpush.msra.mxu0 %v1442
        %1496 = vmatmul.f32.gmra.mxu0 %v1475
        %v1497 = vpop.f32.mrf.mxu0
        %v1498 = vadd.f32 %v1469, %v1497
        %1499 = vmatmul.f32.gmra.mxu0 %v1478
        %v1500 = vpop.f32.mrf.mxu0
        %v1501 = vadd.f32 %v1472, %v1500
        %1502 = vdwg.mxu0
        %s1503 = scalar_lea.vmem %s7, 16
        %v1504 = vld [vmem:[%s1503] sm:$0xff]
        %v1506 = vsel %vm1069, %v1305, 0
        %v1509 = vsel %vm1069, %v1306, 0
        %1511 = vmatpush.msra.mxu0 0.0
        %1512 = vmatpush.msra.mxu0 0.0
        %1513 = vmatpush.msra.mxu0 0.0
        %1514 = vmatpush.msra.mxu0 0.0
        %1515 = vmatpush.msra.mxu0 0.0
        %1516 = vmatpush.msra.mxu0 0.0
        %1517 = vmatpush.msra.mxu0 0.0
        %1518 = vmatpush.msra.mxu0 0.0
        %1519 = vmatpush.msra.mxu0 0.0
        %1520 = vmatpush.msra.mxu0 0.0
        %1521 = vmatpush.msra.mxu0 0.0
        %1522 = vmatpush.msra.mxu0 0.0
        %1523 = vmatpush.msra.mxu0 0.0
        %1524 = vmatpush.msra.mxu0 0.0
        %1525 = vmatpush.msra.mxu0 0.0
        %1526 = vmatpush.msra.mxu0 %v1504
        %1527 = vmatmul.f32.gmra.mxu0 %v1506
        %v1528 = vpop.f32.mrf.mxu0
        %v1529 = vadd.f32 0.0, %v1528
        %1530 = vmatmul.f32.gmra.mxu0 %v1509
        %v1531 = vpop.f32.mrf.mxu0
        %v1532 = vadd.f32 0.0, %v1531
        %1533 = vdwg.mxu0
        %v1534 = vadd.f32 %v1498, %v1529
        %v1535 = vadd.f32 %v1501, %v1532
        %s1536 = scalar_lea.vmem %s7, 24
        %v1537 = vld [vmem:[%s1536] sm:$0xff]
        %v1539 = vsel %vm1069, %v1440, 0
        %v1542 = vsel %vm1069, %v1441, 0
        %1544 = vmatpush.msra.mxu0 0.0
        %1545 = vmatpush.msra.mxu0 0.0
        %1546 = vmatpush.msra.mxu0 0.0
        %1547 = vmatpush.msra.mxu0 0.0
        %1548 = vmatpush.msra.mxu0 0.0
        %1549 = vmatpush.msra.mxu0 0.0
        %1550 = vmatpush.msra.mxu0 0.0
        %1551 = vmatpush.msra.mxu0 0.0
        %1552 = vmatpush.msra.mxu0 0.0
        %1553 = vmatpush.msra.mxu0 0.0
        %1554 = vmatpush.msra.mxu0 0.0
        %1555 = vmatpush.msra.mxu0 0.0
        %1556 = vmatpush.msra.mxu0 0.0
        %1557 = vmatpush.msra.mxu0 0.0
        %1558 = vmatpush.msra.mxu0 0.0
        %1559 = vmatpush.msra.mxu0 %v1537
        %1560 = vmatmul.f32.gmra.mxu0 %v1539
        %v1561 = vpop.f32.mrf.mxu0
        %v1562 = vadd.f32 0.0, %v1561
        %1563 = vmatmul.f32.gmra.mxu0 %v1542
        %v1564 = vpop.f32.mrf.mxu0
        %v1565 = vadd.f32 0.0, %v1564
        %1566 = vdwg.mxu0
        %v1567 = vadd.f32 %v1534, %v1562
        %v1568 = vadd.f32 %v1535, %v1565
        %v1569 = vld [vmem:[%s8] sm:$0x1]
        %v1570 = vperm.slane %v1569, 0
        %v1571 = vadd.f32 %v1567, %v1570
        %v1572 = vadd.f32 %v1568, %v1570
        %v1573 = vmax.f32 %v1571, 0.0
        %v1574 = vmax.f32 %v1572, 0.0
        %v1575 = vld [vmem:[%s8 + $0x1] sm:$0x1]
        %v1576 = vperm.slane %v1575, 0
        %v1577 = vmul.f32 %v1573, %v1576
        %v1578 = vmul.f32 %v1574, %v1576
        %v1579 = vld [vmem:[%s8 + $0x2] sm:$0x1]
        %v1580 = vperm.slane %v1579, 0
        %v1581 = vadd.f32 %v1577, %v1580
        %v1582 = vadd.f32 %v1578, %v1580
        %v1583 = vsel %vm878, %v1581, 0.0
        %v1584 = vsel %vm878, %v1582, 0.0
        %v1585 = vadd.f32 %v1583, %v1584
        %v1586 = vrot.slane %v1585, 4
        %v1587 = vadd.f32 %v1585, %v1586
        %v1588 = vrot.slane %v1587, 2
        %v1589 = vadd.f32 %v1587, %v1588
        %v1590 = vrot.slane %v1589, 1
        %v1591 = vadd.f32 %v1589, %v1590
        %v1592 = vmul.f32 %v1591, 0.0625
        %v1593 = vld [vmem:[%s9] sm:$0xff]
        %v1594 = vld [vmem:[%s9 + $0x8] sm:$0xff]
        %v1595 = vld [vmem:[%s9 + $0x10] sm:$0xff]
        %v1596 = vld [vmem:[%s9 + $0x18] sm:$0xff]
        %v1597 = vld [vmem:[%s10] sm:$0x1]
        %v1599 = vsel %vm878, %v1592, 0
        %1601 = vmatpush.msra.mxu0 0.0
        %1602 = vmatpush.msra.mxu0 0.0
        %1603 = vmatpush.msra.mxu0 0.0
        %1604 = vmatpush.msra.mxu0 0.0
        %1605 = vmatpush.msra.mxu0 0.0
        %1606 = vmatpush.msra.mxu0 0.0
        %1607 = vmatpush.msra.mxu0 0.0
        %1608 = vmatpush.msra.mxu0 0.0
        %1609 = vmatpush.msra.mxu0 0.0
        %1610 = vmatpush.msra.mxu0 0.0
        %1611 = vmatpush.msra.mxu0 0.0
        %1612 = vmatpush.msra.mxu0 0.0
        %1613 = vmatpush.msra.mxu0 %v1596
        %1614 = vmatpush.msra.mxu0 %v1595
        %1615 = vmatpush.msra.mxu0 %v1594
        %1616 = vmatpush.msra.mxu0 %v1593
        %1617 = vmatmul.f32.gmra.mxu0 %v1599
        %v1618 = vpop.f32.mrf.mxu0
        %v1619 = vadd.f32 %v1597, %v1618
        %1620 = vdwg.mxu0
        %v1621 = vmax.f32 %v1619, 0.0
        %v1622 = vld [vmem:[%s11] sm:$0xff]
        %v1623 = vld [vmem:[%s11 + $0x8] sm:$0xff]
        %v1624 = vld [vmem:[%s12] sm:$0x1]
        %v1626 = vsel %vm698, %v1621, 0
        %1628 = vmatpush.msra.mxu0 0.0
        %1629 = vmatpush.msra.mxu0 0.0
        %1630 = vmatpush.msra.mxu0 0.0
        %1631 = vmatpush.msra.mxu0 0.0
        %1632 = vmatpush.msra.mxu0 0.0
        %1633 = vmatpush.msra.mxu0 0.0
        %1634 = vmatpush.msra.mxu0 0.0
        %1635 = vmatpush.msra.mxu0 0.0
        %1636 = vmatpush.msra.mxu0 0.0
        %1637 = vmatpush.msra.mxu0 0.0
        %1638 = vmatpush.msra.mxu0 0.0
        %1639 = vmatpush.msra.mxu0 0.0
        %1640 = vmatpush.msra.mxu0 0.0
        %1641 = vmatpush.msra.mxu0 0.0
        %1642 = vmatpush.msra.mxu0 %v1623
        %1643 = vmatpush.msra.mxu0 %v1622
        %1644 = vmatmul.f32.gmra.mxu0 %v1626
        %v1645 = vpop.f32.mrf.mxu0
        %v1646 = vadd.f32 %v1624, %v1645
        %1647 = vdwg.mxu0
        %v1648 = vxor.u32 %v1646, 2147483648
        %v1649 = vmul.f32 %v1648, 1.442695
        %v1650 = vpow.pop %v1649
        %v1651 = vadd.f32 %v1650, 1.0
        %v1652 = vrcp.pop %v1651
        %v1653 = vmul.f32 %v1651, %v1652
        %v1654 = vsub.f32 1.0, %v1653
        %v1655 = vmul.f32 %v1652, %v1654
        %v1656 = vadd.f32 %v1652, %v1655
        %vm1657 = vweird.f32 %v1651
        %vm1658 = vweird.f32 %v1652
        %vm1659 = vmor %vm1657, %vm1658
        %v1660 = vsel %vm1659, %v1652, %v1656
        %v1661 = vand.u32 2147483647, %v1651
        %vm1662 = vcmp.eq.f32.partialorder %v1661, 8.507059e+37
        %v1663 = vand.u32 %v1651, 2147483648
        %v1664 = vor.u32 1.1754944e-38, %v1663
        %v1665 = vsel %vm1662, %v1664, %v1660
        %v1666 = vmul.f32 1.0, %v1665
        %v1667 = vperm.slane %v1666, 0
        %v1668 = vmul.f32 %v1581, %v1667
        %v1669 = vmul.f32 %v1582, %v1667
        %v1670 = vadd.f32 %v1668, %v870
        %v1671 = vadd.f32 %v1669, %v871
        %s1672 = scalar_lea.vmem %s3, 128
        %v1673 = vld [vmem:[%s1672] sm:$0xff]
        %v1674 = vld [vmem:[%s1672 + $0x8] sm:$0xff]
        %v1675 = vld [vmem:[%s1672 + $0x10] sm:$0xff]
        %v1676 = vld [vmem:[%s1672 + $0x18] sm:$0xff]
        %s1677 = scalar_lea.vmem %s4, 12
        %v1678 = vld [vmem:[%s1677] sm:$0x1]
        %v1679 = vperm.slane %v1678, 0
        %v1681 = vsel %vm878, %v1670, 0
        %v1684 = vsel %vm878, %v1671, 0
        %1686 = vmatpush.msra.mxu0 0.0
        %1687 = vmatpush.msra.mxu0 0.0
        %1688 = vmatpush.msra.mxu0 0.0
        %1689 = vmatpush.msra.mxu0 0.0
        %1690 = vmatpush.msra.mxu0 0.0
        %1691 = vmatpush.msra.mxu0 0.0
        %1692 = vmatpush.msra.mxu0 0.0
        %1693 = vmatpush.msra.mxu0 0.0
        %1694 = vmatpush.msra.mxu0 0.0
        %1695 = vmatpush.msra.mxu0 0.0
        %1696 = vmatpush.msra.mxu0 0.0
        %1697 = vmatpush.msra.mxu0 0.0
        %1698 = vmatpush.msra.mxu0 %v1676
        %1699 = vmatpush.msra.mxu0 %v1675
        %1700 = vmatpush.msra.mxu0 %v1674
        %1701 = vmatpush.msra.mxu0 %v1673
        %1702 = vmatmul.f32.gmra.mxu0 %v1681
        %v1703 = vpop.f32.mrf.mxu0
        %v1704 = vadd.f32 %v1679, %v1703
        %1705 = vmatmul.f32.gmra.mxu0 %v1684
        %v1706 = vpop.f32.mrf.mxu0
        %v1707 = vadd.f32 %v1679, %v1706
        %1708 = vdwg.mxu0
        %v1709 = vmax.f32 %v1704, 0.0
        %v1710 = vmax.f32 %v1707, 0.0
        %s1711 = scalar_lea.vmem %s4, 16
        %v1712 = vld [vmem:[%s1711] sm:$0x1]
        %v1713 = vperm.slane %v1712, 0
        %v1714 = vmul.f32 %v1709, %v1713
        %v1715 = vmul.f32 %v1710, %v1713
        %s1716 = scalar_lea.vmem %s4, 20
        %v1717 = vld [vmem:[%s1716] sm:$0x1]
        %v1718 = vperm.slane %v1717, 0
        %v1719 = vadd.f32 %v1714, %v1718
        %v1720 = vadd.f32 %v1715, %v1718
        %s1721 = scalar_lea.vmem %s3, 160
        %v1722 = vld [vmem:[%s1721] sm:$0xff]
        %v1723 = vld [vmem:[%s1721 + $0x8] sm:$0xff]
        %v1724 = vld [vmem:[%s1721 + $0x10] sm:$0xff]
        %v1725 = vld [vmem:[%s1721 + $0x18] sm:$0xff]
        %v1726 = vld [vmem:[%s1677 + $0x1] sm:$0x1]
        %v1727 = vperm.slane %v1726, 0
        %1728 = vmatpush.msra.mxu0 0.0
        %1729 = vmatpush.msra.mxu0 0.0
        %1730 = vmatpush.msra.mxu0 0.0
        %1731 = vmatpush.msra.mxu0 0.0
        %1732 = vmatpush.msra.mxu0 0.0
        %1733 = vmatpush.msra.mxu0 0.0
        %1734 = vmatpush.msra.mxu0 0.0
        %1735 = vmatpush.msra.mxu0 0.0
        %1736 = vmatpush.msra.mxu0 0.0
        %1737 = vmatpush.msra.mxu0 0.0
        %1738 = vmatpush.msra.mxu0 0.0
        %1739 = vmatpush.msra.mxu0 0.0
        %1740 = vmatpush.msra.mxu0 %v1725
        %1741 = vmatpush.msra.mxu0 %v1724
        %1742 = vmatpush.msra.mxu0 %v1723
        %1743 = vmatpush.msra.mxu0 %v1722
        %1744 = vmatmul.f32.gmra.mxu0 %v1681
        %v1745 = vpop.f32.mrf.mxu0
        %v1746 = vadd.f32 %v1727, %v1745
        %1747 = vmatmul.f32.gmra.mxu0 %v1684
        %v1748 = vpop.f32.mrf.mxu0
        %v1749 = vadd.f32 %v1727, %v1748
        %1750 = vdwg.mxu0
        %v1751 = vmax.f32 %v1746, 0.0
        %v1752 = vmax.f32 %v1749, 0.0
        %v1753 = vld [vmem:[%s1711 + $0x1] sm:$0x1]
        %v1754 = vperm.slane %v1753, 0
        %v1755 = vmul.f32 %v1751, %v1754
        %v1756 = vmul.f32 %v1752, %v1754
        %v1757 = vld [vmem:[%s1716 + $0x1] sm:$0x1]
        %v1758 = vperm.slane %v1757, 0
        %v1759 = vadd.f32 %v1755, %v1758
        %v1760 = vadd.f32 %v1756, %v1758
        %s1761 = scalar_lea.vmem %s3, 192
        %v1762 = vld [vmem:[%s1761] sm:$0xff]
        %v1763 = vld [vmem:[%s1761 + $0x8] sm:$0xff]
        %v1764 = vld [vmem:[%s1761 + $0x10] sm:$0xff]
        %v1765 = vld [vmem:[%s1761 + $0x18] sm:$0xff]
        %v1766 = vld [vmem:[%s1677 + $0x2] sm:$0x1]
        %v1767 = vperm.slane %v1766, 0
        %1768 = vmatpush.msra.mxu0 0.0
        %1769 = vmatpush.msra.mxu0 0.0
        %1770 = vmatpush.msra.mxu0 0.0
        %1771 = vmatpush.msra.mxu0 0.0
        %1772 = vmatpush.msra.mxu0 0.0
        %1773 = vmatpush.msra.mxu0 0.0
        %1774 = vmatpush.msra.mxu0 0.0
        %1775 = vmatpush.msra.mxu0 0.0
        %1776 = vmatpush.msra.mxu0 0.0
        %1777 = vmatpush.msra.mxu0 0.0
        %1778 = vmatpush.msra.mxu0 0.0
        %1779 = vmatpush.msra.mxu0 0.0
        %1780 = vmatpush.msra.mxu0 %v1765
        %1781 = vmatpush.msra.mxu0 %v1764
        %1782 = vmatpush.msra.mxu0 %v1763
        %1783 = vmatpush.msra.mxu0 %v1762
        %1784 = vmatmul.f32.gmra.mxu0 %v1681
        %v1785 = vpop.f32.mrf.mxu0
        %v1786 = vadd.f32 %v1767, %v1785
        %1787 = vmatmul.f32.gmra.mxu0 %v1684
        %v1788 = vpop.f32.mrf.mxu0
        %v1789 = vadd.f32 %v1767, %v1788
        %1790 = vdwg.mxu0
        %v1791 = vmax.f32 %v1786, 0.0
        %v1792 = vmax.f32 %v1789, 0.0
        %v1793 = vld [vmem:[%s1711 + $0x2] sm:$0x1]
        %v1794 = vperm.slane %v1793, 0
        %v1795 = vmul.f32 %v1791, %v1794
        %v1796 = vmul.f32 %v1792, %v1794
        %v1797 = vld [vmem:[%s1716 + $0x2] sm:$0x1]
        %v1798 = vperm.slane %v1797, 0
        %v1799 = vadd.f32 %v1795, %v1798
        %v1800 = vadd.f32 %v1796, %v1798
        %s1801 = scalar_lea.vmem %s3, 224
        %v1802 = vld [vmem:[%s1801] sm:$0xff]
        %v1803 = vld [vmem:[%s1801 + $0x8] sm:$0xff]
        %v1804 = vld [vmem:[%s1801 + $0x10] sm:$0xff]
        %v1805 = vld [vmem:[%s1801 + $0x18] sm:$0xff]
        %v1806 = vld [vmem:[%s1677 + $0x3] sm:$0x1]
        %v1807 = vperm.slane %v1806, 0
        %1808 = vmatpush.msra.mxu0 0.0
        %1809 = vmatpush.msra.mxu0 0.0
        %1810 = vmatpush.msra.mxu0 0.0
        %1811 = vmatpush.msra.mxu0 0.0
        %1812 = vmatpush.msra.mxu0 0.0
        %1813 = vmatpush.msra.mxu0 0.0
        %1814 = vmatpush.msra.mxu0 0.0
        %1815 = vmatpush.msra.mxu0 0.0
        %1816 = vmatpush.msra.mxu0 0.0
        %1817 = vmatpush.msra.mxu0 0.0
        %1818 = vmatpush.msra.mxu0 0.0
        %1819 = vmatpush.msra.mxu0 0.0
        %1820 = vmatpush.msra.mxu0 %v1805
        %1821 = vmatpush.msra.mxu0 %v1804
        %1822 = vmatpush.msra.mxu0 %v1803
        %1823 = vmatpush.msra.mxu0 %v1802
        %1824 = vmatmul.f32.gmra.mxu0 %v1681
        %v1825 = vpop.f32.mrf.mxu0
        %v1826 = vadd.f32 %v1807, %v1825
        %1827 = vmatmul.f32.gmra.mxu0 %v1684
        %v1828 = vpop.f32.mrf.mxu0
        %v1829 = vadd.f32 %v1807, %v1828
        %1830 = vdwg.mxu0
        %v1831 = vmax.f32 %v1826, 0.0
        %v1832 = vmax.f32 %v1829, 0.0
        %v1833 = vld [vmem:[%s1711 + $0x3] sm:$0x1]
        %v1834 = vperm.slane %v1833, 0
        %v1835 = vmul.f32 %v1831, %v1834
        %v1836 = vmul.f32 %v1832, %v1834
        %v1837 = vld [vmem:[%s1716 + $0x3] sm:$0x1]
        %v1838 = vperm.slane %v1837, 0
        %v1839 = vadd.f32 %v1835, %v1838
        %v1840 = vadd.f32 %v1836, %v1838
        %s1841 = scalar_lea.vmem %s5, 72
        %v1842 = vld [vmem:[%s1841] sm:$0xff]
        %s1843 = scalar_lea.vmem %s5, 80
        %v1844 = vld [vmem:[%s1843] sm:$0xff]
        %s1845 = scalar_lea.vmem %s5, 88
        %v1846 = vld [vmem:[%s1845] sm:$0xff]
        %v1848 = vrot.slane %v1759, 3
        %v1850 = vrot.slane %v1759, 1
        %v1852 = vrot.slane %v1759, 7
        %v1855 = vrot.slane %v1759, 5
        %v1856 = vrot.slane %v1760, 5
        %v1857 = vsel %vm688, %v1855, %v1856
        %v1860 = vrot.slane %v1760, 3
        %v1862 = vrot.slane %v1760, 1
        %v1864 = vrot.slane %v1760, 7
        %v1866 = vsel %vm684, %v1848, %v1850
        %v1867 = vsel %vm674, %v1866, %v1852
        %v1868 = vsel %vm688, %v1867, %v1855
        %v1869 = vsel %vm688, %v1856, %v1860
        %v1870 = vsel %vm823, %v1869, %v1862
        %v1871 = vsel %vm788, %v1870, %v1864
        %v1874 = vrot.slane %v1868, 3
        %v1875 = vrot.slane %v1857, 3
        %v1876 = vsel %vm788, %v1874, %v1875
        %v1877 = vrot.slane %v1871, 3
        %v1878 = vsel %vm788, %v1875, %v1877
        %v1879 = vsel %vm1069, %v1876, 0
        %v1881 = vsel %vm1069, %v1878, 0
        %1883 = vmatpush.msra.mxu0 0.0
        %1884 = vmatpush.msra.mxu0 0.0
        %1885 = vmatpush.msra.mxu0 0.0
        %1886 = vmatpush.msra.mxu0 0.0
        %1887 = vmatpush.msra.mxu0 0.0
        %1888 = vmatpush.msra.mxu0 0.0
        %1889 = vmatpush.msra.mxu0 0.0
        %1890 = vmatpush.msra.mxu0 0.0
        %1891 = vmatpush.msra.mxu0 0.0
        %1892 = vmatpush.msra.mxu0 0.0
        %1893 = vmatpush.msra.mxu0 0.0
        %1894 = vmatpush.msra.mxu0 0.0
        %1895 = vmatpush.msra.mxu0 0.0
        %1896 = vmatpush.msra.mxu0 0.0
        %1897 = vmatpush.msra.mxu0 0.0
        %1898 = vmatpush.msra.mxu0 %v1844
        %1899 = vmatmul.f32.gmra.mxu0 %v1879
        %v1900 = vpop.f32.mrf.mxu0
        %v1901 = vadd.f32 0.0, %v1900
        %1902 = vmatmul.f32.gmra.mxu0 %v1881
        %v1903 = vpop.f32.mrf.mxu0
        %v1904 = vadd.f32 0.0, %v1903
        %1905 = vdwg.mxu0
        %v1906 = vsel %vm1069, %v1868, 0
        %v1908 = vsel %vm1069, %v1857, 0
        %1910 = vmatpush.msra.mxu0 0.0
        %1911 = vmatpush.msra.mxu0 0.0
        %1912 = vmatpush.msra.mxu0 0.0
        %1913 = vmatpush.msra.mxu0 0.0
        %1914 = vmatpush.msra.mxu0 0.0
        %1915 = vmatpush.msra.mxu0 0.0
        %1916 = vmatpush.msra.mxu0 0.0
        %1917 = vmatpush.msra.mxu0 0.0
        %1918 = vmatpush.msra.mxu0 0.0
        %1919 = vmatpush.msra.mxu0 0.0
        %1920 = vmatpush.msra.mxu0 0.0
        %1921 = vmatpush.msra.mxu0 0.0
        %1922 = vmatpush.msra.mxu0 0.0
        %1923 = vmatpush.msra.mxu0 0.0
        %1924 = vmatpush.msra.mxu0 0.0
        %1925 = vmatpush.msra.mxu0 %v1842
        %1926 = vmatmul.f32.gmra.mxu0 %v1906
        %v1927 = vpop.f32.mrf.mxu0
        %v1928 = vadd.f32 %v1901, %v1927
        %1929 = vmatmul.f32.gmra.mxu0 %v1908
        %v1930 = vpop.f32.mrf.mxu0
        %v1931 = vadd.f32 %v1904, %v1930
        %1932 = vdwg.mxu0
        %v1933 = vrot.slane %v1868, 6
        %v1934 = vrot.slane %v1857, 6
        %v1935 = vsel %vm674, %v1933, %v1934
        %v1936 = vrot.slane %v1871, 6
        %v1937 = vsel %vm674, %v1934, %v1936
        %v1938 = vsel %vm1069, %v1935, 0
        %v1940 = vsel %vm1069, %v1937, 0
        %1942 = vmatpush.msra.mxu0 0.0
        %1943 = vmatpush.msra.mxu0 0.0
        %1944 = vmatpush.msra.mxu0 0.0
        %1945 = vmatpush.msra.mxu0 0.0
        %1946 = vmatpush.msra.mxu0 0.0
        %1947 = vmatpush.msra.mxu0 0.0
        %1948 = vmatpush.msra.mxu0 0.0
        %1949 = vmatpush.msra.mxu0 0.0
        %1950 = vmatpush.msra.mxu0 0.0
        %1951 = vmatpush.msra.mxu0 0.0
        %1952 = vmatpush.msra.mxu0 0.0
        %1953 = vmatpush.msra.mxu0 0.0
        %1954 = vmatpush.msra.mxu0 0.0
        %1955 = vmatpush.msra.mxu0 0.0
        %1956 = vmatpush.msra.mxu0 0.0
        %1957 = vmatpush.msra.mxu0 %v1846
        %1958 = vmatmul.f32.gmra.mxu0 %v1938
        %v1959 = vpop.f32.mrf.mxu0
        %v1960 = vadd.f32 0.0, %v1959
        %1961 = vmatmul.f32.gmra.mxu0 %v1940
        %v1962 = vpop.f32.mrf.mxu0
        %v1963 = vadd.f32 0.0, %v1962
        %1964 = vdwg.mxu0
        %v1965 = vadd.f32 %v1928, %v1960
        %v1966 = vadd.f32 %v1931, %v1963
        %s1967 = scalar_lea.vmem %s6, 12
        %v1968 = vld [vmem:[%s1967] sm:$0x1]
        %v1969 = vperm.slane %v1968, 0
        %v1970 = vadd.f32 %v1965, %v1969
        %v1971 = vadd.f32 %v1966, %v1969
        %v1972 = vmax.f32 %v1970, 0.0
        %v1973 = vmax.f32 %v1971, 0.0
        %v1974 = vld [vmem:[%s1967 + $0x1] sm:$0x1]
        %v1975 = vperm.slane %v1974, 0
        %v1976 = vmul.f32 %v1972, %v1975
        %v1977 = vmul.f32 %v1973, %v1975
        %v1978 = vld [vmem:[%s1967 + $0x2] sm:$0x1]
        %v1979 = vperm.slane %v1978, 0
        %v1980 = vadd.f32 %v1976, %v1979
        %v1981 = vadd.f32 %v1977, %v1979
        %v1982 = vadd.f32 %v1799, %v1980
        %v1983 = vadd.f32 %v1800, %v1981
        %s1984 = scalar_lea.vmem %s5, 96
        %v1985 = vld [vmem:[%s1984] sm:$0xff]
        %s1986 = scalar_lea.vmem %s5, 104
        %v1987 = vld [vmem:[%s1986] sm:$0xff]
        %s1988 = scalar_lea.vmem %s5, 112
        %v1989 = vld [vmem:[%s1988] sm:$0xff]
        %v1991 = vrot.slane %v1982, 3
        %v1993 = vrot.slane %v1982, 1
        %v1995 = vrot.slane %v1982, 7
        %v1998 = vrot.slane %v1982, 5
        %v1999 = vrot.slane %v1983, 5
        %v2000 = vsel %vm688, %v1998, %v1999
        %v2003 = vrot.slane %v1983, 3
        %v2005 = vrot.slane %v1983, 1
        %v2007 = vrot.slane %v1983, 7
        %v2009 = vsel %vm684, %v1991, %v1993
        %v2010 = vsel %vm674, %v2009, %v1995
        %v2011 = vsel %vm688, %v2010, %v1998
        %v2012 = vsel %vm688, %v1999, %v2003
        %v2013 = vsel %vm823, %v2012, %v2005
        %v2014 = vsel %vm788, %v2013, %v2007
        %v2017 = vrot.slane %v2011, 3
        %v2018 = vrot.slane %v2000, 3
        %v2019 = vsel %vm788, %v2017, %v2018
        %v2020 = vrot.slane %v2014, 3
        %v2021 = vsel %vm788, %v2018, %v2020
        %v2022 = vsel %vm1069, %v2019, 0
        %v2024 = vsel %vm1069, %v2021, 0
        %2026 = vmatpush.msra.mxu0 0.0
        %2027 = vmatpush.msra.mxu0 0.0
        %2028 = vmatpush.msra.mxu0 0.0
        %2029 = vmatpush.msra.mxu0 0.0
        %2030 = vmatpush.msra.mxu0 0.0
        %2031 = vmatpush.msra.mxu0 0.0
        %2032 = vmatpush.msra.mxu0 0.0
        %2033 = vmatpush.msra.mxu0 0.0
        %2034 = vmatpush.msra.mxu0 0.0
        %2035 = vmatpush.msra.mxu0 0.0
        %2036 = vmatpush.msra.mxu0 0.0
        %2037 = vmatpush.msra.mxu0 0.0
        %2038 = vmatpush.msra.mxu0 0.0
        %2039 = vmatpush.msra.mxu0 0.0
        %2040 = vmatpush.msra.mxu0 0.0
        %2041 = vmatpush.msra.mxu0 %v1987
        %2042 = vmatmul.f32.gmra.mxu0 %v2022
        %v2043 = vpop.f32.mrf.mxu0
        %v2044 = vadd.f32 0.0, %v2043
        %2045 = vmatmul.f32.gmra.mxu0 %v2024
        %v2046 = vpop.f32.mrf.mxu0
        %v2047 = vadd.f32 0.0, %v2046
        %2048 = vdwg.mxu0
        %v2049 = vsel %vm1069, %v2011, 0
        %v2051 = vsel %vm1069, %v2000, 0
        %2053 = vmatpush.msra.mxu0 0.0
        %2054 = vmatpush.msra.mxu0 0.0
        %2055 = vmatpush.msra.mxu0 0.0
        %2056 = vmatpush.msra.mxu0 0.0
        %2057 = vmatpush.msra.mxu0 0.0
        %2058 = vmatpush.msra.mxu0 0.0
        %2059 = vmatpush.msra.mxu0 0.0
        %2060 = vmatpush.msra.mxu0 0.0
        %2061 = vmatpush.msra.mxu0 0.0
        %2062 = vmatpush.msra.mxu0 0.0
        %2063 = vmatpush.msra.mxu0 0.0
        %2064 = vmatpush.msra.mxu0 0.0
        %2065 = vmatpush.msra.mxu0 0.0
        %2066 = vmatpush.msra.mxu0 0.0
        %2067 = vmatpush.msra.mxu0 0.0
        %2068 = vmatpush.msra.mxu0 %v1985
        %2069 = vmatmul.f32.gmra.mxu0 %v2049
        %v2070 = vpop.f32.mrf.mxu0
        %v2071 = vadd.f32 %v2044, %v2070
        %2072 = vmatmul.f32.gmra.mxu0 %v2051
        %v2073 = vpop.f32.mrf.mxu0
        %v2074 = vadd.f32 %v2047, %v2073
        %2075 = vdwg.mxu0
        %v2076 = vrot.slane %v2011, 6
        %v2077 = vrot.slane %v2000, 6
        %v2078 = vsel %vm674, %v2076, %v2077
        %v2079 = vrot.slane %v2014, 6
        %v2080 = vsel %vm674, %v2077, %v2079
        %v2081 = vsel %vm1069, %v2078, 0
        %v2083 = vsel %vm1069, %v2080, 0
        %2085 = vmatpush.msra.mxu0 0.0
        %2086 = vmatpush.msra.mxu0 0.0
        %2087 = vmatpush.msra.mxu0 0.0
        %2088 = vmatpush.msra.mxu0 0.0
        %2089 = vmatpush.msra.mxu0 0.0
        %2090 = vmatpush.msra.mxu0 0.0
        %2091 = vmatpush.msra.mxu0 0.0
        %2092 = vmatpush.msra.mxu0 0.0
        %2093 = vmatpush.msra.mxu0 0.0
        %2094 = vmatpush.msra.mxu0 0.0
        %2095 = vmatpush.msra.mxu0 0.0
        %2096 = vmatpush.msra.mxu0 0.0
        %2097 = vmatpush.msra.mxu0 0.0
        %2098 = vmatpush.msra.mxu0 0.0
        %2099 = vmatpush.msra.mxu0 0.0
        %2100 = vmatpush.msra.mxu0 %v1989
        %2101 = vmatmul.f32.gmra.mxu0 %v2081
        %v2102 = vpop.f32.mrf.mxu0
        %v2103 = vadd.f32 0.0, %v2102
        %2104 = vmatmul.f32.gmra.mxu0 %v2083
        %v2105 = vpop.f32.mrf.mxu0
        %v2106 = vadd.f32 0.0, %v2105
        %2107 = vdwg.mxu0
        %v2108 = vadd.f32 %v2071, %v2103
        %v2109 = vadd.f32 %v2074, %v2106
        %s2110 = scalar_lea.vmem %s6, 16
        %v2111 = vld [vmem:[%s2110] sm:$0x1]
        %v2112 = vperm.slane %v2111, 0
        %v2113 = vadd.f32 %v2108, %v2112
        %v2114 = vadd.f32 %v2109, %v2112
        %v2115 = vmax.f32 %v2113, 0.0
        %v2116 = vmax.f32 %v2114, 0.0
        %v2117 = vld [vmem:[%s2110 + $0x1] sm:$0x1]
        %v2118 = vperm.slane %v2117, 0
        %v2119 = vmul.f32 %v2115, %v2118
        %v2120 = vmul.f32 %v2116, %v2118
        %v2121 = vld [vmem:[%s2110 + $0x2] sm:$0x1]
        %v2122 = vperm.slane %v2121, 0
        %v2123 = vadd.f32 %v2119, %v2122
        %v2124 = vadd.f32 %v2120, %v2122
        %v2125 = vadd.f32 %v1839, %v2123
        %v2126 = vadd.f32 %v1840, %v2124
        %s2127 = scalar_lea.vmem %s5, 120
        %v2128 = vld [vmem:[%s2127] sm:$0xff]
        %s2129 = scalar_lea.vmem %s5, 128
        %v2130 = vld [vmem:[%s2129] sm:$0xff]
        %s2131 = scalar_lea.vmem %s5, 136
        %v2132 = vld [vmem:[%s2131] sm:$0xff]
        %v2134 = vrot.slane %v2125, 3
        %v2136 = vrot.slane %v2125, 1
        %v2138 = vrot.slane %v2125, 7
        %v2141 = vrot.slane %v2125, 5
        %v2142 = vrot.slane %v2126, 5
        %v2143 = vsel %vm688, %v2141, %v2142
        %v2146 = vrot.slane %v2126, 3
        %v2148 = vrot.slane %v2126, 1
        %v2150 = vrot.slane %v2126, 7
        %v2152 = vsel %vm684, %v2134, %v2136
        %v2153 = vsel %vm674, %v2152, %v2138
        %v2154 = vsel %vm688, %v2153, %v2141
        %v2155 = vsel %vm688, %v2142, %v2146
        %v2156 = vsel %vm823, %v2155, %v2148
        %v2157 = vsel %vm788, %v2156, %v2150
        %v2160 = vrot.slane %v2154, 3
        %v2161 = vrot.slane %v2143, 3
        %v2162 = vsel %vm788, %v2160, %v2161
        %v2163 = vrot.slane %v2157, 3
        %v2164 = vsel %vm788, %v2161, %v2163
        %v2165 = vsel %vm1069, %v2162, 0
        %v2167 = vsel %vm1069, %v2164, 0
        %2169 = vmatpush.msra.mxu0 0.0
        %2170 = vmatpush.msra.mxu0 0.0
        %2171 = vmatpush.msra.mxu0 0.0
        %2172 = vmatpush.msra.mxu0 0.0
        %2173 = vmatpush.msra.mxu0 0.0
        %2174 = vmatpush.msra.mxu0 0.0
        %2175 = vmatpush.msra.mxu0 0.0
        %2176 = vmatpush.msra.mxu0 0.0
        %2177 = vmatpush.msra.mxu0 0.0
        %2178 = vmatpush.msra.mxu0 0.0
        %2179 = vmatpush.msra.mxu0 0.0
        %2180 = vmatpush.msra.mxu0 0.0
        %2181 = vmatpush.msra.mxu0 0.0
        %2182 = vmatpush.msra.mxu0 0.0
        %2183 = vmatpush.msra.mxu0 0.0
        %2184 = vmatpush.msra.mxu0 %v2130
        %2185 = vmatmul.f32.gmra.mxu0 %v2165
        %v2186 = vpop.f32.mrf.mxu0
        %v2187 = vadd.f32 0.0, %v2186
        %2188 = vmatmul.f32.gmra.mxu0 %v2167
        %v2189 = vpop.f32.mrf.mxu0
        %v2190 = vadd.f32 0.0, %v2189
        %2191 = vdwg.mxu0
        %v2192 = vsel %vm1069, %v2154, 0
        %v2194 = vsel %vm1069, %v2143, 0
        %2196 = vmatpush.msra.mxu0 0.0
        %2197 = vmatpush.msra.mxu0 0.0
        %2198 = vmatpush.msra.mxu0 0.0
        %2199 = vmatpush.msra.mxu0 0.0
        %2200 = vmatpush.msra.mxu0 0.0
        %2201 = vmatpush.msra.mxu0 0.0
        %2202 = vmatpush.msra.mxu0 0.0
        %2203 = vmatpush.msra.mxu0 0.0
        %2204 = vmatpush.msra.mxu0 0.0
        %2205 = vmatpush.msra.mxu0 0.0
        %2206 = vmatpush.msra.mxu0 0.0
        %2207 = vmatpush.msra.mxu0 0.0
        %2208 = vmatpush.msra.mxu0 0.0
        %2209 = vmatpush.msra.mxu0 0.0
        %2210 = vmatpush.msra.mxu0 0.0
        %2211 = vmatpush.msra.mxu0 %v2128
        %2212 = vmatmul.f32.gmra.mxu0 %v2192
        %v2213 = vpop.f32.mrf.mxu0
        %v2214 = vadd.f32 %v2187, %v2213
        %2215 = vmatmul.f32.gmra.mxu0 %v2194
        %v2216 = vpop.f32.mrf.mxu0
        %v2217 = vadd.f32 %v2190, %v2216
        %2218 = vdwg.mxu0
        %v2219 = vrot.slane %v2154, 6
        %v2220 = vrot.slane %v2143, 6
        %v2221 = vsel %vm674, %v2219, %v2220
        %v2222 = vrot.slane %v2157, 6
        %v2223 = vsel %vm674, %v2220, %v2222
        %v2224 = vsel %vm1069, %v2221, 0
        %v2226 = vsel %vm1069, %v2223, 0
        %2228 = vmatpush.msra.mxu0 0.0
        %2229 = vmatpush.msra.mxu0 0.0
        %2230 = vmatpush.msra.mxu0 0.0
        %2231 = vmatpush.msra.mxu0 0.0
        %2232 = vmatpush.msra.mxu0 0.0
        %2233 = vmatpush.msra.mxu0 0.0
        %2234 = vmatpush.msra.mxu0 0.0
        %2235 = vmatpush.msra.mxu0 0.0
        %2236 = vmatpush.msra.mxu0 0.0
        %2237 = vmatpush.msra.mxu0 0.0
        %2238 = vmatpush.msra.mxu0 0.0
        %2239 = vmatpush.msra.mxu0 0.0
        %2240 = vmatpush.msra.mxu0 0.0
        %2241 = vmatpush.msra.mxu0 0.0
        %2242 = vmatpush.msra.mxu0 0.0
        %2243 = vmatpush.msra.mxu0 %v2132
        %2244 = vmatmul.f32.gmra.mxu0 %v2224
        %v2245 = vpop.f32.mrf.mxu0
        %v2246 = vadd.f32 0.0, %v2245
        %2247 = vmatmul.f32.gmra.mxu0 %v2226
        %v2248 = vpop.f32.mrf.mxu0
        %v2249 = vadd.f32 0.0, %v2248
        %2250 = vdwg.mxu0
        %v2251 = vadd.f32 %v2214, %v2246
        %v2252 = vadd.f32 %v2217, %v2249
        %s2253 = scalar_lea.vmem %s6, 20
        %v2254 = vld [vmem:[%s2253] sm:$0x1]
        %v2255 = vperm.slane %v2254, 0
        %v2256 = vadd.f32 %v2251, %v2255
        %v2257 = vadd.f32 %v2252, %v2255
        %v2258 = vmax.f32 %v2256, 0.0
        %v2259 = vmax.f32 %v2257, 0.0
        %v2260 = vld [vmem:[%s2253 + $0x1] sm:$0x1]
        %v2261 = vperm.slane %v2260, 0
        %v2262 = vmul.f32 %v2258, %v2261
        %v2263 = vmul.f32 %v2259, %v2261
        %v2264 = vld [vmem:[%s2253 + $0x2] sm:$0x1]
        %v2265 = vperm.slane %v2264, 0
        %v2266 = vadd.f32 %v2262, %v2265
        %v2267 = vadd.f32 %v2263, %v2265
        %s2268 = scalar_lea.vmem %s7, 32
        %v2269 = vld [vmem:[%s2268] sm:$0xff]
        %s2270 = scalar_lea.vmem %s7, 40
        %v2271 = vld [vmem:[%s2270] sm:$0xff]
        %v2273 = vsel %vm1069, %v1980, 0
        %v2276 = vsel %vm1069, %v1981, 0
        %2278 = vmatpush.msra.mxu0 0.0
        %2279 = vmatpush.msra.mxu0 0.0
        %2280 = vmatpush.msra.mxu0 0.0
        %2281 = vmatpush.msra.mxu0 0.0
        %2282 = vmatpush.msra.mxu0 0.0
        %2283 = vmatpush.msra.mxu0 0.0
        %2284 = vmatpush.msra.mxu0 0.0
        %2285 = vmatpush.msra.mxu0 0.0
        %2286 = vmatpush.msra.mxu0 0.0
        %2287 = vmatpush.msra.mxu0 0.0
        %2288 = vmatpush.msra.mxu0 0.0
        %2289 = vmatpush.msra.mxu0 0.0
        %2290 = vmatpush.msra.mxu0 0.0
        %2291 = vmatpush.msra.mxu0 0.0
        %2292 = vmatpush.msra.mxu0 0.0
        %2293 = vmatpush.msra.mxu0 %v2271
        %2294 = vmatmul.f32.gmra.mxu0 %v2273
        %v2295 = vpop.f32.mrf.mxu0
        %v2296 = vadd.f32 0.0, %v2295
        %2297 = vmatmul.f32.gmra.mxu0 %v2276
        %v2298 = vpop.f32.mrf.mxu0
        %v2299 = vadd.f32 0.0, %v2298
        %2300 = vdwg.mxu0
        %v2302 = vsel %vm1069, %v1719, 0
        %v2305 = vsel %vm1069, %v1720, 0
        %2307 = vmatpush.msra.mxu0 0.0
        %2308 = vmatpush.msra.mxu0 0.0
        %2309 = vmatpush.msra.mxu0 0.0
        %2310 = vmatpush.msra.mxu0 0.0
        %2311 = vmatpush.msra.mxu0 0.0
        %2312 = vmatpush.msra.mxu0 0.0
        %2313 = vmatpush.msra.mxu0 0.0
        %2314 = vmatpush.msra.mxu0 0.0
        %2315 = vmatpush.msra.mxu0 0.0
        %2316 = vmatpush.msra.mxu0 0.0
        %2317 = vmatpush.msra.mxu0 0.0
        %2318 = vmatpush.msra.mxu0 0.0
        %2319 = vmatpush.msra.mxu0 0.0
        %2320 = vmatpush.msra.mxu0 0.0
        %2321 = vmatpush.msra.mxu0 0.0
        %2322 = vmatpush.msra.mxu0 %v2269
        %2323 = vmatmul.f32.gmra.mxu0 %v2302
        %v2324 = vpop.f32.mrf.mxu0
        %v2325 = vadd.f32 %v2296, %v2324
        %2326 = vmatmul.f32.gmra.mxu0 %v2305
        %v2327 = vpop.f32.mrf.mxu0
        %v2328 = vadd.f32 %v2299, %v2327
        %2329 = vdwg.mxu0
        %s2330 = scalar_lea.vmem %s7, 48
        %v2331 = vld [vmem:[%s2330] sm:$0xff]
        %v2333 = vsel %vm1069, %v2123, 0
        %v2336 = vsel %vm1069, %v2124, 0
        %2338 = vmatpush.msra.mxu0 0.0
        %2339 = vmatpush.msra.mxu0 0.0
        %2340 = vmatpush.msra.mxu0 0.0
        %2341 = vmatpush.msra.mxu0 0.0
        %2342 = vmatpush.msra.mxu0 0.0
        %2343 = vmatpush.msra.mxu0 0.0
        %2344 = vmatpush.msra.mxu0 0.0
        %2345 = vmatpush.msra.mxu0 0.0
        %2346 = vmatpush.msra.mxu0 0.0
        %2347 = vmatpush.msra.mxu0 0.0
        %2348 = vmatpush.msra.mxu0 0.0
        %2349 = vmatpush.msra.mxu0 0.0
        %2350 = vmatpush.msra.mxu0 0.0
        %2351 = vmatpush.msra.mxu0 0.0
        %2352 = vmatpush.msra.mxu0 0.0
        %2353 = vmatpush.msra.mxu0 %v2331
        %2354 = vmatmul.f32.gmra.mxu0 %v2333
        %v2355 = vpop.f32.mrf.mxu0
        %v2356 = vadd.f32 0.0, %v2355
        %2357 = vmatmul.f32.gmra.mxu0 %v2336
        %v2358 = vpop.f32.mrf.mxu0
        %v2359 = vadd.f32 0.0, %v2358
        %2360 = vdwg.mxu0
        %v2361 = vadd.f32 %v2325, %v2356
        %v2362 = vadd.f32 %v2328, %v2359
        %s2363 = scalar_lea.vmem %s7, 56
        %v2364 = vld [vmem:[%s2363] sm:$0xff]
        %v2366 = vsel %vm1069, %v2266, 0
        %v2369 = vsel %vm1069, %v2267, 0
        %2371 = vmatpush.msra.mxu0 0.0
        %2372 = vmatpush.msra.mxu0 0.0
        %2373 = vmatpush.msra.mxu0 0.0
        %2374 = vmatpush.msra.mxu0 0.0
        %2375 = vmatpush.msra.mxu0 0.0
        %2376 = vmatpush.msra.mxu0 0.0
        %2377 = vmatpush.msra.mxu0 0.0
        %2378 = vmatpush.msra.mxu0 0.0
        %2379 = vmatpush.msra.mxu0 0.0
        %2380 = vmatpush.msra.mxu0 0.0
        %2381 = vmatpush.msra.mxu0 0.0
        %2382 = vmatpush.msra.mxu0 0.0
        %2383 = vmatpush.msra.mxu0 0.0
        %2384 = vmatpush.msra.mxu0 0.0
        %2385 = vmatpush.msra.mxu0 0.0
        %2386 = vmatpush.msra.mxu0 %v2364
        %2387 = vmatmul.f32.gmra.mxu0 %v2366
        %v2388 = vpop.f32.mrf.mxu0
        %v2389 = vadd.f32 0.0, %v2388
        %2390 = vmatmul.f32.gmra.mxu0 %v2369
        %v2391 = vpop.f32.mrf.mxu0
        %v2392 = vadd.f32 0.0, %v2391
        %2393 = vdwg.mxu0
        %v2394 = vadd.f32 %v2361, %v2389
        %v2395 = vadd.f32 %v2362, %v2392
        %s2396 = scalar_lea.vmem %s8, 4
        %v2397 = vld [vmem:[%s2396] sm:$0x1]
        %v2398 = vperm.slane %v2397, 0
        %v2399 = vadd.f32 %v2394, %v2398
        %v2400 = vadd.f32 %v2395, %v2398
        %v2401 = vmax.f32 %v2399, 0.0
        %v2402 = vmax.f32 %v2400, 0.0
        %v2403 = vld [vmem:[%s2396 + $0x1] sm:$0x1]
        %v2404 = vperm.slane %v2403, 0
        %v2405 = vmul.f32 %v2401, %v2404
        %v2406 = vmul.f32 %v2402, %v2404
        %v2407 = vld [vmem:[%s2396 + $0x2] sm:$0x1]
        %v2408 = vperm.slane %v2407, 0
        %v2409 = vadd.f32 %v2405, %v2408
        %v2410 = vadd.f32 %v2406, %v2408
        %v2411 = vsel %vm878, %v2409, 0.0
        %v2412 = vsel %vm878, %v2410, 0.0
        %v2413 = vadd.f32 %v2411, %v2412
        %v2414 = vrot.slane %v2413, 4
        %v2415 = vadd.f32 %v2413, %v2414
        %v2416 = vrot.slane %v2415, 2
        %v2417 = vadd.f32 %v2415, %v2416
        %v2418 = vrot.slane %v2417, 1
        %v2419 = vadd.f32 %v2417, %v2418
        %v2420 = vmul.f32 %v2419, 0.0625
        %s2421 = scalar_lea.vmem %s9, 32
        %v2422 = vld [vmem:[%s2421] sm:$0xff]
        %v2423 = vld [vmem:[%s2421 + $0x8] sm:$0xff]
        %v2424 = vld [vmem:[%s2421 + $0x10] sm:$0xff]
        %v2425 = vld [vmem:[%s2421 + $0x18] sm:$0xff]
        %v2426 = vld [vmem:[%s10 + $0x1] sm:$0x1]
        %v2428 = vsel %vm878, %v2420, 0
        %2430 = vmatpush.msra.mxu0 0.0
        %2431 = vmatpush.msra.mxu0 0.0
        %2432 = vmatpush.msra.mxu0 0.0
        %2433 = vmatpush.msra.mxu0 0.0
        %2434 = vmatpush.msra.mxu0 0.0
        %2435 = vmatpush.msra.mxu0 0.0
        %2436 = vmatpush.msra.mxu0 0.0
        %2437 = vmatpush.msra.mxu0 0.0
        %2438 = vmatpush.msra.mxu0 0.0
        %2439 = vmatpush.msra.mxu0 0.0
        %2440 = vmatpush.msra.mxu0 0.0
        %2441 = vmatpush.msra.mxu0 0.0
        %2442 = vmatpush.msra.mxu0 %v2425
        %2443 = vmatpush.msra.mxu0 %v2424
        %2444 = vmatpush.msra.mxu0 %v2423
        %2445 = vmatpush.msra.mxu0 %v2422
        %2446 = vmatmul.f32.gmra.mxu0 %v2428
        %v2447 = vpop.f32.mrf.mxu0
        %v2448 = vadd.f32 %v2426, %v2447
        %2449 = vdwg.mxu0
        %v2450 = vmax.f32 %v2448, 0.0
        %s2451 = scalar_lea.vmem %s11, 16
        %v2452 = vld [vmem:[%s2451] sm:$0xff]
        %v2453 = vld [vmem:[%s2451 + $0x8] sm:$0xff]
        %v2454 = vld [vmem:[%s12 + $0x1] sm:$0x1]
        %v2456 = vsel %vm698, %v2450, 0
        %2458 = vmatpush.msra.mxu0 0.0
        %2459 = vmatpush.msra.mxu0 0.0
        %2460 = vmatpush.msra.mxu0 0.0
        %2461 = vmatpush.msra.mxu0 0.0
        %2462 = vmatpush.msra.mxu0 0.0
        %2463 = vmatpush.msra.mxu0 0.0
        %2464 = vmatpush.msra.mxu0 0.0
        %2465 = vmatpush.msra.mxu0 0.0
        %2466 = vmatpush.msra.mxu0 0.0
        %2467 = vmatpush.msra.mxu0 0.0
        %2468 = vmatpush.msra.mxu0 0.0
        %2469 = vmatpush.msra.mxu0 0.0
        %2470 = vmatpush.msra.mxu0 0.0
        %2471 = vmatpush.msra.mxu0 0.0
        %2472 = vmatpush.msra.mxu0 %v2453
        %2473 = vmatpush.msra.mxu0 %v2452
        %2474 = vmatmul.f32.gmra.mxu0 %v2456
        %v2475 = vpop.f32.mrf.mxu0
        %v2476 = vadd.f32 %v2454, %v2475
        %2477 = vdwg.mxu0
        %v2478 = vxor.u32 %v2476, 2147483648
        %v2479 = vmul.f32 %v2478, 1.442695
        %v2480 = vpow.pop %v2479
        %v2481 = vadd.f32 %v2480, 1.0
        %v2482 = vrcp.pop %v2481
        %v2483 = vmul.f32 %v2481, %v2482
        %v2484 = vsub.f32 1.0, %v2483
        %v2485 = vmul.f32 %v2482, %v2484
        %v2486 = vadd.f32 %v2482, %v2485
        %vm2487 = vweird.f32 %v2481
        %vm2488 = vweird.f32 %v2482
        %vm2489 = vmor %vm2487, %vm2488
        %v2490 = vsel %vm2489, %v2482, %v2486
        %v2491 = vand.u32 2147483647, %v2481
        %vm2492 = vcmp.eq.f32.partialorder %v2491, 8.507059e+37
        %v2493 = vand.u32 %v2481, 2147483648
        %v2494 = vor.u32 1.1754944e-38, %v2493
        %v2495 = vsel %vm2492, %v2494, %v2490
        %v2496 = vmul.f32 1.0, %v2495
        %v2497 = vperm.slane %v2496, 0
        %v2498 = vmul.f32 %v2409, %v2497
        %v2499 = vmul.f32 %v2410, %v2497
        %v2500 = vadd.f32 %v2498, %v1670
        %v2501 = vadd.f32 %v2499, %v1671
        %s2502 = scalar_lea.vmem %s3, 256
        %v2503 = vld [vmem:[%s2502] sm:$0xff]
        %v2504 = vld [vmem:[%s2502 + $0x8] sm:$0xff]
        %v2505 = vld [vmem:[%s2502 + $0x10] sm:$0xff]
        %v2506 = vld [vmem:[%s2502 + $0x18] sm:$0xff]
        %s2507 = scalar_lea.vmem %s4, 24
        %v2508 = vld [vmem:[%s2507] sm:$0x1]
        %v2509 = vperm.slane %v2508, 0
        %v2511 = vsel %vm878, %v2500, 0
        %v2514 = vsel %vm878, %v2501, 0
        %2516 = vmatpush.msra.mxu0 0.0
        %2517 = vmatpush.msra.mxu0 0.0
        %2518 = vmatpush.msra.mxu0 0.0
        %2519 = vmatpush.msra.mxu0 0.0
        %2520 = vmatpush.msra.mxu0 0.0
        %2521 = vmatpush.msra.mxu0 0.0
        %2522 = vmatpush.msra.mxu0 0.0
        %2523 = vmatpush.msra.mxu0 0.0
        %2524 = vmatpush.msra.mxu0 0.0
        %2525 = vmatpush.msra.mxu0 0.0
        %2526 = vmatpush.msra.mxu0 0.0
        %2527 = vmatpush.msra.mxu0 0.0
        %2528 = vmatpush.msra.mxu0 %v2506
        %2529 = vmatpush.msra.mxu0 %v2505
        %2530 = vmatpush.msra.mxu0 %v2504
        %2531 = vmatpush.msra.mxu0 %v2503
        %2532 = vmatmul.f32.gmra.mxu0 %v2511
        %v2533 = vpop.f32.mrf.mxu0
        %v2534 = vadd.f32 %v2509, %v2533
        %2535 = vmatmul.f32.gmra.mxu0 %v2514
        %v2536 = vpop.f32.mrf.mxu0
        %v2537 = vadd.f32 %v2509, %v2536
        %2538 = vdwg.mxu0
        %v2539 = vmax.f32 %v2534, 0.0
        %v2540 = vmax.f32 %v2537, 0.0
        %s2541 = scalar_lea.vmem %s4, 28
        %v2542 = vld [vmem:[%s2541] sm:$0x1]
        %v2543 = vperm.slane %v2542, 0
        %v2544 = vmul.f32 %v2539, %v2543
        %v2545 = vmul.f32 %v2540, %v2543
        %s2546 = scalar_lea.vmem %s4, 32
        %v2547 = vld [vmem:[%s2546] sm:$0x1]
        %v2548 = vperm.slane %v2547, 0
        %v2549 = vadd.f32 %v2544, %v2548
        %v2550 = vadd.f32 %v2545, %v2548
        %s2551 = scalar_lea.vmem %s3, 288
        %v2552 = vld [vmem:[%s2551] sm:$0xff]
        %v2553 = vld [vmem:[%s2551 + $0x8] sm:$0xff]
        %v2554 = vld [vmem:[%s2551 + $0x10] sm:$0xff]
        %v2555 = vld [vmem:[%s2551 + $0x18] sm:$0xff]
        %v2556 = vld [vmem:[%s2507 + $0x1] sm:$0x1]
        %v2557 = vperm.slane %v2556, 0
        %2558 = vmatpush.msra.mxu0 0.0
        %2559 = vmatpush.msra.mxu0 0.0
        %2560 = vmatpush.msra.mxu0 0.0
        %2561 = vmatpush.msra.mxu0 0.0
        %2562 = vmatpush.msra.mxu0 0.0
        %2563 = vmatpush.msra.mxu0 0.0
        %2564 = vmatpush.msra.mxu0 0.0
        %2565 = vmatpush.msra.mxu0 0.0
        %2566 = vmatpush.msra.mxu0 0.0
        %2567 = vmatpush.msra.mxu0 0.0
        %2568 = vmatpush.msra.mxu0 0.0
        %2569 = vmatpush.msra.mxu0 0.0
        %2570 = vmatpush.msra.mxu0 %v2555
        %2571 = vmatpush.msra.mxu0 %v2554
        %2572 = vmatpush.msra.mxu0 %v2553
        %2573 = vmatpush.msra.mxu0 %v2552
        %2574 = vmatmul.f32.gmra.mxu0 %v2511
        %v2575 = vpop.f32.mrf.mxu0
        %v2576 = vadd.f32 %v2557, %v2575
        %2577 = vmatmul.f32.gmra.mxu0 %v2514
        %v2578 = vpop.f32.mrf.mxu0
        %v2579 = vadd.f32 %v2557, %v2578
        %2580 = vdwg.mxu0
        %v2581 = vmax.f32 %v2576, 0.0
        %v2582 = vmax.f32 %v2579, 0.0
        %v2583 = vld [vmem:[%s2541 + $0x1] sm:$0x1]
        %v2584 = vperm.slane %v2583, 0
        %v2585 = vmul.f32 %v2581, %v2584
        %v2586 = vmul.f32 %v2582, %v2584
        %v2587 = vld [vmem:[%s2546 + $0x1] sm:$0x1]
        %v2588 = vperm.slane %v2587, 0
        %v2589 = vadd.f32 %v2585, %v2588
        %v2590 = vadd.f32 %v2586, %v2588
        %s2591 = scalar_lea.vmem %s3, 320
        %v2592 = vld [vmem:[%s2591] sm:$0xff]
        %v2593 = vld [vmem:[%s2591 + $0x8] sm:$0xff]
        %v2594 = vld [vmem:[%s2591 + $0x10] sm:$0xff]
        %v2595 = vld [vmem:[%s2591 + $0x18] sm:$0xff]
        %v2596 = vld [vmem:[%s2507 + $0x2] sm:$0x1]
        %v2597 = vperm.slane %v2596, 0
        %2598 = vmatpush.msra.mxu0 0.0
        %2599 = vmatpush.msra.mxu0 0.0
        %2600 = vmatpush.msra.mxu0 0.0
        %2601 = vmatpush.msra.mxu0 0.0
        %2602 = vmatpush.msra.mxu0 0.0
        %2603 = vmatpush.msra.mxu0 0.0
        %2604 = vmatpush.msra.mxu0 0.0
        %2605 = vmatpush.msra.mxu0 0.0
        %2606 = vmatpush.msra.mxu0 0.0
        %2607 = vmatpush.msra.mxu0 0.0
        %2608 = vmatpush.msra.mxu0 0.0
        %2609 = vmatpush.msra.mxu0 0.0
        %2610 = vmatpush.msra.mxu0 %v2595
        %2611 = vmatpush.msra.mxu0 %v2594
        %2612 = vmatpush.msra.mxu0 %v2593
        %2613 = vmatpush.msra.mxu0 %v2592
        %2614 = vmatmul.f32.gmra.mxu0 %v2511
        %v2615 = vpop.f32.mrf.mxu0
        %v2616 = vadd.f32 %v2597, %v2615
        %2617 = vmatmul.f32.gmra.mxu0 %v2514
        %v2618 = vpop.f32.mrf.mxu0
        %v2619 = vadd.f32 %v2597, %v2618
        %2620 = vdwg.mxu0
        %v2621 = vmax.f32 %v2616, 0.0
        %v2622 = vmax.f32 %v2619, 0.0
        %v2623 = vld [vmem:[%s2541 + $0x2] sm:$0x1]
        %v2624 = vperm.slane %v2623, 0
        %v2625 = vmul.f32 %v2621, %v2624
        %v2626 = vmul.f32 %v2622, %v2624
        %v2627 = vld [vmem:[%s2546 + $0x2] sm:$0x1]
        %v2628 = vperm.slane %v2627, 0
        %v2629 = vadd.f32 %v2625, %v2628
        %v2630 = vadd.f32 %v2626, %v2628
        %s2631 = scalar_lea.vmem %s3, 352
        %v2632 = vld [vmem:[%s2631] sm:$0xff]
        %v2633 = vld [vmem:[%s2631 + $0x8] sm:$0xff]
        %v2634 = vld [vmem:[%s2631 + $0x10] sm:$0xff]
        %v2635 = vld [vmem:[%s2631 + $0x18] sm:$0xff]
        %v2636 = vld [vmem:[%s2507 + $0x3] sm:$0x1]
        %v2637 = vperm.slane %v2636, 0
        %2638 = vmatpush.msra.mxu0 0.0
        %2639 = vmatpush.msra.mxu0 0.0
        %2640 = vmatpush.msra.mxu0 0.0
        %2641 = vmatpush.msra.mxu0 0.0
        %2642 = vmatpush.msra.mxu0 0.0
        %2643 = vmatpush.msra.mxu0 0.0
        %2644 = vmatpush.msra.mxu0 0.0
        %2645 = vmatpush.msra.mxu0 0.0
        %2646 = vmatpush.msra.mxu0 0.0
        %2647 = vmatpush.msra.mxu0 0.0
        %2648 = vmatpush.msra.mxu0 0.0
        %2649 = vmatpush.msra.mxu0 0.0
        %2650 = vmatpush.msra.mxu0 %v2635
        %2651 = vmatpush.msra.mxu0 %v2634
        %2652 = vmatpush.msra.mxu0 %v2633
        %2653 = vmatpush.msra.mxu0 %v2632
        %2654 = vmatmul.f32.gmra.mxu0 %v2511
        %v2655 = vpop.f32.mrf.mxu0
        %v2656 = vadd.f32 %v2637, %v2655
        %2657 = vmatmul.f32.gmra.mxu0 %v2514
        %v2658 = vpop.f32.mrf.mxu0
        %v2659 = vadd.f32 %v2637, %v2658
        %2660 = vdwg.mxu0
        %v2661 = vmax.f32 %v2656, 0.0
        %v2662 = vmax.f32 %v2659, 0.0
        %v2663 = vld [vmem:[%s2541 + $0x3] sm:$0x1]
        %v2664 = vperm.slane %v2663, 0
        %v2665 = vmul.f32 %v2661, %v2664
        %v2666 = vmul.f32 %v2662, %v2664
        %v2667 = vld [vmem:[%s2546 + $0x3] sm:$0x1]
        %v2668 = vperm.slane %v2667, 0
        %v2669 = vadd.f32 %v2665, %v2668
        %v2670 = vadd.f32 %v2666, %v2668
        %s2671 = scalar_lea.vmem %s5, 144
        %v2672 = vld [vmem:[%s2671] sm:$0xff]
        %s2673 = scalar_lea.vmem %s5, 152
        %v2674 = vld [vmem:[%s2673] sm:$0xff]
        %s2675 = scalar_lea.vmem %s5, 160
        %v2676 = vld [vmem:[%s2675] sm:$0xff]
        %v2678 = vrot.slane %v2589, 4
        %v2680 = vrot.slane %v2589, 2
        %v2682 = vrot.slane %v2589, 6
        %v2685 = vrot.slane %v2590, 4
        %v2686 = vsel %vm823, %v2678, %v2685
        %v2688 = vrot.slane %v2590, 2
        %v2690 = vrot.slane %v2590, 6
        %v2692 = vsel %vm684, %v2678, %v2680
        %v2693 = vsel %vm674, %v2692, %v2589
        %v2694 = vsel %vm688, %v2693, %v2682
        %v2695 = vsel %vm823, %v2694, %v2678
        %v2696 = vsel %vm823, %v2685, %v2688
        %v2697 = vsel %vm788, %v2696, %v2590
        %v2698 = vsel %vm753, %v2697, %v2690
        %v2699 = vsel %vm692, %v2698, %v2685
        %v2702 = vrot.slane %v2695, 4
        %v2703 = vrot.slane %v2686, 4
        %v2704 = vsel %vm823, %v2702, %v2703
        %v2705 = vrot.slane %v2699, 4
        %v2706 = vsel %vm823, %v2703, %v2705
        %v2707 = vsel %vm1069, %v2704, 0
        %v2709 = vsel %vm1069, %v2706, 0
        %2711 = vmatpush.msra.mxu0 0.0
        %2712 = vmatpush.msra.mxu0 0.0
        %2713 = vmatpush.msra.mxu0 0.0
        %2714 = vmatpush.msra.mxu0 0.0
        %2715 = vmatpush.msra.mxu0 0.0
        %2716 = vmatpush.msra.mxu0 0.0
        %2717 = vmatpush.msra.mxu0 0.0
        %2718 = vmatpush.msra.mxu0 0.0
        %2719 = vmatpush.msra.mxu0 0.0
        %2720 = vmatpush.msra.mxu0 0.0
        %2721 = vmatpush.msra.mxu0 0.0
        %2722 = vmatpush.msra.mxu0 0.0
        %2723 = vmatpush.msra.mxu0 0.0
        %2724 = vmatpush.msra.mxu0 0.0
        %2725 = vmatpush.msra.mxu0 0.0
        %2726 = vmatpush.msra.mxu0 %v2674
        %2727 = vmatmul.f32.gmra.mxu0 %v2707
        %v2728 = vpop.f32.mrf.mxu0
        %v2729 = vadd.f32 0.0, %v2728
        %2730 = vmatmul.f32.gmra.mxu0 %v2709
        %v2731 = vpop.f32.mrf.mxu0
        %v2732 = vadd.f32 0.0, %v2731
        %2733 = vdwg.mxu0
        %v2734 = vsel %vm1069, %v2695, 0
        %v2736 = vsel %vm1069, %v2686, 0
        %2738 = vmatpush.msra.mxu0 0.0
        %2739 = vmatpush.msra.mxu0 0.0
        %2740 = vmatpush.msra.mxu0 0.0
        %2741 = vmatpush.msra.mxu0 0.0
        %2742 = vmatpush.msra.mxu0 0.0
        %2743 = vmatpush.msra.mxu0 0.0
        %2744 = vmatpush.msra.mxu0 0.0
        %2745 = vmatpush.msra.mxu0 0.0
        %2746 = vmatpush.msra.mxu0 0.0
        %2747 = vmatpush.msra.mxu0 0.0
        %2748 = vmatpush.msra.mxu0 0.0
        %2749 = vmatpush.msra.mxu0 0.0
        %2750 = vmatpush.msra.mxu0 0.0
        %2751 = vmatpush.msra.mxu0 0.0
        %2752 = vmatpush.msra.mxu0 0.0
        %2753 = vmatpush.msra.mxu0 %v2672
        %2754 = vmatmul.f32.gmra.mxu0 %v2734
        %v2755 = vpop.f32.mrf.mxu0
        %v2756 = vadd.f32 %v2729, %v2755
        %2757 = vmatmul.f32.gmra.mxu0 %v2736
        %v2758 = vpop.f32.mrf.mxu0
        %v2759 = vadd.f32 %v2732, %v2758
        %2760 = vdwg.mxu0
        %v2761 = vsel %vm1069, %v2699, 0
        %2763 = vmatpush.msra.mxu0 0.0
        %2764 = vmatpush.msra.mxu0 0.0
        %2765 = vmatpush.msra.mxu0 0.0
        %2766 = vmatpush.msra.mxu0 0.0
        %2767 = vmatpush.msra.mxu0 0.0
        %2768 = vmatpush.msra.mxu0 0.0
        %2769 = vmatpush.msra.mxu0 0.0
        %2770 = vmatpush.msra.mxu0 0.0
        %2771 = vmatpush.msra.mxu0 0.0
        %2772 = vmatpush.msra.mxu0 0.0
        %2773 = vmatpush.msra.mxu0 0.0
        %2774 = vmatpush.msra.mxu0 0.0
        %2775 = vmatpush.msra.mxu0 0.0
        %2776 = vmatpush.msra.mxu0 0.0
        %2777 = vmatpush.msra.mxu0 0.0
        %2778 = vmatpush.msra.mxu0 %v2676
        %2779 = vmatmul.f32.gmra.mxu0 %v2736
        %v2780 = vpop.f32.mrf.mxu0
        %v2781 = vadd.f32 0.0, %v2780
        %2782 = vmatmul.f32.gmra.mxu0 %v2761
        %v2783 = vpop.f32.mrf.mxu0
        %v2784 = vadd.f32 0.0, %v2783
        %2785 = vdwg.mxu0
        %v2786 = vadd.f32 %v2756, %v2781
        %v2787 = vadd.f32 %v2759, %v2784
        %s2788 = scalar_lea.vmem %s6, 24
        %v2789 = vld [vmem:[%s2788] sm:$0x1]
        %v2790 = vperm.slane %v2789, 0
        %v2791 = vadd.f32 %v2786, %v2790
        %v2792 = vadd.f32 %v2787, %v2790
        %v2793 = vmax.f32 %v2791, 0.0
        %v2794 = vmax.f32 %v2792, 0.0
        %v2795 = vld [vmem:[%s2788 + $0x1] sm:$0x1]
        %v2796 = vperm.slane %v2795, 0
        %v2797 = vmul.f32 %v2793, %v2796
        %v2798 = vmul.f32 %v2794, %v2796
        %v2799 = vld [vmem:[%s2788 + $0x2] sm:$0x1]
        %v2800 = vperm.slane %v2799, 0
        %v2801 = vadd.f32 %v2797, %v2800
        %v2802 = vadd.f32 %v2798, %v2800
        %v2803 = vadd.f32 %v2629, %v2801
        %v2804 = vadd.f32 %v2630, %v2802
        %s2805 = scalar_lea.vmem %s5, 168
        %v2806 = vld [vmem:[%s2805] sm:$0xff]
        %s2807 = scalar_lea.vmem %s5, 176
        %v2808 = vld [vmem:[%s2807] sm:$0xff]
        %s2809 = scalar_lea.vmem %s5, 184
        %v2810 = vld [vmem:[%s2809] sm:$0xff]
        %v2812 = vrot.slane %v2803, 4
        %v2814 = vrot.slane %v2803, 2
        %v2816 = vrot.slane %v2803, 6
        %v2819 = vrot.slane %v2804, 4
        %v2820 = vsel %vm823, %v2812, %v2819
        %v2822 = vrot.slane %v2804, 2
        %v2824 = vrot.slane %v2804, 6
        %v2826 = vsel %vm684, %v2812, %v2814
        %v2827 = vsel %vm674, %v2826, %v2803
        %v2828 = vsel %vm688, %v2827, %v2816
        %v2829 = vsel %vm823, %v2828, %v2812
        %v2830 = vsel %vm823, %v2819, %v2822
        %v2831 = vsel %vm788, %v2830, %v2804
        %v2832 = vsel %vm753, %v2831, %v2824
        %v2833 = vsel %vm692, %v2832, %v2819
        %v2836 = vrot.slane %v2829, 4
        %v2837 = vrot.slane %v2820, 4
        %v2838 = vsel %vm823, %v2836, %v2837
        %v2839 = vrot.slane %v2833, 4
        %v2840 = vsel %vm823, %v2837, %v2839
        %v2841 = vsel %vm1069, %v2838, 0
        %v2843 = vsel %vm1069, %v2840, 0
        %2845 = vmatpush.msra.mxu0 0.0
        %2846 = vmatpush.msra.mxu0 0.0
        %2847 = vmatpush.msra.mxu0 0.0
        %2848 = vmatpush.msra.mxu0 0.0
        %2849 = vmatpush.msra.mxu0 0.0
        %2850 = vmatpush.msra.mxu0 0.0
        %2851 = vmatpush.msra.mxu0 0.0
        %2852 = vmatpush.msra.mxu0 0.0
        %2853 = vmatpush.msra.mxu0 0.0
        %2854 = vmatpush.msra.mxu0 0.0
        %2855 = vmatpush.msra.mxu0 0.0
        %2856 = vmatpush.msra.mxu0 0.0
        %2857 = vmatpush.msra.mxu0 0.0
        %2858 = vmatpush.msra.mxu0 0.0
        %2859 = vmatpush.msra.mxu0 0.0
        %2860 = vmatpush.msra.mxu0 %v2808
        %2861 = vmatmul.f32.gmra.mxu0 %v2841
        %v2862 = vpop.f32.mrf.mxu0
        %v2863 = vadd.f32 0.0, %v2862
        %2864 = vmatmul.f32.gmra.mxu0 %v2843
        %v2865 = vpop.f32.mrf.mxu0
        %v2866 = vadd.f32 0.0, %v2865
        %2867 = vdwg.mxu0
        %v2868 = vsel %vm1069, %v2829, 0
        %v2870 = vsel %vm1069, %v2820, 0
        %2872 = vmatpush.msra.mxu0 0.0
        %2873 = vmatpush.msra.mxu0 0.0
        %2874 = vmatpush.msra.mxu0 0.0
        %2875 = vmatpush.msra.mxu0 0.0
        %2876 = vmatpush.msra.mxu0 0.0
        %2877 = vmatpush.msra.mxu0 0.0
        %2878 = vmatpush.msra.mxu0 0.0
        %2879 = vmatpush.msra.mxu0 0.0
        %2880 = vmatpush.msra.mxu0 0.0
        %2881 = vmatpush.msra.mxu0 0.0
        %2882 = vmatpush.msra.mxu0 0.0
        %2883 = vmatpush.msra.mxu0 0.0
        %2884 = vmatpush.msra.mxu0 0.0
        %2885 = vmatpush.msra.mxu0 0.0
        %2886 = vmatpush.msra.mxu0 0.0
        %2887 = vmatpush.msra.mxu0 %v2806
        %2888 = vmatmul.f32.gmra.mxu0 %v2868
        %v2889 = vpop.f32.mrf.mxu0
        %v2890 = vadd.f32 %v2863, %v2889
        %2891 = vmatmul.f32.gmra.mxu0 %v2870
        %v2892 = vpop.f32.mrf.mxu0
        %v2893 = vadd.f32 %v2866, %v2892
        %2894 = vdwg.mxu0
        %v2895 = vsel %vm1069, %v2833, 0
        %2897 = vmatpush.msra.mxu0 0.0
        %2898 = vmatpush.msra.mxu0 0.0
        %2899 = vmatpush.msra.mxu0 0.0
        %2900 = vmatpush.msra.mxu0 0.0
        %2901 = vmatpush.msra.mxu0 0.0
        %2902 = vmatpush.msra.mxu0 0.0
        %2903 = vmatpush.msra.mxu0 0.0
        %2904 = vmatpush.msra.mxu0 0.0
        %2905 = vmatpush.msra.mxu0 0.0
        %2906 = vmatpush.msra.mxu0 0.0
        %2907 = vmatpush.msra.mxu0 0.0
        %2908 = vmatpush.msra.mxu0 0.0
        %2909 = vmatpush.msra.mxu0 0.0
        %2910 = vmatpush.msra.mxu0 0.0
        %2911 = vmatpush.msra.mxu0 0.0
        %2912 = vmatpush.msra.mxu0 %v2810
        %2913 = vmatmul.f32.gmra.mxu0 %v2870
        %v2914 = vpop.f32.mrf.mxu0
        %v2915 = vadd.f32 0.0, %v2914
        %2916 = vmatmul.f32.gmra.mxu0 %v2895
        %v2917 = vpop.f32.mrf.mxu0
        %v2918 = vadd.f32 0.0, %v2917
        %2919 = vdwg.mxu0
        %v2920 = vadd.f32 %v2890, %v2915
        %v2921 = vadd.f32 %v2893, %v2918
        %s2922 = scalar_lea.vmem %s6, 28
        %v2923 = vld [vmem:[%s2922] sm:$0x1]
        %v2924 = vperm.slane %v2923, 0
        %v2925 = vadd.f32 %v2920, %v2924
        %v2926 = vadd.f32 %v2921, %v2924
        %v2927 = vmax.f32 %v2925, 0.0
        %v2928 = vmax.f32 %v2926, 0.0
        %v2929 = vld [vmem:[%s2922 + $0x1] sm:$0x1]
        %v2930 = vperm.slane %v2929, 0
        %v2931 = vmul.f32 %v2927, %v2930
        %v2932 = vmul.f32 %v2928, %v2930
        %v2933 = vld [vmem:[%s2922 + $0x2] sm:$0x1]
        %v2934 = vperm.slane %v2933, 0
        %v2935 = vadd.f32 %v2931, %v2934
        %v2936 = vadd.f32 %v2932, %v2934
        %v2937 = vadd.f32 %v2669, %v2935
        %v2938 = vadd.f32 %v2670, %v2936
        %s2939 = scalar_lea.vmem %s5, 192
        %v2940 = vld [vmem:[%s2939] sm:$0xff]
        %s2941 = scalar_lea.vmem %s5, 200
        %v2942 = vld [vmem:[%s2941] sm:$0xff]
        %s2943 = scalar_lea.vmem %s5, 208
        %v2944 = vld [vmem:[%s2943] sm:$0xff]
        %v2946 = vrot.slane %v2937, 4
        %v2948 = vrot.slane %v2937, 2
        %v2950 = vrot.slane %v2937, 6
        %v2953 = vrot.slane %v2938, 4
        %v2954 = vsel %vm823, %v2946, %v2953
        %v2956 = vrot.slane %v2938, 2
        %v2958 = vrot.slane %v2938, 6
        %v2960 = vsel %vm684, %v2946, %v2948
        %v2961 = vsel %vm674, %v2960, %v2937
        %v2962 = vsel %vm688, %v2961, %v2950
        %v2963 = vsel %vm823, %v2962, %v2946
        %v2964 = vsel %vm823, %v2953, %v2956
        %v2965 = vsel %vm788, %v2964, %v2938
        %v2966 = vsel %vm753, %v2965, %v2958
        %v2967 = vsel %vm692, %v2966, %v2953
        %v2970 = vrot.slane %v2963, 4
        %v2971 = vrot.slane %v2954, 4
        %v2972 = vsel %vm823, %v2970, %v2971
        %v2973 = vrot.slane %v2967, 4
        %v2974 = vsel %vm823, %v2971, %v2973
        %v2975 = vsel %vm1069, %v2972, 0
        %v2977 = vsel %vm1069, %v2974, 0
        %2979 = vmatpush.msra.mxu0 0.0
        %2980 = vmatpush.msra.mxu0 0.0
        %2981 = vmatpush.msra.mxu0 0.0
        %2982 = vmatpush.msra.mxu0 0.0
        %2983 = vmatpush.msra.mxu0 0.0
        %2984 = vmatpush.msra.mxu0 0.0
        %2985 = vmatpush.msra.mxu0 0.0
        %2986 = vmatpush.msra.mxu0 0.0
        %2987 = vmatpush.msra.mxu0 0.0
        %2988 = vmatpush.msra.mxu0 0.0
        %2989 = vmatpush.msra.mxu0 0.0
        %2990 = vmatpush.msra.mxu0 0.0
        %2991 = vmatpush.msra.mxu0 0.0
        %2992 = vmatpush.msra.mxu0 0.0
        %2993 = vmatpush.msra.mxu0 0.0
        %2994 = vmatpush.msra.mxu0 %v2942
        %2995 = vmatmul.f32.gmra.mxu0 %v2975
        %v2996 = vpop.f32.mrf.mxu0
        %v2997 = vadd.f32 0.0, %v2996
        %2998 = vmatmul.f32.gmra.mxu0 %v2977
        %v2999 = vpop.f32.mrf.mxu0
        %v3000 = vadd.f32 0.0, %v2999
        %3001 = vdwg.mxu0
        %v3002 = vsel %vm1069, %v2963, 0
        %v3004 = vsel %vm1069, %v2954, 0
        %3006 = vmatpush.msra.mxu0 0.0
        %3007 = vmatpush.msra.mxu0 0.0
        %3008 = vmatpush.msra.mxu0 0.0
        %3009 = vmatpush.msra.mxu0 0.0
        %3010 = vmatpush.msra.mxu0 0.0
        %3011 = vmatpush.msra.mxu0 0.0
        %3012 = vmatpush.msra.mxu0 0.0
        %3013 = vmatpush.msra.mxu0 0.0
        %3014 = vmatpush.msra.mxu0 0.0
        %3015 = vmatpush.msra.mxu0 0.0
        %3016 = vmatpush.msra.mxu0 0.0
        %3017 = vmatpush.msra.mxu0 0.0
        %3018 = vmatpush.msra.mxu0 0.0
        %3019 = vmatpush.msra.mxu0 0.0
        %3020 = vmatpush.msra.mxu0 0.0
        %3021 = vmatpush.msra.mxu0 %v2940
        %3022 = vmatmul.f32.gmra.mxu0 %v3002
        %v3023 = vpop.f32.mrf.mxu0
        %v3024 = vadd.f32 %v2997, %v3023
        %3025 = vmatmul.f32.gmra.mxu0 %v3004
        %v3026 = vpop.f32.mrf.mxu0
        %v3027 = vadd.f32 %v3000, %v3026
        %3028 = vdwg.mxu0
        %v3029 = vsel %vm1069, %v2967, 0
        %3031 = vmatpush.msra.mxu0 0.0
        %3032 = vmatpush.msra.mxu0 0.0
        %3033 = vmatpush.msra.mxu0 0.0
        %3034 = vmatpush.msra.mxu0 0.0
        %3035 = vmatpush.msra.mxu0 0.0
        %3036 = vmatpush.msra.mxu0 0.0
        %3037 = vmatpush.msra.mxu0 0.0
        %3038 = vmatpush.msra.mxu0 0.0
        %3039 = vmatpush.msra.mxu0 0.0
        %3040 = vmatpush.msra.mxu0 0.0
        %3041 = vmatpush.msra.mxu0 0.0
        %3042 = vmatpush.msra.mxu0 0.0
        %3043 = vmatpush.msra.mxu0 0.0
        %3044 = vmatpush.msra.mxu0 0.0
        %3045 = vmatpush.msra.mxu0 0.0
        %3046 = vmatpush.msra.mxu0 %v2944
        %3047 = vmatmul.f32.gmra.mxu0 %v3004
        %v3048 = vpop.f32.mrf.mxu0
        %v3049 = vadd.f32 0.0, %v3048
        %3050 = vmatmul.f32.gmra.mxu0 %v3029
        %v3051 = vpop.f32.mrf.mxu0
        %v3052 = vadd.f32 0.0, %v3051
        %3053 = vdwg.mxu0
        %v3054 = vadd.f32 %v3024, %v3049
        %v3055 = vadd.f32 %v3027, %v3052
        %s3056 = scalar_lea.vmem %s6, 32
        %v3057 = vld [vmem:[%s3056] sm:$0x1]
        %v3058 = vperm.slane %v3057, 0
        %v3059 = vadd.f32 %v3054, %v3058
        %v3060 = vadd.f32 %v3055, %v3058
        %v3061 = vmax.f32 %v3059, 0.0
        %v3062 = vmax.f32 %v3060, 0.0
        %v3063 = vld [vmem:[%s3056 + $0x1] sm:$0x1]
        %v3064 = vperm.slane %v3063, 0
        %v3065 = vmul.f32 %v3061, %v3064
        %v3066 = vmul.f32 %v3062, %v3064
        %v3067 = vld [vmem:[%s3056 + $0x2] sm:$0x1]
        %v3068 = vperm.slane %v3067, 0
        %v3069 = vadd.f32 %v3065, %v3068
        %v3070 = vadd.f32 %v3066, %v3068
        %s3071 = scalar_lea.vmem %s7, 64
        %v3072 = vld [vmem:[%s3071] sm:$0xff]
        %s3073 = scalar_lea.vmem %s7, 72
        %v3074 = vld [vmem:[%s3073] sm:$0xff]
        %v3076 = vsel %vm1069, %v2801, 0
        %v3079 = vsel %vm1069, %v2802, 0
        %3081 = vmatpush.msra.mxu0 0.0
        %3082 = vmatpush.msra.mxu0 0.0
        %3083 = vmatpush.msra.mxu0 0.0
        %3084 = vmatpush.msra.mxu0 0.0
        %3085 = vmatpush.msra.mxu0 0.0
        %3086 = vmatpush.msra.mxu0 0.0
        %3087 = vmatpush.msra.mxu0 0.0
        %3088 = vmatpush.msra.mxu0 0.0
        %3089 = vmatpush.msra.mxu0 0.0
        %3090 = vmatpush.msra.mxu0 0.0
        %3091 = vmatpush.msra.mxu0 0.0
        %3092 = vmatpush.msra.mxu0 0.0
        %3093 = vmatpush.msra.mxu0 0.0
        %3094 = vmatpush.msra.mxu0 0.0
        %3095 = vmatpush.msra.mxu0 0.0
        %3096 = vmatpush.msra.mxu0 %v3074
        %3097 = vmatmul.f32.gmra.mxu0 %v3076
        %v3098 = vpop.f32.mrf.mxu0
        %v3099 = vadd.f32 0.0, %v3098
        %3100 = vmatmul.f32.gmra.mxu0 %v3079
        %v3101 = vpop.f32.mrf.mxu0
        %v3102 = vadd.f32 0.0, %v3101
        %3103 = vdwg.mxu0
        %v3105 = vsel %vm1069, %v2549, 0
        %v3108 = vsel %vm1069, %v2550, 0
        %3110 = vmatpush.msra.mxu0 0.0
        %3111 = vmatpush.msra.mxu0 0.0
        %3112 = vmatpush.msra.mxu0 0.0
        %3113 = vmatpush.msra.mxu0 0.0
        %3114 = vmatpush.msra.mxu0 0.0
        %3115 = vmatpush.msra.mxu0 0.0
        %3116 = vmatpush.msra.mxu0 0.0
        %3117 = vmatpush.msra.mxu0 0.0
        %3118 = vmatpush.msra.mxu0 0.0
        %3119 = vmatpush.msra.mxu0 0.0
        %3120 = vmatpush.msra.mxu0 0.0
        %3121 = vmatpush.msra.mxu0 0.0
        %3122 = vmatpush.msra.mxu0 0.0
        %3123 = vmatpush.msra.mxu0 0.0
        %3124 = vmatpush.msra.mxu0 0.0
        %3125 = vmatpush.msra.mxu0 %v3072
        %3126 = vmatmul.f32.gmra.mxu0 %v3105
        %v3127 = vpop.f32.mrf.mxu0
        %v3128 = vadd.f32 %v3099, %v3127
        %3129 = vmatmul.f32.gmra.mxu0 %v3108
        %v3130 = vpop.f32.mrf.mxu0
        %v3131 = vadd.f32 %v3102, %v3130
        %3132 = vdwg.mxu0
        %s3133 = scalar_lea.vmem %s7, 80
        %v3134 = vld [vmem:[%s3133] sm:$0xff]
        %v3136 = vsel %vm1069, %v2935, 0
        %v3139 = vsel %vm1069, %v2936, 0
        %3141 = vmatpush.msra.mxu0 0.0
        %3142 = vmatpush.msra.mxu0 0.0
        %3143 = vmatpush.msra.mxu0 0.0
        %3144 = vmatpush.msra.mxu0 0.0
        %3145 = vmatpush.msra.mxu0 0.0
        %3146 = vmatpush.msra.mxu0 0.0
        %3147 = vmatpush.msra.mxu0 0.0
        %3148 = vmatpush.msra.mxu0 0.0
        %3149 = vmatpush.msra.mxu0 0.0
        %3150 = vmatpush.msra.mxu0 0.0
        %3151 = vmatpush.msra.mxu0 0.0
        %3152 = vmatpush.msra.mxu0 0.0
        %3153 = vmatpush.msra.mxu0 0.0
        %3154 = vmatpush.msra.mxu0 0.0
        %3155 = vmatpush.msra.mxu0 0.0
        %3156 = vmatpush.msra.mxu0 %v3134
        %3157 = vmatmul.f32.gmra.mxu0 %v3136
        %v3158 = vpop.f32.mrf.mxu0
        %v3159 = vadd.f32 0.0, %v3158
        %3160 = vmatmul.f32.gmra.mxu0 %v3139
        %v3161 = vpop.f32.mrf.mxu0
        %v3162 = vadd.f32 0.0, %v3161
        %3163 = vdwg.mxu0
        %v3164 = vadd.f32 %v3128, %v3159
        %v3165 = vadd.f32 %v3131, %v3162
        %s3166 = scalar_lea.vmem %s7, 88
        %v3167 = vld [vmem:[%s3166] sm:$0xff]
        %v3169 = vsel %vm1069, %v3069, 0
        %v3172 = vsel %vm1069, %v3070, 0
        %3174 = vmatpush.msra.mxu0 0.0
        %3175 = vmatpush.msra.mxu0 0.0
        %3176 = vmatpush.msra.mxu0 0.0
        %3177 = vmatpush.msra.mxu0 0.0
        %3178 = vmatpush.msra.mxu0 0.0
        %3179 = vmatpush.msra.mxu0 0.0
        %3180 = vmatpush.msra.mxu0 0.0
        %3181 = vmatpush.msra.mxu0 0.0
        %3182 = vmatpush.msra.mxu0 0.0
        %3183 = vmatpush.msra.mxu0 0.0
        %3184 = vmatpush.msra.mxu0 0.0
        %3185 = vmatpush.msra.mxu0 0.0
        %3186 = vmatpush.msra.mxu0 0.0
        %3187 = vmatpush.msra.mxu0 0.0
        %3188 = vmatpush.msra.mxu0 0.0
        %3189 = vmatpush.msra.mxu0 %v3167
        %3190 = vmatmul.f32.gmra.mxu0 %v3169
        %v3191 = vpop.f32.mrf.mxu0
        %v3192 = vadd.f32 0.0, %v3191
        %3193 = vmatmul.f32.gmra.mxu0 %v3172
        %v3194 = vpop.f32.mrf.mxu0
        %v3195 = vadd.f32 0.0, %v3194
        %3196 = vdwg.mxu0
        %v3197 = vadd.f32 %v3164, %v3192
        %v3198 = vadd.f32 %v3165, %v3195
        %s3199 = scalar_lea.vmem %s8, 8
        %v3200 = vld [vmem:[%s3199] sm:$0x1]
        %v3201 = vperm.slane %v3200, 0
        %v3202 = vadd.f32 %v3197, %v3201
        %v3203 = vadd.f32 %v3198, %v3201
        %v3204 = vmax.f32 %v3202, 0.0
        %v3205 = vmax.f32 %v3203, 0.0
        %v3206 = vld [vmem:[%s3199 + $0x1] sm:$0x1]
        %v3207 = vperm.slane %v3206, 0
        %v3208 = vmul.f32 %v3204, %v3207
        %v3209 = vmul.f32 %v3205, %v3207
        %v3210 = vld [vmem:[%s3199 + $0x2] sm:$0x1]
        %v3211 = vperm.slane %v3210, 0
        %v3212 = vadd.f32 %v3208, %v3211
        %v3213 = vadd.f32 %v3209, %v3211
        %v3214 = vsel %vm878, %v3212, 0.0
        %v3215 = vsel %vm878, %v3213, 0.0
        %v3216 = vadd.f32 %v3214, %v3215
        %v3217 = vrot.slane %v3216, 4
        %v3218 = vadd.f32 %v3216, %v3217
        %v3219 = vrot.slane %v3218, 2
        %v3220 = vadd.f32 %v3218, %v3219
        %v3221 = vrot.slane %v3220, 1
        %v3222 = vadd.f32 %v3220, %v3221
        %v3223 = vmul.f32 %v3222, 0.0625
        %s3224 = scalar_lea.vmem %s9, 64
        %v3225 = vld [vmem:[%s3224] sm:$0xff]
        %v3226 = vld [vmem:[%s3224 + $0x8] sm:$0xff]
        %v3227 = vld [vmem:[%s3224 + $0x10] sm:$0xff]
        %v3228 = vld [vmem:[%s3224 + $0x18] sm:$0xff]
        %v3229 = vld [vmem:[%s10 + $0x2] sm:$0x1]
        %v3231 = vsel %vm878, %v3223, 0
        %3233 = vmatpush.msra.mxu0 0.0
        %3234 = vmatpush.msra.mxu0 0.0
        %3235 = vmatpush.msra.mxu0 0.0
        %3236 = vmatpush.msra.mxu0 0.0
        %3237 = vmatpush.msra.mxu0 0.0
        %3238 = vmatpush.msra.mxu0 0.0
        %3239 = vmatpush.msra.mxu0 0.0
        %3240 = vmatpush.msra.mxu0 0.0
        %3241 = vmatpush.msra.mxu0 0.0
        %3242 = vmatpush.msra.mxu0 0.0
        %3243 = vmatpush.msra.mxu0 0.0
        %3244 = vmatpush.msra.mxu0 0.0
        %3245 = vmatpush.msra.mxu0 %v3228
        %3246 = vmatpush.msra.mxu0 %v3227
        %3247 = vmatpush.msra.mxu0 %v3226
        %3248 = vmatpush.msra.mxu0 %v3225
        %3249 = vmatmul.f32.gmra.mxu0 %v3231
        %v3250 = vpop.f32.mrf.mxu0
        %v3251 = vadd.f32 %v3229, %v3250
        %3252 = vdwg.mxu0
        %v3253 = vmax.f32 %v3251, 0.0
        %s3254 = scalar_lea.vmem %s11, 32
        %v3255 = vld [vmem:[%s3254] sm:$0xff]
        %v3256 = vld [vmem:[%s3254 + $0x8] sm:$0xff]
        %v3257 = vld [vmem:[%s12 + $0x2] sm:$0x1]
        %v3259 = vsel %vm698, %v3253, 0
        %3261 = vmatpush.msra.mxu0 0.0
        %3262 = vmatpush.msra.mxu0 0.0
        %3263 = vmatpush.msra.mxu0 0.0
        %3264 = vmatpush.msra.mxu0 0.0
        %3265 = vmatpush.msra.mxu0 0.0
        %3266 = vmatpush.msra.mxu0 0.0
        %3267 = vmatpush.msra.mxu0 0.0
        %3268 = vmatpush.msra.mxu0 0.0
        %3269 = vmatpush.msra.mxu0 0.0
        %3270 = vmatpush.msra.mxu0 0.0
        %3271 = vmatpush.msra.mxu0 0.0
        %3272 = vmatpush.msra.mxu0 0.0
        %3273 = vmatpush.msra.mxu0 0.0
        %3274 = vmatpush.msra.mxu0 0.0
        %3275 = vmatpush.msra.mxu0 %v3256
        %3276 = vmatpush.msra.mxu0 %v3255
        %3277 = vmatmul.f32.gmra.mxu0 %v3259
        %v3278 = vpop.f32.mrf.mxu0
        %v3279 = vadd.f32 %v3257, %v3278
        %3280 = vdwg.mxu0
        %v3281 = vxor.u32 %v3279, 2147483648
        %v3282 = vmul.f32 %v3281, 1.442695
        %v3283 = vpow.pop %v3282
        %v3284 = vadd.f32 %v3283, 1.0
        %v3285 = vrcp.pop %v3284
        %v3286 = vmul.f32 %v3284, %v3285
        %v3287 = vsub.f32 1.0, %v3286
        %v3288 = vmul.f32 %v3285, %v3287
        %v3289 = vadd.f32 %v3285, %v3288
        %vm3290 = vweird.f32 %v3284
        %vm3291 = vweird.f32 %v3285
        %vm3292 = vmor %vm3290, %vm3291
        %v3293 = vsel %vm3292, %v3285, %v3289
        %v3294 = vand.u32 2147483647, %v3284
        %vm3295 = vcmp.eq.f32.partialorder %v3294, 8.507059e+37
        %v3296 = vand.u32 %v3284, 2147483648
        %v3297 = vor.u32 1.1754944e-38, %v3296
        %v3298 = vsel %vm3295, %v3297, %v3293
        %v3299 = vmul.f32 1.0, %v3298
        %v3300 = vperm.slane %v3299, 0
        %v3301 = vmul.f32 %v3212, %v3300
        %v3302 = vmul.f32 %v3213, %v3300
        %v3303 = vadd.f32 %v3301, %v2500
        %v3304 = vadd.f32 %v3302, %v2501
        %v3305 = vld [vmem:[%s13] sm:$0xff]
        %v3306 = vld [vmem:[%s13 + $0x8] sm:$0xff]
        %v3307 = vld [vmem:[%s13 + $0x10] sm:$0xff]
        %v3308 = vld [vmem:[%s13 + $0x18] sm:$0xff]
        %s3309 = scalar_lea.vmem %s13, 32
        %v3310 = vld [vmem:[%s3309] sm:$0xff]
        %v3311 = vld [vmem:[%s3309 + $0x8] sm:$0xff]
        %v3312 = vld [vmem:[%s3309 + $0x10] sm:$0xff]
        %v3313 = vld [vmem:[%s3309 + $0x18] sm:$0xff]
        %3314 = vmatpush.msra.mxu0 0.0
        %3315 = vmatpush.msra.mxu0 0.0
        %3316 = vmatpush.msra.mxu0 0.0
        %3317 = vmatpush.msra.mxu0 0.0
        %3318 = vmatpush.msra.mxu0 0.0
        %3319 = vmatpush.msra.mxu0 0.0
        %3320 = vmatpush.msra.mxu0 0.0
        %3321 = vmatpush.msra.mxu0 0.0
        %3322 = vmatpush.msra.mxu0 0.0
        %3323 = vmatpush.msra.mxu0 0.0
        %3324 = vmatpush.msra.mxu0 0.0
        %3325 = vmatpush.msra.mxu0 0.0
        %3326 = vmatpush.msra.mxu0 %v3313
        %3327 = vmatpush.msra.mxu0 %v3312
        %3328 = vmatpush.msra.mxu0 %v3311
        %3329 = vmatpush.msra.mxu0 %v3310
        %3330 = vmatmul.f32.gmra.mxu0 %v2511
        %v3331 = vpop.f32.mrf.mxu0
        %v3332 = vadd.f32 0.0, %v3331
        %3333 = vmatmul.f32.gmra.mxu0 %v2514
        %v3334 = vpop.f32.mrf.mxu0
        %v3335 = vadd.f32 0.0, %v3334
        %3336 = vdwg.mxu0
        %3337 = vmatpush.msra.mxu0 0.0
        %3338 = vmatpush.msra.mxu0 0.0
        %3339 = vmatpush.msra.mxu0 0.0
        %3340 = vmatpush.msra.mxu0 0.0
        %3341 = vmatpush.msra.mxu0 0.0
        %3342 = vmatpush.msra.mxu0 0.0
        %3343 = vmatpush.msra.mxu0 0.0
        %3344 = vmatpush.msra.mxu0 0.0
        %3345 = vmatpush.msra.mxu0 0.0
        %3346 = vmatpush.msra.mxu0 0.0
        %3347 = vmatpush.msra.mxu0 0.0
        %3348 = vmatpush.msra.mxu0 0.0
        %3349 = vmatpush.msra.mxu0 %v3308
        %3350 = vmatpush.msra.mxu0 %v3307
        %3351 = vmatpush.msra.mxu0 %v3306
        %3352 = vmatpush.msra.mxu0 %v3305
        %3353 = vmatmul.f32.gmra.mxu0 %v1681
        %v3354 = vpop.f32.mrf.mxu0
        %v3355 = vadd.f32 %v3332, %v3354
        %3356 = vmatmul.f32.gmra.mxu0 %v1684
        %v3357 = vpop.f32.mrf.mxu0
        %v3358 = vadd.f32 %v3335, %v3357
        %3359 = vdwg.mxu0
        %s3360 = scalar_lea.vmem %s13, 64
        %v3361 = vld [vmem:[%s3360] sm:$0xff]
        %v3362 = vld [vmem:[%s3360 + $0x8] sm:$0xff]
        %v3363 = vld [vmem:[%s3360 + $0x10] sm:$0xff]
        %v3364 = vld [vmem:[%s3360 + $0x18] sm:$0xff]
        %v3366 = vsel %vm878, %v3303, 0
        %v3369 = vsel %vm878, %v3304, 0
        %3371 = vmatpush.msra.mxu0 0.0
        %3372 = vmatpush.msra.mxu0 0.0
        %3373 = vmatpush.msra.mxu0 0.0
        %3374 = vmatpush.msra.mxu0 0.0
        %3375 = vmatpush.msra.mxu0 0.0
        %3376 = vmatpush.msra.mxu0 0.0
        %3377 = vmatpush.msra.mxu0 0.0
        %3378 = vmatpush.msra.mxu0 0.0
        %3379 = vmatpush.msra.mxu0 0.0
        %3380 = vmatpush.msra.mxu0 0.0
        %3381 = vmatpush.msra.mxu0 0.0
        %3382 = vmatpush.msra.mxu0 0.0
        %3383 = vmatpush.msra.mxu0 %v3364
        %3384 = vmatpush.msra.mxu0 %v3363
        %3385 = vmatpush.msra.mxu0 %v3362
        %3386 = vmatpush.msra.mxu0 %v3361
        %3387 = vmatmul.f32.gmra.mxu0 %v3366
        %v3388 = vpop.f32.mrf.mxu0
        %v3389 = vadd.f32 0.0, %v3388
        %3390 = vmatmul.f32.gmra.mxu0 %v3369
        %v3391 = vpop.f32.mrf.mxu0
        %v3392 = vadd.f32 0.0, %v3391
        %3393 = vdwg.mxu0
        %v3394 = vadd.f32 %v3355, %v3389
        %v3395 = vadd.f32 %v3358, %v3392
        %v3396 = vld [vmem:[%s14] sm:$0x1]
        %v3397 = vperm.slane %v3396, 0
        %v3398 = vadd.f32 %v3394, %v3397
        %v3399 = vadd.f32 %v3395, %v3397
        %v3400 = vmax.f32 %v3398, 0.0
        %v3401 = vmax.f32 %v3399, 0.0
        %v3402 = vld [vmem:[%s14 + $0x1] sm:$0x1]
        %v3403 = vperm.slane %v3402, 0
        %v3404 = vmul.f32 %v3400, %v3403
        %v3405 = vmul.f32 %v3401, %v3403
        %v3406 = vld [vmem:[%s14 + $0x2] sm:$0x1]
        %v3407 = vperm.slane %v3406, 0
        %v3408 = vadd.f32 %v3404, %v3407
        %v3409 = vadd.f32 %v3405, %v3407
        %vm3410 = vcmask 785408
        %v3411 = vsel %vm3410, %v3408, 0.0
        %v3412 = vsel %vm3410, %v3409, 0.0
        %v3413 = vadd.f32 %v3411, %v3412
        %v3414 = vrot.slane %v3413, 4
        %v3415 = vadd.f32 %v3413, %v3414
        %v3416 = vrot.slane %v3415, 2
        %v3417 = vadd.f32 %v3415, %v3416
        %v3418 = vrot.slane %v3417, 1
        %v3419 = vadd.f32 %v3417, %v3418
        %v3420 = vmul.f32 %v3419, 0.0625
        %v3421 = vsub.f32 %v3408, %v3420
        %v3422 = vsub.f32 %v3409, %v3420
        %v3423 = vmul.f32 %v3421, %v3421
        %v3424 = vmul.f32 %v3422, %v3422
        %v3425 = vsel %vm3410, %v3423, 0.0
        %v3426 = vsel %vm3410, %v3424, 0.0
        %v3427 = vadd.f32 %v3425, %v3426
        %v3428 = vrot.slane %v3427, 4
        %v3429 = vadd.f32 %v3427, %v3428
        %v3430 = vrot.slane %v3429, 2
        %v3431 = vadd.f32 %v3429, %v3430
        %v3432 = vrot.slane %v3431, 1
        %v3433 = vadd.f32 %v3431, %v3432
        %v3434 = vmul.f32 %v3433, 0.0625
        %v3435 = vmax.f32 %v3434, 1e-12
        %v3436 = vrsqrt.pop %v3435
        %v3437 = vmul.f32 %v3436, %v3435
        %v3438 = vmul.f32 %v3437, %v3436
        %v3439 = vmul.f32 0.5, %v3438
        %v3440 = vsub.f32 1.5, %v3439
        %v3441 = vmul.f32 %v3436, %v3440
        %v3442 = vmul.f32 %v3435, %v3441
        %vm3443 = vcmp.eq.f32.partialorder %v3435, inf
        %v3444 = vsel %vm3443, %v3435, %v3442
        %vm3445 = vcmp.eq.f32.partialorder %v3435, 0.0
        %v3446 = vand.u32 %v3435, 2147483648
        %v3447 = vsel %vm3445, %v3446, %v3444
        %v3448 = vld [vmem:[%s15] sm:$0xff]
        %v3449 = vld [vmem:[%s15 + $0x8] sm:$0xff]
        %v3450 = vld [vmem:[%s15 + $0x10] sm:$0xff]
        %v3451 = vld [vmem:[%s15 + $0x18] sm:$0xff]
        %v3452 = vld [vmem:[%s15 + $0x20] sm:$0xff]
        %v3453 = vld [vmem:[%s15 + $0x28] sm:$0xff]
        %v3454 = vld [vmem:[%s15 + $0x30] sm:$0xff]
        %v3455 = vld [vmem:[%s15 + $0x38] sm:$0xff]
        %v3456 = vld [vmem:[%s15 + $0x40] sm:$0xff]
        %v3457 = vld [vmem:[%s15 + $0x48] sm:$0xff]
        %v3458 = vld [vmem:[%s15 + $0x50] sm:$0xff]
        %v3459 = vld [vmem:[%s15 + $0x58] sm:$0xff]
        %s3460 = scalar_lea.vmem %s15, 96
        %v3461 = vld [vmem:[%s3460] sm:$0xff]
        %v3462 = vld [vmem:[%s3460 + $0x8] sm:$0xff]
        %v3463 = vld [vmem:[%s3460 + $0x10] sm:$0xff]
        %v3464 = vld [vmem:[%s3460 + $0x18] sm:$0xff]
        %v3465 = vld [vmem:[%s3460 + $0x20] sm:$0xff]
        %v3466 = vld [vmem:[%s3460 + $0x28] sm:$0xff]
        %v3467 = vld [vmem:[%s3460 + $0x30] sm:$0xff]
        %v3468 = vld [vmem:[%s3460 + $0x38] sm:$0xff]
        %v3469 = vld [vmem:[%s3460 + $0x40] sm:$0xff]
        %v3470 = vld [vmem:[%s3460 + $0x48] sm:$0xff]
        %v3471 = vld [vmem:[%s3460 + $0x50] sm:$0xff]
        %v3472 = vld [vmem:[%s3460 + $0x58] sm:$0xff]
        %v3474 = vsel %vm3410, %v3420, 0
        %3476 = vmatpush.msra.mxu0 0.0
        %3477 = vmatpush.msra.mxu0 0.0
        %3478 = vmatpush.msra.mxu0 0.0
        %3479 = vmatpush.msra.mxu0 0.0
        %3480 = vmatpush.msra.mxu0 %v3472
        %3481 = vmatpush.msra.mxu0 %v3471
        %3482 = vmatpush.msra.mxu0 %v3470
        %3483 = vmatpush.msra.mxu0 %v3469
        %3484 = vmatpush.msra.mxu0 %v3468
        %3485 = vmatpush.msra.mxu0 %v3467
        %3486 = vmatpush.msra.mxu0 %v3466
        %3487 = vmatpush.msra.mxu0 %v3465
        %3488 = vmatpush.msra.mxu0 %v3464
        %3489 = vmatpush.msra.mxu0 %v3463
        %3490 = vmatpush.msra.mxu0 %v3462
        %3491 = vmatpush.msra.mxu0 %v3461
        %3492 = vmatmul.f32.gmra.mxu0 %v3474
        %v3493 = vpop.f32.mrf.mxu0
        %v3494 = vadd.f32 0.0, %v3493
        %3495 = vdwg.mxu0
        %v3496 = vperm.slane %v3494, 0
        %v3498 = vsel %vm3410, %v3408, 0
        %v3501 = vsel %vm3410, %v3409, 0
        %3503 = vmatpush.msra.mxu0 0.0
        %3504 = vmatpush.msra.mxu0 0.0
        %3505 = vmatpush.msra.mxu0 0.0
        %3506 = vmatpush.msra.mxu0 0.0
        %3507 = vmatpush.msra.mxu0 %v3459
        %3508 = vmatpush.msra.mxu0 %v3458
        %3509 = vmatpush.msra.mxu0 %v3457
        %3510 = vmatpush.msra.mxu0 %v3456
        %3511 = vmatpush.msra.mxu0 %v3455
        %3512 = vmatpush.msra.mxu0 %v3454
        %3513 = vmatpush.msra.mxu0 %v3453
        %3514 = vmatpush.msra.mxu0 %v3452
        %3515 = vmatpush.msra.mxu0 %v3451
        %3516 = vmatpush.msra.mxu0 %v3450
        %3517 = vmatpush.msra.mxu0 %v3449
        %3518 = vmatpush.msra.mxu0 %v3448
        %3519 = vmatmul.f32.gmra.mxu0 %v3498
        %v3520 = vpop.f32.mrf.mxu0
        %v3521 = vadd.f32 %v3496, %v3520
        %3522 = vmatmul.f32.gmra.mxu0 %v3501
        %v3523 = vpop.f32.mrf.mxu0
        %v3524 = vadd.f32 %v3496, %v3523
        %3525 = vdwg.mxu0
        %s3526 = scalar_lea.vmem %s15, 192
        %v3527 = vld [vmem:[%s3526] sm:$0xff]
        %v3528 = vld [vmem:[%s3526 + $0x8] sm:$0xff]
        %v3529 = vld [vmem:[%s3526 + $0x10] sm:$0xff]
        %v3530 = vld [vmem:[%s3526 + $0x18] sm:$0xff]
        %v3531 = vld [vmem:[%s3526 + $0x20] sm:$0xff]
        %v3532 = vld [vmem:[%s3526 + $0x28] sm:$0xff]
        %v3533 = vld [vmem:[%s3526 + $0x30] sm:$0xff]
        %v3534 = vld [vmem:[%s3526 + $0x38] sm:$0xff]
        %v3535 = vld [vmem:[%s3526 + $0x40] sm:$0xff]
        %v3536 = vld [vmem:[%s3526 + $0x48] sm:$0xff]
        %v3537 = vld [vmem:[%s3526 + $0x50] sm:$0xff]
        %v3538 = vld [vmem:[%s3526 + $0x58] sm:$0xff]
        %v3540 = vsel %vm3410, %v3447, 0
        %3542 = vmatpush.msra.mxu0 0.0
        %3543 = vmatpush.msra.mxu0 0.0
        %3544 = vmatpush.msra.mxu0 0.0
        %3545 = vmatpush.msra.mxu0 0.0
        %3546 = vmatpush.msra.mxu0 %v3538
        %3547 = vmatpush.msra.mxu0 %v3537
        %3548 = vmatpush.msra.mxu0 %v3536
        %3549 = vmatpush.msra.mxu0 %v3535
        %3550 = vmatpush.msra.mxu0 %v3534
        %3551 = vmatpush.msra.mxu0 %v3533
        %3552 = vmatpush.msra.mxu0 %v3532
        %3553 = vmatpush.msra.mxu0 %v3531
        %3554 = vmatpush.msra.mxu0 %v3530
        %3555 = vmatpush.msra.mxu0 %v3529
        %3556 = vmatpush.msra.mxu0 %v3528
        %3557 = vmatpush.msra.mxu0 %v3527
        %3558 = vmatmul.f32.gmra.mxu0 %v3540
        %v3559 = vpop.f32.mrf.mxu0
        %v3560 = vadd.f32 0.0, %v3559
        %3561 = vdwg.mxu0
        %v3562 = vperm.slane %v3560, 0
        %v3563 = vadd.f32 %v3521, %v3562
        %v3564 = vadd.f32 %v3524, %v3562
        %v3565 = vld [vmem:[%s16] sm:$0x1]
        %v3566 = vperm.slane %v3565, 0
        %v3567 = vadd.f32 %v3563, %v3566
        %v3568 = vadd.f32 %v3564, %v3566
        %v3569 = vmax.f32 %v3567, 0.0
        %v3570 = vmax.f32 %v3568, 0.0
        %v3571 = vld [vmem:[%s16 + $0x1] sm:$0x1]
        %v3572 = vperm.slane %v3571, 0
        %v3573 = vmul.f32 %v3569, %v3572
        %v3574 = vmul.f32 %v3570, %v3572
        %v3575 = vld [vmem:[%s16 + $0x2] sm:$0x1]
        %v3576 = vperm.slane %v3575, 0
        %v3577 = vadd.f32 %v3573, %v3576
        %v3578 = vadd.f32 %v3574, %v3576
        %v3579 = vtanh.pop %v3577
        %v3580 = vtanh.pop %v3578
        %v3581 = vld [vmem:[%s17] sm:$0xff]
        %v3582 = vld [vmem:[%s17 + $0x8] sm:$0xff]
        %v3583 = vld [vmem:[%s18] sm:$0x1]
        %v3585 = vperm.slane %v3583, 0
        %v3588 = vsel %vm698, %v3579, 0
        %v3591 = vsel %vm698, %v3580, 0
        %3593 = vmatpush.msra.mxu0 0.0
        %3594 = vmatpush.msra.mxu0 0.0
        %3595 = vmatpush.msra.mxu0 0.0
        %3596 = vmatpush.msra.mxu0 0.0
        %3597 = vmatpush.msra.mxu0 0.0
        %3598 = vmatpush.msra.mxu0 0.0
        %3599 = vmatpush.msra.mxu0 0.0
        %3600 = vmatpush.msra.mxu0 0.0
        %3601 = vmatpush.msra.mxu0 0.0
        %3602 = vmatpush.msra.mxu0 0.0
        %3603 = vmatpush.msra.mxu0 0.0
        %3604 = vmatpush.msra.mxu0 0.0
        %3605 = vmatpush.msra.mxu0 0.0
        %3606 = vmatpush.msra.mxu0 0.0
        %3607 = vmatpush.msra.mxu0 %v3582
        %3608 = vmatpush.msra.mxu0 %v3581
        %3609 = vmatmul.f32.gmra.mxu0 %v3588
        %v3610 = vpop.f32.mrf.mxu0
        %v3611 = vadd.f32 %v3585, %v3610
        %3612 = vmatmul.f32.gmra.mxu0 %v3591
        %v3613 = vpop.f32.mrf.mxu0
        %v3614 = vadd.f32 %v3585, %v3613
        %3615 = vdwg.mxu0
        %v3616 = vsel %vm3410, %v3611, -inf
        %v3617 = vsel %vm3410, %v3614, -inf
        %v3618 = vmax.f32 %v3616, %v3617
        %v3619 = vrot.slane %v3618, 4
        %v3620 = vmax.f32 %v3618, %v3619
        %v3621 = vrot.slane %v3620, 2
        %v3622 = vmax.f32 %v3620, %v3621
        %v3623 = vrot.slane %v3622, 1
        %v3624 = vmax.f32 %v3622, %v3623
        %v3625 = vsub.f32 %v3611, %v3624
        %v3626 = vsub.f32 %v3614, %v3624
        %v3627 = vmul.f32 %v3625, 1.442695
        %v3628 = vpow.pop %v3627
        %v3629 = vmul.f32 %v3626, 1.442695
        %v3630 = vpow.pop %v3629
        %v3631 = vsel %vm3410, %v3628, 0.0
        %v3632 = vsel %vm3410, %v3630, 0.0
        %v3633 = vadd.f32 %v3631, %v3632
        %v3634 = vrot.slane %v3633, 4
        %v3635 = vadd.f32 %v3633, %v3634
        %v3636 = vrot.slane %v3635, 2
        %v3637 = vadd.f32 %v3635, %v3636
        %v3638 = vrot.slane %v3637, 1
        %v3639 = vadd.f32 %v3637, %v3638
        %v3640 = vrcp.pop %v3639
        %v3641 = vmul.f32 %v3639, %v3640
        %v3642 = vsub.f32 1.0, %v3641
        %v3643 = vmul.f32 %v3640, %v3642
        %v3644 = vadd.f32 %v3640, %v3643
        %vm3645 = vweird.f32 %v3639
        %vm3646 = vweird.f32 %v3640
        %vm3647 = vmor %vm3645, %vm3646
        %v3648 = vsel %vm3647, %v3640, %v3644
        %v3649 = vand.u32 2147483647, %v3639
        %vm3650 = vcmp.eq.f32.partialorder %v3649, 8.507059e+37
        %v3651 = vand.u32 %v3639, 2147483648
        %v3652 = vor.u32 1.1754944e-38, %v3651
        %v3653 = vsel %vm3650, %v3652, %v3648
        %v3654 = vmul.f32 %v3628, %v3653
        %v3655 = vmul.f32 %v3630, %v3653
        %v3656 = vmul.f32 %v3654, %v3408
        %v3657 = vmul.f32 %v3655, %v3409
        %v3658 = vsel %vm3410, %v3656, 0.0
        %v3659 = vsel %vm3410, %v3657, 0.0
        %v3660 = vadd.f32 %v3658, %v3659
        %v3661 = vrot.slane %v3660, 4
        %v3662 = vadd.f32 %v3660, %v3661
        %v3663 = vrot.slane %v3662, 2
        %v3664 = vadd.f32 %v3662, %v3663
        %v3665 = vrot.slane %v3664, 1
        %v3666 = vadd.f32 %v3664, %v3665
        %v3667 = vsub.f32 %v3408, %v3666
        %v3668 = vsub.f32 %v3409, %v3666
        %v3669 = vmul.f32 %v3667, %v3667
        %v3670 = vmul.f32 %v3668, %v3668
        %v3671 = vmul.f32 %v3654, %v3669
        %v3672 = vmul.f32 %v3655, %v3670
        %v3673 = vsel %vm3410, %v3671, 0.0
        %v3674 = vsel %vm3410, %v3672, 0.0
        %v3675 = vadd.f32 %v3673, %v3674
        %v3676 = vrot.slane %v3675, 4
        %v3677 = vadd.f32 %v3675, %v3676
        %v3678 = vrot.slane %v3677, 2
        %v3679 = vadd.f32 %v3677, %v3678
        %v3680 = vrot.slane %v3679, 1
        %v3681 = vadd.f32 %v3679, %v3680
        %v3682 = vmax.f32 %v3681, 1e-12
        %v3683 = vrsqrt.pop %v3682
        %v3684 = vmul.f32 %v3683, %v3682
        %v3685 = vmul.f32 %v3684, %v3683
        %v3686 = vmul.f32 0.5, %v3685
        %v3687 = vsub.f32 1.5, %v3686
        %v3688 = vmul.f32 %v3683, %v3687
        %v3689 = vmul.f32 %v3682, %v3688
        %vm3690 = vcmp.eq.f32.partialorder %v3682, inf
        %v3691 = vsel %vm3690, %v3682, %v3689
        %vm3692 = vcmp.eq.f32.partialorder %v3682, 0.0
        %v3693 = vand.u32 %v3682, 2147483648
        %v3694 = vsel %vm3692, %v3693, %v3691
        %v3695 = vld [vmem:[%s19] sm:$0xff]
        %v3696 = vld [vmem:[%s19 + $0x8] sm:$0xff]
        %v3697 = vld [vmem:[%s19 + $0x10] sm:$0xff]
        %v3698 = vld [vmem:[%s19 + $0x18] sm:$0xff]
        %v3699 = vld [vmem:[%s19 + $0x20] sm:$0xff]
        %v3700 = vld [vmem:[%s19 + $0x28] sm:$0xff]
        %v3701 = vld [vmem:[%s19 + $0x30] sm:$0xff]
        %v3702 = vld [vmem:[%s19 + $0x38] sm:$0xff]
        %v3703 = vld [vmem:[%s19 + $0x40] sm:$0xff]
        %v3704 = vld [vmem:[%s19 + $0x48] sm:$0xff]
        %v3705 = vld [vmem:[%s19 + $0x50] sm:$0xff]
        %v3706 = vld [vmem:[%s19 + $0x58] sm:$0xff]
        %s3707 = scalar_lea.vmem %s19, 96
        %v3708 = vld [vmem:[%s3707] sm:$0xff]
        %v3709 = vld [vmem:[%s3707 + $0x8] sm:$0xff]
        %v3710 = vld [vmem:[%s3707 + $0x10] sm:$0xff]
        %v3711 = vld [vmem:[%s3707 + $0x18] sm:$0xff]
        %v3712 = vld [vmem:[%s3707 + $0x20] sm:$0xff]
        %v3713 = vld [vmem:[%s3707 + $0x28] sm:$0xff]
        %v3714 = vld [vmem:[%s3707 + $0x30] sm:$0xff]
        %v3715 = vld [vmem:[%s3707 + $0x38] sm:$0xff]
        %v3716 = vld [vmem:[%s3707 + $0x40] sm:$0xff]
        %v3717 = vld [vmem:[%s3707 + $0x48] sm:$0xff]
        %v3718 = vld [vmem:[%s3707 + $0x50] sm:$0xff]
        %v3719 = vld [vmem:[%s3707 + $0x58] sm:$0xff]
        %v3721 = vsel %vm3410, %v3694, 0
        %3723 = vmatpush.msra.mxu0 0.0
        %3724 = vmatpush.msra.mxu0 0.0
        %3725 = vmatpush.msra.mxu0 0.0
        %3726 = vmatpush.msra.mxu0 0.0
        %3727 = vmatpush.msra.mxu0 %v3719
        %3728 = vmatpush.msra.mxu0 %v3718
        %3729 = vmatpush.msra.mxu0 %v3717
        %3730 = vmatpush.msra.mxu0 %v3716
        %3731 = vmatpush.msra.mxu0 %v3715
        %3732 = vmatpush.msra.mxu0 %v3714
        %3733 = vmatpush.msra.mxu0 %v3713
        %3734 = vmatpush.msra.mxu0 %v3712
        %3735 = vmatpush.msra.mxu0 %v3711
        %3736 = vmatpush.msra.mxu0 %v3710
        %3737 = vmatpush.msra.mxu0 %v3709
        %3738 = vmatpush.msra.mxu0 %v3708
        %3739 = vmatmul.f32.gmra.mxu0 %v3721
        %v3740 = vpop.f32.mrf.mxu0
        %v3741 = vadd.f32 0.0, %v3740
        %3742 = vdwg.mxu0
        %v3744 = vsel %vm3410, %v3666, 0
        %3746 = vmatpush.msra.mxu0 0.0
        %3747 = vmatpush.msra.mxu0 0.0
        %3748 = vmatpush.msra.mxu0 0.0
        %3749 = vmatpush.msra.mxu0 0.0
        %3750 = vmatpush.msra.mxu0 %v3706
        %3751 = vmatpush.msra.mxu0 %v3705
        %3752 = vmatpush.msra.mxu0 %v3704
        %3753 = vmatpush.msra.mxu0 %v3703
        %3754 = vmatpush.msra.mxu0 %v3702
        %3755 = vmatpush.msra.mxu0 %v3701
        %3756 = vmatpush.msra.mxu0 %v3700
        %3757 = vmatpush.msra.mxu0 %v3699
        %3758 = vmatpush.msra.mxu0 %v3698
        %3759 = vmatpush.msra.mxu0 %v3697
        %3760 = vmatpush.msra.mxu0 %v3696
        %3761 = vmatpush.msra.mxu0 %v3695
        %3762 = vmatmul.f32.gmra.mxu0 %v3744
        %v3763 = vpop.f32.mrf.mxu0
        %v3764 = vadd.f32 %v3741, %v3763
        %3765 = vdwg.mxu0
        %v3766 = vld [vmem:[%s20] sm:$0x1]
        %v3767 = vadd.f32 %v3764, %v3766
        %vm3768 = vcmask 253952
        %3769 = vst.msk [vmem:[%s648] sm:$0x1] %vm3768, %v3767
        %s3770 = sand.u32 %s489, 1
        %s3771 = scalar_lea.sflag [#allocation3], %s3770
        %s3772 = sand.u32 %s489, 1
        %s3773 = scalar_lea.vmem [#allocation2], %s3772
        // Predicated region
        $region105: #{ecapa_forward_pallas.1} parent=103 // pred_check
          %p3774 = pneg %p499
        $region106: #{ecapa_forward_pallas.1} parent=103 // pred_check_branch
          %3776 = sbr.rel (%p3774) target = $region108
        $region107: #{ecapa_forward_pallas.1} parent=103 // pred_region
          %3778 = vsyncadd %s3771, 0
          %s3779 = scalar_lea.hbm %s21, %s35
          %s3781 = sshll.u32 %s3773, 4
          %s3782 = int_to_ptr.vmem [resolvable:$true] %s3781
          %s3783 = sshll.u32 %s3779, 4
          %s3784 = int_to_ptr.hbm [resolvable:$true] %s3783
          %3786 = dma.vmem_to_hbm [thread:$0]  %s3782, 16, %s3784, %s3771
        $region108: #{ecapa_forward_pallas.1} parent=103 // pred_fallthru
          _
      $region104: #{ecapa_forward_pallas.1} parent=5 // pred_fallthru
        _
      %p3787 = scmp.le.s32.totalorder 2, %s30
      // Predicated region
      $region109: #{ecapa_forward_pallas.1} parent=5 // pred_check
        %p3788 = pneg %p3787
      $region110: #{ecapa_forward_pallas.1} parent=5 // pred_check_branch
        %3790 = sbr.rel (%p3788) target = $region112
      $region111: #{ecapa_forward_pallas.1} parent=5 // pred_region
        %s3791 = ssub.s32 %s30, 2
        // Predicated region
        $region113: #{ecapa_forward_pallas.1} parent=111 // pred_check
          %p3792 = pneg %p505
        $region114: #{ecapa_forward_pallas.1} parent=111 // pred_check_branch
          %3794 = sbr.rel (%p3792) target = $region116
        $region115: #{ecapa_forward_pallas.1} parent=111 // pred_region
          %s3795 = sand.u32 %s490, 1
          %s3796 = scalar_lea.sflag [#allocation3], %s3795
          %s3797 = sand.u32 %s490, 1
          %s3798 = scalar_lea.vmem [#allocation2], %s3797
          %3800 = dma.done %s3796, 16
        $region116: #{ecapa_forward_pallas.1} parent=111 // pred_fallthru
          _
      $region112: #{ecapa_forward_pallas.1} parent=5 // pred_fallthru
        _
    $region6: #{ecapa_forward_pallas.1} parent=1 // loop_footer
      %s34 = sadd.s32 1, %s30
    $region7: #{ecapa_forward_pallas.1} parent=1 // loop_footer_branch
      %29 = sbr.rel target = $region3
    $region8: #{ecapa_forward_pallas.1} parent=1 // loop_exit
      _
    %3801 = vsyncpa [#allocation3], 1
    %s3802 = scalar_lea.sflag [#allocation3], 1
    %3803 = vsyncpa %s3802, 1

</llo_original>
